<compile_context>
chip_gen: v5e
topology: v5e:2x2
jax: 0.10.0
libtpu: 0.0.40
codegen_flags: <defaults>
</compile_context>

<pallas_src>
import math

import jax
import jax.numpy as jnp
from jax import lax
from jax.experimental import pallas as pl
from jax.experimental.pallas import tpu as pltpu

# ----------------------- small, module-consistent config -----------------------
NUM_GLIMPSES = 2          # module default is 8; kept small for the demo
GLIMPSE_H = 4
GLIMPSE_W = 4
CHANNELS = 3
CONTROLLER_OUT = 32       # module default is 128; kept small for the demo
IMG_H = 16
IMG_W = 16
INPUT_SIZE = GLIMPSE_H * GLIMPSE_W * CHANNELS   # glimpse_h * glimpse_w * channels
GLIMPSER_PAD = 128        # lane-padded width of the glimpser linear output


# ----------------------------- kernel helpers ----------------------------------
def _cauchy_filterbank_t(delta, center, image_size, glimpse_size):
    """Transposed Cauchy filterbank: (B, glimpse_size, image_size).

    Equals PyTorch's GlimpseWindow._get_filterbanks(...).transpose(1, 2).
    delta, center: (B, 1) float32 in [-1, 1].
    """
    img = float(image_size)
    gsz = float(glimpse_size)
    centers = (img - 1.0) * (center + 1.0) / 2.0                   # (B, 1)
    deltas = img / gsz * (1.0 - jnp.abs(delta))                    # (B, 1)
    gammas = jnp.exp(1.0 - 2.0 * jnp.abs(delta))                   # (B, 1)

    gp = lax.broadcasted_iota(jnp.int32, (1, glimpse_size), 1).astype(jnp.float32)
    gp = gp - (gsz - 1.0) / 2.0                                    # (1, g)
    gp = deltas * gp + centers                                     # (B, g)

    ip = lax.broadcasted_iota(jnp.int32, (1, 1, image_size), 2).astype(jnp.float32)  # (1,1,I)
    fx = ip - gp[:, :, None]                                       # (B, g, I)
    fx = fx / gammas[:, :, None]
    fx = 1.0 + fx * fx
    fx = 1.0 / (math.pi * gammas[:, :, None] * fx)
    fx = fx / (jnp.sum(fx, axis=2, keepdims=True) + 1e-4)          # normalize over image axis
    return fx                                                      # (B, g, I)


# ------------------------------ fused Pallas kernel ------------------------------
def _skip_arc_kernel(img_ref, wg_ref, bg_ref, wih_ref, bih_ref,
                     whh_ref, bhh_ref, wuh_ref, buh_ref,
                     h_out_ref, gate_out_ref):
    # img:  (2, B, H, C*W)   images of the pair, channels folded into the lane dim
    # wg:   (Hc, 128)        glimpser Linear weight, zero-padded to 128 lanes
    # bg:   (1, 128)
    # wih:  (C*gh*gw, 4*Hc)  Skip-LSTM input weight (transposed, PyTorch flatten order)
    # whh:  (Hc, 4*Hc)       Skip-LSTM hidden weight (transposed)
    # wuh:  (1, Hc)          update-prob weight (row vector)
    B, Hc = h_out_ref.shape
    T = gate_out_ref.shape[1]
    H = img_ref.shape[2]
    W = IMG_W
    C = CHANNELS
    gh, gw = GLIMPSE_H, GLIMPSE_W

    # --- weights: loaded into VMEM/vregs once for the entire forward ---
    wg = wg_ref[...]
    bg = bg_ref[...]
    wih = wih_ref[...]
    bih = bih_ref[...]
    whh = whh_ref[...]
    bhh = bhh_ref[...]
    wuh = wuh_ref[...]
    buh = buh_ref[...]

    # controller.init_hidden: (c, h, update_prob=1, cum_update_prob=0)
    c = jnp.zeros((B, Hc), jnp.float32)
    h = jnp.zeros((B, Hc), jnp.float32)
    up = jnp.ones((B, 1), jnp.float32)
    cup = jnp.zeros((B, 1), jnp.float32)

    # lane mask selecting the cell-gate (tanh) quarter of the fused gate vector
    lane = lax.broadcasted_iota(jnp.int32, (B, 4 * Hc), 1)
    tanh_lane = (lane >= 2 * Hc) & (lane < 3 * Hc)

    xproj_hist = []   # cached x_t @ Wih + bih, one entry per glimpse
    gates_hist = []   # last-step update gate of each turn

    for turn in range(T):                                   # static unroll
        img = img_ref[turn % 2]                             # (B, H, C*W)

        # ---- glimpser: tanh(Linear(h_prev)) -> (h_center, w_center, delta) ----
        gp = jnp.tanh(jnp.dot(h, wg, preferred_element_type=jnp.float32) + bg)
        center_h = gp[:, 0:1]
        center_w = gp[:, 1:2]
        delta = gp[:, 2:3]

        # ---- Cauchy filterbanks (transposed) ----
        fh_t = _cauchy_filterbank_t(delta, center_h, H, gh)     # (B, gh, H) == F_h^T
        fw_t = _cauchy_filterbank_t(delta, center_w, W, gw)     # (B, gw, W) == F_w^T

        # ---- glimpse: F_h^T @ img @ F_w, channels folded into N on stage 1 ----
        tmp = jnp.einsum('bgh,bhn->bgn', fh_t, img,
                         preferred_element_type=jnp.float32)    # (B, gh, C*W)
        pieces = []
        for ch in range(C):
            tmp_c = tmp[:, :, ch * W:(ch + 1) * W]              # (B, gh, W)
            gl_c = jnp.einsum('bgw,bjw->bgj', tmp_c, fw_t,
                              preferred_element_type=jnp.float32)  # (B, gh, gw)
            pieces.append(gl_c.reshape(B, gh * gw))
        # flatten order (c, i, j) == PyTorch glimpses.view(B, -1)
        flat = jnp.concatenate(pieces, axis=-1)                 # (B, C*gh*gw)

        # cache the input projection once; every later replay re-uses it
        xproj_hist.append(
            jnp.dot(flat, wih, preferred_element_type=jnp.float32) + bih)  # (B, 4*Hc)

        # ---- Skip-LSTM: replay the whole glimpse history from the current state ----
        c_t, h_t, up_t, cup_t = c, h, up, cup
        gate = None
        for xp in xproj_hist:
            gates = xp + jnp.dot(h_t, whh, preferred_element_type=jnp.float32) + bhh
            act = jnp.where(tanh_lane, jnp.tanh(gates), jax.nn.sigmoid(gates))
            i_g = act[:, 0 * Hc:1 * Hc]
            f_g = act[:, 1 * Hc:2 * Hc]
            g_g = act[:, 2 * Hc:3 * Hc]
            o_g = act[:, 3 * Hc:4 * Hc]

            new_c = f_g * c_t + i_g * g_g
            new_h = o_g * jnp.tanh(new_c)
            # update-prob head as a VPU multiply + lane reduction (avoids an N=1 matmul)
            new_up = jax.nn.sigmoid(
                jnp.sum(new_c * wuh, axis=-1, keepdims=True) + buh)        # (B, 1)

            cum = cup_t + jnp.minimum(up_t, 1.0 - cup_t)
            gate = jnp.round(cum)        # straight-through binarizer (forward pass)

            c_t = gate * new_c + (1.0 - gate) * c_t
            h_t = gate * new_h + (1.0 - gate) * h_t
            up_t = gate * new_up + (1.0 - gate) * up_t
            cup_t = (1.0 - gate) * cum

        c, h, up, cup = c_t, h_t, up_t, cup_t
        gates_hist.append(gate)                               # (B, 1)

    # two stores total for the whole forward
    h_out_ref[...] = h                                        # (B, Hc)  == last hidden
    gate_out_ref[...] = jnp.concatenate(gates_hist, axis=-1)  # (B, T)   update gates


# ------------------------------ wrapper -----------------------------------------
_VMEM = pl.BlockSpec(memory_space=pltpu.MemorySpace.VMEM)


@jax.jit
def skip_arc_forward(image_pairs, params):
    """image_pairs: (B, 2, C, H, W).  Returns (last_hidden, updated_states)."""
    image_pairs = image_pairs.astype(jnp.float32)
    B = image_pairs.shape[0]
    T = 2 * NUM_GLIMPSES

    # layout plumbing (wrapper side): images as (2, B, H, C*W) so the kernel's first
    # glimpse matmul folds channels into the lane (N) dimension.
    img = jnp.transpose(image_pairs, (1, 0, 3, 2, 4)).reshape(
        2, B, IMG_H, CHANNELS * IMG_W)

    # pad the glimpser Linear to a lane-friendly 128-wide output (zero columns)
    wg_pad = jnp.zeros((CONTROLLER_OUT, GLIMPSER_PAD), jnp.float32)
    wg_pad = wg_pad.at[:, :3].set(params['wg_t'])
    bg_pad = jnp.zeros((1, GLIMPSER_PAD), jnp.float32).at[:, :3].set(params['bg'])

    h_last, gates = pl.pallas_call(
        _skip_arc_kernel,
        out_shape=(
            jax.ShapeDtypeStruct((B, CONTROLLER_OUT), jnp.float32),  # last hidden
            jax.ShapeDtypeStruct((B, T), jnp.float32),               # update gates
        ),
        in_specs=[_VMEM] * 9,
        out_specs=(_VMEM, _VMEM),
    )(img, wg_pad, bg_pad,
      params['wih_t'], params['bih'],
      params['whh_t'], params['bhh'],
      params['wuh'], params['buh'])

    last_hidden = h_last[:, None, :]                          # (B, 1, Hc) = all_hidden[-1]
    updated_states = jnp.transpose(gates)[:, :, None, None]   # (2N, B, 1, 1)
    return last_hidden, updated_states


# ------------------------------ deterministic params -----------------------------
def init_params(key):
    ks = jax.random.split(key, 8)
    s = 1.0 / math.sqrt(CONTROLLER_OUT)
    u = lambda k, shape: jax.random.uniform(k, shape, jnp.float32, -s, s)
    return {
        # glimpser: Linear(controller_out -> 3), stored transposed
        'wg_t': u(ks[0], (CONTROLLER_OUT, 3)),
        'bg': u(ks[1], (1, 3)),
        # Skip-LSTM cell weights (stored transposed: (in, out))
        'wih_t': u(ks[2], (INPUT_SIZE, 4 * CONTROLLER_OUT)),
        'whh_t': u(ks[3], (CONTROLLER_OUT, 4 * CONTROLLER_OUT)),
        'bih': u(ks[4], (1, 4 * CONTROLLER_OUT)),
        'bhh': u(ks[5], (1, 4 * CONTROLLER_OUT)),
        # update-prob head: Linear(controller_out -> 1), stored as a row vector
        'wuh': u(ks[6], (1, CONTROLLER_OUT)),
        'buh': u(ks[7], (1, 1)),
    }


if __name__ == "__main__":
    key = jax.random.PRNGKey(0)
    pkey, dkey = jax.random.split(key)
    params = init_params(pkey)

    # image_pairs: (B, 2, C, H, W) — a batch of image pairs.
    image_pairs = jax.random.uniform(dkey, (2, 2, CHANNELS, IMG_H, IMG_W), jnp.float32)

    last_hidden, updated_states = skip_arc_forward(image_pairs, params)
    last_hidden = jax.block_until_ready(last_hidden)
    updated_states = jax.block_until_ready(updated_states)

    assert last_hidden.shape == (2, 1, CONTROLLER_OUT)
    assert updated_states.shape == (2 * NUM_GLIMPSES, 2, 1, 1)
    assert bool(jnp.all(jnp.isfinite(last_hidden)))
    assert bool(jnp.all(jnp.isfinite(updated_states)))

    print("KERNEL_OK")
</pallas_src>

<mosaic_0001>
module attributes {stable_mosaic.version = 11 : i64} {
  func.func @_skip_arc_kernel(%arg0: memref<2x2x16x48xf32, #tpu.memory_space<vmem>>, %arg1: memref<32x128xf32, #tpu.memory_space<vmem>>, %arg2: memref<1x128xf32, #tpu.memory_space<vmem>>, %arg3: memref<48x128xf32, #tpu.memory_space<vmem>>, %arg4: memref<1x128xf32, #tpu.memory_space<vmem>>, %arg5: memref<32x128xf32, #tpu.memory_space<vmem>>, %arg6: memref<1x128xf32, #tpu.memory_space<vmem>>, %arg7: memref<1x32xf32, #tpu.memory_space<vmem>>, %arg8: memref<1x1xf32, #tpu.memory_space<vmem>>, %arg9: memref<2x32xf32, #tpu.memory_space<vmem>>, %arg10: memref<2x4xf32, #tpu.memory_space<vmem>>) attributes {dimension_semantics = [], scalar_prefetch = 0 : i64, scratch_operands = 0 : i64, tpu.core_type = #tpu.core_type<tc>} {
    %c0 = arith.constant 0 : index
    %c0_0 = arith.constant 0 : index
    %0 = vector.load %arg1[%c0, %c0_0] : memref<32x128xf32, #tpu.memory_space<vmem>>, vector<32x128xf32>
    %c0_1 = arith.constant 0 : index
    %c0_2 = arith.constant 0 : index
    %1 = vector.load %arg2[%c0_1, %c0_2] : memref<1x128xf32, #tpu.memory_space<vmem>>, vector<1x128xf32>
    %c0_3 = arith.constant 0 : index
    %c0_4 = arith.constant 0 : index
    %2 = vector.load %arg3[%c0_3, %c0_4] : memref<48x128xf32, #tpu.memory_space<vmem>>, vector<48x128xf32>
    %c0_5 = arith.constant 0 : index
    %c0_6 = arith.constant 0 : index
    %3 = vector.load %arg4[%c0_5, %c0_6] : memref<1x128xf32, #tpu.memory_space<vmem>>, vector<1x128xf32>
    %c0_7 = arith.constant 0 : index
    %c0_8 = arith.constant 0 : index
    %4 = vector.load %arg5[%c0_7, %c0_8] : memref<32x128xf32, #tpu.memory_space<vmem>>, vector<32x128xf32>
    %c0_9 = arith.constant 0 : index
    %c0_10 = arith.constant 0 : index
    %5 = vector.load %arg6[%c0_9, %c0_10] : memref<1x128xf32, #tpu.memory_space<vmem>>, vector<1x128xf32>
    %c0_11 = arith.constant 0 : index
    %c0_12 = arith.constant 0 : index
    %6 = vector.load %arg7[%c0_11, %c0_12] : memref<1x32xf32, #tpu.memory_space<vmem>>, vector<1x32xf32>
    %c0_13 = arith.constant 0 : index
    %c0_14 = arith.constant 0 : index
    %7 = vector.load %arg8[%c0_13, %c0_14] : memref<1x1xf32, #tpu.memory_space<vmem>>, vector<1x1xf32>
    %cst = arith.constant 0.000000e+00 : f32
    %8 = vector.broadcast %cst : f32 to vector<2x32xf32>
    %cst_15 = arith.constant 0.000000e+00 : f32
    %9 = vector.broadcast %cst_15 : f32 to vector<2x32xf32>
    %cst_16 = arith.constant 1.000000e+00 : f32
    %10 = vector.broadcast %cst_16 : f32 to vector<2x1xf32>
    %cst_17 = arith.constant 0.000000e+00 : f32
    %11 = vector.broadcast %cst_17 : f32 to vector<2x1xf32>
    %12 = tpu.iota {dimensions = array<i32: 1>} : vector<2x128xi32>
    %c64_i32 = arith.constant 64 : i32
    %13 = vector.broadcast %c64_i32 : i32 to vector<2x128xi32>
    %14 = arith.cmpi sge, %12, %13 : vector<2x128xi32>
    %c96_i32 = arith.constant 96 : i32
    %15 = vector.broadcast %c96_i32 : i32 to vector<2x128xi32>
    %16 = arith.cmpi slt, %12, %15 : vector<2x128xi32>
    %17 = arith.andi %14, %16 : vector<2x128xi1>
    %c0_18 = arith.constant 0 : index
    %c0_19 = arith.constant 0 : index
    %c0_20 = arith.constant 0 : index
    %c0_21 = arith.constant 0 : index
    %18 = vector.load %arg0[%c0_18, %c0_19, %c0_20, %c0_21] : memref<2x2x16x48xf32, #tpu.memory_space<vmem>>, vector<1x2x16x48xf32>
    %19 = vector.shape_cast %18 : vector<1x2x16x48xf32> to vector<2x16x48xf32>
    %cst_22 = arith.constant dense<0.000000e+00> : vector<2x128xf32>
    %20 = tpu.matmul %9, %0, %cst_22 {dimension_numbers = #tpu.dot_dimension_numbers<[1], [0], [0], [1], [0, 0, 1, 1], [], []>} : vector<2x32xf32>, vector<32x128xf32>, vector<2x128xf32> -> vector<2x128xf32>
    %21 = vector.broadcast %1 : vector<1x128xf32> to vector<2x128xf32>
    %22 = arith.addf %20, %21 : vector<2x128xf32>
    %23 = math.tanh %22 : vector<2x128xf32>
    %24 = vector.extract_strided_slice %23 {offsets = [0, 0], sizes = [2, 1], strides = [1, 1]} : vector<2x128xf32> to vector<2x1xf32>
    %25 = vector.extract_strided_slice %23 {offsets = [0, 1], sizes = [2, 1], strides = [1, 1]} : vector<2x128xf32> to vector<2x1xf32>
    %26 = vector.extract_strided_slice %23 {offsets = [0, 2], sizes = [2, 1], strides = [1, 1]} : vector<2x128xf32> to vector<2x1xf32>
    %cst_23 = arith.constant 1.000000e+00 : f32
    %27 = vector.broadcast %cst_23 : f32 to vector<2x1xf32>
    %28 = arith.addf %24, %27 : vector<2x1xf32>
    %cst_24 = arith.constant 1.500000e+01 : f32
    %29 = vector.broadcast %cst_24 : f32 to vector<2x1xf32>
    %30 = arith.mulf %29, %28 : vector<2x1xf32>
    %cst_25 = arith.constant 2.000000e+00 : f32
    %31 = vector.broadcast %cst_25 : f32 to vector<2x1xf32>
    %32 = arith.divf %30, %31 : vector<2x1xf32>
    %33 = math.absf %26 : vector<2x1xf32>
    %cst_26 = arith.constant 1.000000e+00 : f32
    %34 = vector.broadcast %cst_26 : f32 to vector<2x1xf32>
    %35 = arith.subf %34, %33 : vector<2x1xf32>
    %cst_27 = arith.constant 4.000000e+00 : f32
    %36 = vector.broadcast %cst_27 : f32 to vector<2x1xf32>
    %37 = arith.mulf %36, %35 : vector<2x1xf32>
    %38 = math.absf %26 : vector<2x1xf32>
    %cst_28 = arith.constant 2.000000e+00 : f32
    %39 = vector.broadcast %cst_28 : f32 to vector<2x1xf32>
    %40 = arith.mulf %39, %38 : vector<2x1xf32>
    %cst_29 = arith.constant 1.000000e+00 : f32
    %41 = vector.broadcast %cst_29 : f32 to vector<2x1xf32>
    %42 = arith.subf %41, %40 : vector<2x1xf32>
    %43 = math.exp %42 : vector<2x1xf32>
    %44 = tpu.iota {dimensions = array<i32: 1>} : vector<1x4xi32>
    %45 = arith.sitofp %44 : vector<1x4xi32> to vector<1x4xf32>
    %cst_30 = arith.constant 1.500000e+00 : f32
    %46 = vector.broadcast %cst_30 : f32 to vector<1x4xf32>
    %47 = arith.subf %45, %46 : vector<1x4xf32>
    %48 = vector.broadcast %37 : vector<2x1xf32> to vector<2x4xf32>
    %49 = vector.broadcast %47 : vector<1x4xf32> to vector<2x4xf32>
    %50 = arith.mulf %48, %49 : vector<2x4xf32>
    %51 = vector.broadcast %32 : vector<2x1xf32> to vector<2x4xf32>
    %52 = arith.addf %50, %51 : vector<2x4xf32>
    %53 = tpu.iota {dimensions = array<i32: 2>} : vector<1x1x16xi32>
    %54 = arith.sitofp %53 : vector<1x1x16xi32> to vector<1x1x16xf32>
    %55 = vector.shape_cast %52 : vector<2x4xf32> to vector<2x4x1xf32>
    %56 = vector.broadcast %54 : vector<1x1x16xf32> to vector<2x4x16xf32>
    %57 = vector.broadcast %55 : vector<2x4x1xf32> to vector<2x4x16xf32>
    %58 = arith.subf %56, %57 : vector<2x4x16xf32>
    %59 = vector.shape_cast %43 : vector<2x1xf32> to vector<2x1x1xf32>
    %60 = vector.broadcast %59 : vector<2x1x1xf32> to vector<2x4x16xf32>
    %61 = arith.divf %58, %60 : vector<2x4x16xf32>
    %62 = arith.mulf %61, %61 : vector<2x4x16xf32>
    %cst_31 = arith.constant 1.000000e+00 : f32
    %63 = vector.broadcast %cst_31 : f32 to vector<2x4x16xf32>
    %64 = arith.addf %63, %62 : vector<2x4x16xf32>
    %65 = vector.shape_cast %43 : vector<2x1xf32> to vector<2x1x1xf32>
    %cst_32 = arith.constant 3.14159274 : f32
    %66 = vector.broadcast %cst_32 : f32 to vector<2x1x1xf32>
    %67 = arith.mulf %66, %65 : vector<2x1x1xf32>
    %68 = vector.broadcast %67 : vector<2x1x1xf32> to vector<2x4x16xf32>
    %69 = arith.mulf %68, %64 : vector<2x4x16xf32>
    %cst_33 = arith.constant 1.000000e+00 : f32
    %70 = vector.broadcast %cst_33 : f32 to vector<2x4x16xf32>
    %71 = arith.divf %70, %69 : vector<2x4x16xf32>
    %cst_34 = arith.constant dense<0.000000e+00> : vector<2x4xf32>
    %72 = vector.multi_reduction <add>, %71, %cst_34 [2] : vector<2x4x16xf32> to vector<2x4xf32>
    %73 = vector.shape_cast %72 : vector<2x4xf32> to vector<2x4x1xf32>
    %cst_35 = arith.constant 9.99999974E-5 : f32
    %74 = vector.broadcast %cst_35 : f32 to vector<2x4x1xf32>
    %75 = arith.addf %73, %74 : vector<2x4x1xf32>
    %76 = vector.broadcast %75 : vector<2x4x1xf32> to vector<2x4x16xf32>
    %77 = arith.divf %71, %76 : vector<2x4x16xf32>
    %cst_36 = arith.constant 1.000000e+00 : f32
    %78 = vector.broadcast %cst_36 : f32 to vector<2x1xf32>
    %79 = arith.addf %25, %78 : vector<2x1xf32>
    %cst_37 = arith.constant 1.500000e+01 : f32
    %80 = vector.broadcast %cst_37 : f32 to vector<2x1xf32>
    %81 = arith.mulf %80, %79 : vector<2x1xf32>
    %cst_38 = arith.constant 2.000000e+00 : f32
    %82 = vector.broadcast %cst_38 : f32 to vector<2x1xf32>
    %83 = arith.divf %81, %82 : vector<2x1xf32>
    %84 = math.absf %26 : vector<2x1xf32>
    %cst_39 = arith.constant 1.000000e+00 : f32
    %85 = vector.broadcast %cst_39 : f32 to vector<2x1xf32>
    %86 = arith.subf %85, %84 : vector<2x1xf32>
    %cst_40 = arith.constant 4.000000e+00 : f32
    %87 = vector.broadcast %cst_40 : f32 to vector<2x1xf32>
    %88 = arith.mulf %87, %86 : vector<2x1xf32>
    %89 = math.absf %26 : vector<2x1xf32>
    %cst_41 = arith.constant 2.000000e+00 : f32
    %90 = vector.broadcast %cst_41 : f32 to vector<2x1xf32>
    %91 = arith.mulf %90, %89 : vector<2x1xf32>
    %cst_42 = arith.constant 1.000000e+00 : f32
    %92 = vector.broadcast %cst_42 : f32 to vector<2x1xf32>
    %93 = arith.subf %92, %91 : vector<2x1xf32>
    %94 = math.exp %93 : vector<2x1xf32>
    %95 = tpu.iota {dimensions = array<i32: 1>} : vector<1x4xi32>
    %96 = arith.sitofp %95 : vector<1x4xi32> to vector<1x4xf32>
    %cst_43 = arith.constant 1.500000e+00 : f32
    %97 = vector.broadcast %cst_43 : f32 to vector<1x4xf32>
    %98 = arith.subf %96, %97 : vector<1x4xf32>
    %99 = vector.broadcast %88 : vector<2x1xf32> to vector<2x4xf32>
    %100 = vector.broadcast %98 : vector<1x4xf32> to vector<2x4xf32>
    %101 = arith.mulf %99, %100 : vector<2x4xf32>
    %102 = vector.broadcast %83 : vector<2x1xf32> to vector<2x4xf32>
    %103 = arith.addf %101, %102 : vector<2x4xf32>
    %104 = tpu.iota {dimensions = array<i32: 2>} : vector<1x1x16xi32>
    %105 = arith.sitofp %104 : vector<1x1x16xi32> to vector<1x1x16xf32>
    %106 = vector.shape_cast %103 : vector<2x4xf32> to vector<2x4x1xf32>
    %107 = vector.broadcast %105 : vector<1x1x16xf32> to vector<2x4x16xf32>
    %108 = vector.broadcast %106 : vector<2x4x1xf32> to vector<2x4x16xf32>
    %109 = arith.subf %107, %108 : vector<2x4x16xf32>
    %110 = vector.shape_cast %94 : vector<2x1xf32> to vector<2x1x1xf32>
    %111 = vector.broadcast %110 : vector<2x1x1xf32> to vector<2x4x16xf32>
    %112 = arith.divf %109, %111 : vector<2x4x16xf32>
    %113 = arith.mulf %112, %112 : vector<2x4x16xf32>
    %cst_44 = arith.constant 1.000000e+00 : f32
    %114 = vector.broadcast %cst_44 : f32 to vector<2x4x16xf32>
    %115 = arith.addf %114, %113 : vector<2x4x16xf32>
    %116 = vector.shape_cast %94 : vector<2x1xf32> to vector<2x1x1xf32>
    %cst_45 = arith.constant 3.14159274 : f32
    %117 = vector.broadcast %cst_45 : f32 to vector<2x1x1xf32>
    %118 = arith.mulf %117, %116 : vector<2x1x1xf32>
    %119 = vector.broadcast %118 : vector<2x1x1xf32> to vector<2x4x16xf32>
    %120 = arith.mulf %119, %115 : vector<2x4x16xf32>
    %cst_46 = arith.constant 1.000000e+00 : f32
    %121 = vector.broadcast %cst_46 : f32 to vector<2x4x16xf32>
    %122 = arith.divf %121, %120 : vector<2x4x16xf32>
    %cst_47 = arith.constant dense<0.000000e+00> : vector<2x4xf32>
    %123 = vector.multi_reduction <add>, %122, %cst_47 [2] : vector<2x4x16xf32> to vector<2x4xf32>
    %124 = vector.shape_cast %123 : vector<2x4xf32> to vector<2x4x1xf32>
    %cst_48 = arith.constant 9.99999974E-5 : f32
    %125 = vector.broadcast %cst_48 : f32 to vector<2x4x1xf32>
    %126 = arith.addf %124, %125 : vector<2x4x1xf32>
    %127 = vector.broadcast %126 : vector<2x4x1xf32> to vector<2x4x16xf32>
    %128 = arith.divf %122, %127 : vector<2x4x16xf32>
    "tpu.trace_start"() <{level = 10 : i32, message = "bgh,bhn->bgn"}> : () -> ()
    %cst_49 = arith.constant dense<0.000000e+00> : vector<2x4x48xf32>
    %129 = tpu.matmul %77, %19, %cst_49 {dimension_numbers = #tpu.dot_dimension_numbers<[2], [1], [1], [2], [0, 0, 0, 1, 1, 2], [0], [0]>} : vector<2x4x16xf32>, vector<2x16x48xf32>, vector<2x4x48xf32> -> vector<2x4x48xf32>
    "tpu.trace_stop"() : () -> ()
    %130 = vector.extract_strided_slice %129 {offsets = [0, 0, 0], sizes = [2, 4, 16], strides = [1, 1, 1]} : vector<2x4x48xf32> to vector<2x4x16xf32>
    "tpu.trace_start"() <{level = 10 : i32, message = "bgw,bjw->bgj"}> : () -> ()
    %cst_50 = arith.constant dense<0.000000e+00> : vector<2x4x4xf32>
    %131 = tpu.matmul %130, %128, %cst_50 {dimension_numbers = #tpu.dot_dimension_numbers<[2], [2], [1], [1], [0, 0, 0, 1, 1, 1], [0], [0]>} : vector<2x4x16xf32>, vector<2x4x16xf32>, vector<2x4x4xf32> -> vector<2x4x4xf32>
    "tpu.trace_stop"() : () -> ()
    %132 = vector.shape_cast %131 : vector<2x4x4xf32> to vector<2x16xf32>
    %133 = vector.extract_strided_slice %129 {offsets = [0, 0, 16], sizes = [2, 4, 16], strides = [1, 1, 1]} : vector<2x4x48xf32> to vector<2x4x16xf32>
    "tpu.trace_start"() <{level = 10 : i32, message = "bgw,bjw->bgj"}> : () -> ()
    %cst_51 = arith.constant dense<0.000000e+00> : vector<2x4x4xf32>
    %134 = tpu.matmul %133, %128, %cst_51 {dimension_numbers = #tpu.dot_dimension_numbers<[2], [2], [1], [1], [0, 0, 0, 1, 1, 1], [0], [0]>} : vector<2x4x16xf32>, vector<2x4x16xf32>, vector<2x4x4xf32> -> vector<2x4x4xf32>
    "tpu.trace_stop"() : () -> ()
    %135 = vector.shape_cast %134 : vector<2x4x4xf32> to vector<2x16xf32>
    %136 = vector.extract_strided_slice %129 {offsets = [0, 0, 32], sizes = [2, 4, 16], strides = [1, 1, 1]} : vector<2x4x48xf32> to vector<2x4x16xf32>
    "tpu.trace_start"() <{level = 10 : i32, message = "bgw,bjw->bgj"}> : () -> ()
    %cst_52 = arith.constant dense<0.000000e+00> : vector<2x4x4xf32>
    %137 = tpu.matmul %136, %128, %cst_52 {dimension_numbers = #tpu.dot_dimension_numbers<[2], [2], [1], [1], [0, 0, 0, 1, 1, 1], [0], [0]>} : vector<2x4x16xf32>, vector<2x4x16xf32>, vector<2x4x4xf32> -> vector<2x4x4xf32>
    "tpu.trace_stop"() : () -> ()
    %138 = vector.shape_cast %137 : vector<2x4x4xf32> to vector<2x16xf32>
    %139 = tpu.concatenate %132, %135, %138 in 1 : vector<2x16xf32>, vector<2x16xf32>, vector<2x16xf32> -> vector<2x48xf32>
    %cst_53 = arith.constant dense<0.000000e+00> : vector<2x128xf32>
    %140 = tpu.matmul %139, %2, %cst_53 {dimension_numbers = #tpu.dot_dimension_numbers<[1], [0], [0], [1], [0, 0, 1, 1], [], []>} : vector<2x48xf32>, vector<48x128xf32>, vector<2x128xf32> -> vector<2x128xf32>
    %141 = vector.broadcast %3 : vector<1x128xf32> to vector<2x128xf32>
    %142 = arith.addf %140, %141 : vector<2x128xf32>
    %cst_54 = arith.constant dense<0.000000e+00> : vector<2x128xf32>
    %143 = tpu.matmul %9, %4, %cst_54 {dimension_numbers = #tpu.dot_dimension_numbers<[1], [0], [0], [1], [0, 0, 1, 1], [], []>} : vector<2x32xf32>, vector<32x128xf32>, vector<2x128xf32> -> vector<2x128xf32>
    %144 = arith.addf %142, %143 : vector<2x128xf32>
    %145 = vector.broadcast %5 : vector<1x128xf32> to vector<2x128xf32>
    %146 = arith.addf %144, %145 : vector<2x128xf32>
    %147 = math.tanh %146 : vector<2x128xf32>
    %148 = arith.negf %146 : vector<2x128xf32>
    %149 = math.exp %148 : vector<2x128xf32>
    %cst_55 = arith.constant 1.000000e+00 : f32
    %150 = vector.broadcast %cst_55 : f32 to vector<2x128xf32>
    %151 = arith.addf %150, %149 : vector<2x128xf32>
    %152 = arith.divf %150, %151 : vector<2x128xf32>
    %153 = arith.select %17, %147, %152 : vector<2x128xi1>, vector<2x128xf32>
    %154 = vector.extract_strided_slice %153 {offsets = [0, 0], sizes = [2, 32], strides = [1, 1]} : vector<2x128xf32> to vector<2x32xf32>
    %155 = vector.extract_strided_slice %153 {offsets = [0, 32], sizes = [2, 32], strides = [1, 1]} : vector<2x128xf32> to vector<2x32xf32>
    %156 = vector.extract_strided_slice %153 {offsets = [0, 64], sizes = [2, 32], strides = [1, 1]} : vector<2x128xf32> to vector<2x32xf32>
    %157 = vector.extract_strided_slice %153 {offsets = [0, 96], sizes = [2, 32], strides = [1, 1]} : vector<2x128xf32> to vector<2x32xf32>
    %158 = arith.mulf %155, %8 : vector<2x32xf32>
    %159 = arith.mulf %154, %156 : vector<2x32xf32>
    %160 = arith.addf %158, %159 : vector<2x32xf32>
    %161 = math.tanh %160 : vector<2x32xf32>
    %162 = arith.mulf %157, %161 : vector<2x32xf32>
    %163 = vector.broadcast %6 : vector<1x32xf32> to vector<2x32xf32>
    %164 = arith.mulf %160, %163 : vector<2x32xf32>
    %cst_56 = arith.constant dense<0.000000e+00> : vector<2xf32>
    %165 = vector.multi_reduction <add>, %164, %cst_56 [1] : vector<2x32xf32> to vector<2xf32>
    %166 = vector.shape_cast %165 : vector<2xf32> to vector<2x1xf32>
    %167 = vector.broadcast %7 : vector<1x1xf32> to vector<2x1xf32>
    %168 = arith.addf %166, %167 : vector<2x1xf32>
    %169 = arith.negf %168 : vector<2x1xf32>
    %170 = math.exp %169 : vector<2x1xf32>
    %cst_57 = arith.constant 1.000000e+00 : f32
    %171 = vector.broadcast %cst_57 : f32 to vector<2x1xf32>
    %172 = arith.addf %171, %170 : vector<2x1xf32>
    %173 = arith.divf %171, %172 : vector<2x1xf32>
    %cst_58 = arith.constant 1.000000e+00 : f32
    %174 = vector.broadcast %cst_58 : f32 to vector<2x1xf32>
    %175 = arith.subf %174, %11 : vector<2x1xf32>
    %176 = arith.minimumf %10, %175 : vector<2x1xf32>
    %177 = arith.addf %11, %176 : vector<2x1xf32>
    %178 = math.roundeven %177 : vector<2x1xf32>
    %179 = vector.broadcast %178 : vector<2x1xf32> to vector<2x32xf32>
    %180 = arith.mulf %179, %160 : vector<2x32xf32>
    %cst_59 = arith.constant 1.000000e+00 : f32
    %181 = vector.broadcast %cst_59 : f32 to vector<2x1xf32>
    %182 = arith.subf %181, %178 : vector<2x1xf32>
    %183 = vector.broadcast %182 : vector<2x1xf32> to vector<2x32xf32>
    %184 = arith.mulf %183, %8 : vector<2x32xf32>
    %185 = arith.addf %180, %184 : vector<2x32xf32>
    %186 = vector.broadcast %178 : vector<2x1xf32> to vector<2x32xf32>
    %187 = arith.mulf %186, %162 : vector<2x32xf32>
    %cst_60 = arith.constant 1.000000e+00 : f32
    %188 = vector.broadcast %cst_60 : f32 to vector<2x1xf32>
    %189 = arith.subf %188, %178 : vector<2x1xf32>
    %190 = vector.broadcast %189 : vector<2x1xf32> to vector<2x32xf32>
    %191 = arith.mulf %190, %9 : vector<2x32xf32>
    %192 = arith.addf %187, %191 : vector<2x32xf32>
    %193 = arith.mulf %178, %173 : vector<2x1xf32>
    %cst_61 = arith.constant 1.000000e+00 : f32
    %194 = vector.broadcast %cst_61 : f32 to vector<2x1xf32>
    %195 = arith.subf %194, %178 : vector<2x1xf32>
    %196 = arith.mulf %195, %10 : vector<2x1xf32>
    %197 = arith.addf %193, %196 : vector<2x1xf32>
    %cst_62 = arith.constant 1.000000e+00 : f32
    %198 = vector.broadcast %cst_62 : f32 to vector<2x1xf32>
    %199 = arith.subf %198, %178 : vector<2x1xf32>
    %200 = arith.mulf %199, %177 : vector<2x1xf32>
    %c1 = arith.constant 1 : index
    %c0_63 = arith.constant 0 : index
    %c0_64 = arith.constant 0 : index
    %c0_65 = arith.constant 0 : index
    %201 = vector.load %arg0[%c1, %c0_63, %c0_64, %c0_65] : memref<2x2x16x48xf32, #tpu.memory_space<vmem>>, vector<1x2x16x48xf32>
    %202 = vector.shape_cast %201 : vector<1x2x16x48xf32> to vector<2x16x48xf32>
    %cst_66 = arith.constant dense<0.000000e+00> : vector<2x128xf32>
    %203 = tpu.matmul %192, %0, %cst_66 {dimension_numbers = #tpu.dot_dimension_numbers<[1], [0], [0], [1], [0, 0, 1, 1], [], []>} : vector<2x32xf32>, vector<32x128xf32>, vector<2x128xf32> -> vector<2x128xf32>
    %204 = vector.broadcast %1 : vector<1x128xf32> to vector<2x128xf32>
    %205 = arith.addf %203, %204 : vector<2x128xf32>
    %206 = math.tanh %205 : vector<2x128xf32>
    %207 = vector.extract_strided_slice %206 {offsets = [0, 0], sizes = [2, 1], strides = [1, 1]} : vector<2x128xf32> to vector<2x1xf32>
    %208 = vector.extract_strided_slice %206 {offsets = [0, 1], sizes = [2, 1], strides = [1, 1]} : vector<2x128xf32> to vector<2x1xf32>
    %209 = vector.extract_strided_slice %206 {offsets = [0, 2], sizes = [2, 1], strides = [1, 1]} : vector<2x128xf32> to vector<2x1xf32>
    %cst_67 = arith.constant 1.000000e+00 : f32
    %210 = vector.broadcast %cst_67 : f32 to vector<2x1xf32>
    %211 = arith.addf %207, %210 : vector<2x1xf32>
    %cst_68 = arith.constant 1.500000e+01 : f32
    %212 = vector.broadcast %cst_68 : f32 to vector<2x1xf32>
    %213 = arith.mulf %212, %211 : vector<2x1xf32>
    %cst_69 = arith.constant 2.000000e+00 : f32
    %214 = vector.broadcast %cst_69 : f32 to vector<2x1xf32>
    %215 = arith.divf %213, %214 : vector<2x1xf32>
    %216 = math.absf %209 : vector<2x1xf32>
    %cst_70 = arith.constant 1.000000e+00 : f32
    %217 = vector.broadcast %cst_70 : f32 to vector<2x1xf32>
    %218 = arith.subf %217, %216 : vector<2x1xf32>
    %cst_71 = arith.constant 4.000000e+00 : f32
    %219 = vector.broadcast %cst_71 : f32 to vector<2x1xf32>
    %220 = arith.mulf %219, %218 : vector<2x1xf32>
    %221 = math.absf %209 : vector<2x1xf32>
    %cst_72 = arith.constant 2.000000e+00 : f32
    %222 = vector.broadcast %cst_72 : f32 to vector<2x1xf32>
    %223 = arith.mulf %222, %221 : vector<2x1xf32>
    %cst_73 = arith.constant 1.000000e+00 : f32
    %224 = vector.broadcast %cst_73 : f32 to vector<2x1xf32>
    %225 = arith.subf %224, %223 : vector<2x1xf32>
    %226 = math.exp %225 : vector<2x1xf32>
    %227 = tpu.iota {dimensions = array<i32: 1>} : vector<1x4xi32>
    %228 = arith.sitofp %227 : vector<1x4xi32> to vector<1x4xf32>
    %cst_74 = arith.constant 1.500000e+00 : f32
    %229 = vector.broadcast %cst_74 : f32 to vector<1x4xf32>
    %230 = arith.subf %228, %229 : vector<1x4xf32>
    %231 = vector.broadcast %220 : vector<2x1xf32> to vector<2x4xf32>
    %232 = vector.broadcast %230 : vector<1x4xf32> to vector<2x4xf32>
    %233 = arith.mulf %231, %232 : vector<2x4xf32>
    %234 = vector.broadcast %215 : vector<2x1xf32> to vector<2x4xf32>
    %235 = arith.addf %233, %234 : vector<2x4xf32>
    %236 = tpu.iota {dimensions = array<i32: 2>} : vector<1x1x16xi32>
    %237 = arith.sitofp %236 : vector<1x1x16xi32> to vector<1x1x16xf32>
    %238 = vector.shape_cast %235 : vector<2x4xf32> to vector<2x4x1xf32>
    %239 = vector.broadcast %237 : vector<1x1x16xf32> to vector<2x4x16xf32>
    %240 = vector.broadcast %238 : vector<2x4x1xf32> to vector<2x4x16xf32>
    %241 = arith.subf %239, %240 : vector<2x4x16xf32>
    %242 = vector.shape_cast %226 : vector<2x1xf32> to vector<2x1x1xf32>
    %243 = vector.broadcast %242 : vector<2x1x1xf32> to vector<2x4x16xf32>
    %244 = arith.divf %241, %243 : vector<2x4x16xf32>
    %245 = arith.mulf %244, %244 : vector<2x4x16xf32>
    %cst_75 = arith.constant 1.000000e+00 : f32
    %246 = vector.broadcast %cst_75 : f32 to vector<2x4x16xf32>
    %247 = arith.addf %246, %245 : vector<2x4x16xf32>
    %248 = vector.shape_cast %226 : vector<2x1xf32> to vector<2x1x1xf32>
    %cst_76 = arith.constant 3.14159274 : f32
    %249 = vector.broadcast %cst_76 : f32 to vector<2x1x1xf32>
    %250 = arith.mulf %249, %248 : vector<2x1x1xf32>
    %251 = vector.broadcast %250 : vector<2x1x1xf32> to vector<2x4x16xf32>
    %252 = arith.mulf %251, %247 : vector<2x4x16xf32>
    %cst_77 = arith.constant 1.000000e+00 : f32
    %253 = vector.broadcast %cst_77 : f32 to vector<2x4x16xf32>
    %254 = arith.divf %253, %252 : vector<2x4x16xf32>
    %cst_78 = arith.constant dense<0.000000e+00> : vector<2x4xf32>
    %255 = vector.multi_reduction <add>, %254, %cst_78 [2] : vector<2x4x16xf32> to vector<2x4xf32>
    %256 = vector.shape_cast %255 : vector<2x4xf32> to vector<2x4x1xf32>
    %cst_79 = arith.constant 9.99999974E-5 : f32
    %257 = vector.broadcast %cst_79 : f32 to vector<2x4x1xf32>
    %258 = arith.addf %256, %257 : vector<2x4x1xf32>
    %259 = vector.broadcast %258 : vector<2x4x1xf32> to vector<2x4x16xf32>
    %260 = arith.divf %254, %259 : vector<2x4x16xf32>
    %cst_80 = arith.constant 1.000000e+00 : f32
    %261 = vector.broadcast %cst_80 : f32 to vector<2x1xf32>
    %262 = arith.addf %208, %261 : vector<2x1xf32>
    %cst_81 = arith.constant 1.500000e+01 : f32
    %263 = vector.broadcast %cst_81 : f32 to vector<2x1xf32>
    %264 = arith.mulf %263, %262 : vector<2x1xf32>
    %cst_82 = arith.constant 2.000000e+00 : f32
    %265 = vector.broadcast %cst_82 : f32 to vector<2x1xf32>
    %266 = arith.divf %264, %265 : vector<2x1xf32>
    %267 = math.absf %209 : vector<2x1xf32>
    %cst_83 = arith.constant 1.000000e+00 : f32
    %268 = vector.broadcast %cst_83 : f32 to vector<2x1xf32>
    %269 = arith.subf %268, %267 : vector<2x1xf32>
    %cst_84 = arith.constant 4.000000e+00 : f32
    %270 = vector.broadcast %cst_84 : f32 to vector<2x1xf32>
    %271 = arith.mulf %270, %269 : vector<2x1xf32>
    %272 = math.absf %209 : vector<2x1xf32>
    %cst_85 = arith.constant 2.000000e+00 : f32
    %273 = vector.broadcast %cst_85 : f32 to vector<2x1xf32>
    %274 = arith.mulf %273, %272 : vector<2x1xf32>
    %cst_86 = arith.constant 1.000000e+00 : f32
    %275 = vector.broadcast %cst_86 : f32 to vector<2x1xf32>
    %276 = arith.subf %275, %274 : vector<2x1xf32>
    %277 = math.exp %276 : vector<2x1xf32>
    %278 = tpu.iota {dimensions = array<i32: 1>} : vector<1x4xi32>
    %279 = arith.sitofp %278 : vector<1x4xi32> to vector<1x4xf32>
    %cst_87 = arith.constant 1.500000e+00 : f32
    %280 = vector.broadcast %cst_87 : f32 to vector<1x4xf32>
    %281 = arith.subf %279, %280 : vector<1x4xf32>
    %282 = vector.broadcast %271 : vector<2x1xf32> to vector<2x4xf32>
    %283 = vector.broadcast %281 : vector<1x4xf32> to vector<2x4xf32>
    %284 = arith.mulf %282, %283 : vector<2x4xf32>
    %285 = vector.broadcast %266 : vector<2x1xf32> to vector<2x4xf32>
    %286 = arith.addf %284, %285 : vector<2x4xf32>
    %287 = tpu.iota {dimensions = array<i32: 2>} : vector<1x1x16xi32>
    %288 = arith.sitofp %287 : vector<1x1x16xi32> to vector<1x1x16xf32>
    %289 = vector.shape_cast %286 : vector<2x4xf32> to vector<2x4x1xf32>
    %290 = vector.broadcast %288 : vector<1x1x16xf32> to vector<2x4x16xf32>
    %291 = vector.broadcast %289 : vector<2x4x1xf32> to vector<2x4x16xf32>
    %292 = arith.subf %290, %291 : vector<2x4x16xf32>
    %293 = vector.shape_cast %277 : vector<2x1xf32> to vector<2x1x1xf32>
    %294 = vector.broadcast %293 : vector<2x1x1xf32> to vector<2x4x16xf32>
    %295 = arith.divf %292, %294 : vector<2x4x16xf32>
    %296 = arith.mulf %295, %295 : vector<2x4x16xf32>
    %cst_88 = arith.constant 1.000000e+00 : f32
    %297 = vector.broadcast %cst_88 : f32 to vector<2x4x16xf32>
    %298 = arith.addf %297, %296 : vector<2x4x16xf32>
    %299 = vector.shape_cast %277 : vector<2x1xf32> to vector<2x1x1xf32>
    %cst_89 = arith.constant 3.14159274 : f32
    %300 = vector.broadcast %cst_89 : f32 to vector<2x1x1xf32>
    %301 = arith.mulf %300, %299 : vector<2x1x1xf32>
    %302 = vector.broadcast %301 : vector<2x1x1xf32> to vector<2x4x16xf32>
    %303 = arith.mulf %302, %298 : vector<2x4x16xf32>
    %cst_90 = arith.constant 1.000000e+00 : f32
    %304 = vector.broadcast %cst_90 : f32 to vector<2x4x16xf32>
    %305 = arith.divf %304, %303 : vector<2x4x16xf32>
    %cst_91 = arith.constant dense<0.000000e+00> : vector<2x4xf32>
    %306 = vector.multi_reduction <add>, %305, %cst_91 [2] : vector<2x4x16xf32> to vector<2x4xf32>
    %307 = vector.shape_cast %306 : vector<2x4xf32> to vector<2x4x1xf32>
    %cst_92 = arith.constant 9.99999974E-5 : f32
    %308 = vector.broadcast %cst_92 : f32 to vector<2x4x1xf32>
    %309 = arith.addf %307, %308 : vector<2x4x1xf32>
    %310 = vector.broadcast %309 : vector<2x4x1xf32> to vector<2x4x16xf32>
    %311 = arith.divf %305, %310 : vector<2x4x16xf32>
    "tpu.trace_start"() <{level = 10 : i32, message = "bgh,bhn->bgn"}> : () -> ()
    %cst_93 = arith.constant dense<0.000000e+00> : vector<2x4x48xf32>
    %312 = tpu.matmul %260, %202, %cst_93 {dimension_numbers = #tpu.dot_dimension_numbers<[2], [1], [1], [2], [0, 0, 0, 1, 1, 2], [0], [0]>} : vector<2x4x16xf32>, vector<2x16x48xf32>, vector<2x4x48xf32> -> vector<2x4x48xf32>
    "tpu.trace_stop"() : () -> ()
    %313 = vector.extract_strided_slice %312 {offsets = [0, 0, 0], sizes = [2, 4, 16], strides = [1, 1, 1]} : vector<2x4x48xf32> to vector<2x4x16xf32>
    "tpu.trace_start"() <{level = 10 : i32, message = "bgw,bjw->bgj"}> : () -> ()
    %cst_94 = arith.constant dense<0.000000e+00> : vector<2x4x4xf32>
    %314 = tpu.matmul %313, %311, %cst_94 {dimension_numbers = #tpu.dot_dimension_numbers<[2], [2], [1], [1], [0, 0, 0, 1, 1, 1], [0], [0]>} : vector<2x4x16xf32>, vector<2x4x16xf32>, vector<2x4x4xf32> -> vector<2x4x4xf32>
    "tpu.trace_stop"() : () -> ()
    %315 = vector.shape_cast %314 : vector<2x4x4xf32> to vector<2x16xf32>
    %316 = vector.extract_strided_slice %312 {offsets = [0, 0, 16], sizes = [2, 4, 16], strides = [1, 1, 1]} : vector<2x4x48xf32> to vector<2x4x16xf32>
    "tpu.trace_start"() <{level = 10 : i32, message = "bgw,bjw->bgj"}> : () -> ()
    %cst_95 = arith.constant dense<0.000000e+00> : vector<2x4x4xf32>
    %317 = tpu.matmul %316, %311, %cst_95 {dimension_numbers = #tpu.dot_dimension_numbers<[2], [2], [1], [1], [0, 0, 0, 1, 1, 1], [0], [0]>} : vector<2x4x16xf32>, vector<2x4x16xf32>, vector<2x4x4xf32> -> vector<2x4x4xf32>
    "tpu.trace_stop"() : () -> ()
    %318 = vector.shape_cast %317 : vector<2x4x4xf32> to vector<2x16xf32>
    %319 = vector.extract_strided_slice %312 {offsets = [0, 0, 32], sizes = [2, 4, 16], strides = [1, 1, 1]} : vector<2x4x48xf32> to vector<2x4x16xf32>
    "tpu.trace_start"() <{level = 10 : i32, message = "bgw,bjw->bgj"}> : () -> ()
    %cst_96 = arith.constant dense<0.000000e+00> : vector<2x4x4xf32>
    %320 = tpu.matmul %319, %311, %cst_96 {dimension_numbers = #tpu.dot_dimension_numbers<[2], [2], [1], [1], [0, 0, 0, 1, 1, 1], [0], [0]>} : vector<2x4x16xf32>, vector<2x4x16xf32>, vector<2x4x4xf32> -> vector<2x4x4xf32>
    "tpu.trace_stop"() : () -> ()
    %321 = vector.shape_cast %320 : vector<2x4x4xf32> to vector<2x16xf32>
    %322 = tpu.concatenate %315, %318, %321 in 1 : vector<2x16xf32>, vector<2x16xf32>, vector<2x16xf32> -> vector<2x48xf32>
    %cst_97 = arith.constant dense<0.000000e+00> : vector<2x128xf32>
    %323 = tpu.matmul %322, %2, %cst_97 {dimension_numbers = #tpu.dot_dimension_numbers<[1], [0], [0], [1], [0, 0, 1, 1], [], []>} : vector<2x48xf32>, vector<48x128xf32>, vector<2x128xf32> -> vector<2x128xf32>
    %324 = vector.broadcast %3 : vector<1x128xf32> to vector<2x128xf32>
    %325 = arith.addf %323, %324 : vector<2x128xf32>
    %cst_98 = arith.constant dense<0.000000e+00> : vector<2x128xf32>
    %326 = tpu.matmul %192, %4, %cst_98 {dimension_numbers = #tpu.dot_dimension_numbers<[1], [0], [0], [1], [0, 0, 1, 1], [], []>} : vector<2x32xf32>, vector<32x128xf32>, vector<2x128xf32> -> vector<2x128xf32>
    %327 = arith.addf %142, %326 : vector<2x128xf32>
    %328 = vector.broadcast %5 : vector<1x128xf32> to vector<2x128xf32>
    %329 = arith.addf %327, %328 : vector<2x128xf32>
    %330 = math.tanh %329 : vector<2x128xf32>
    %331 = arith.negf %329 : vector<2x128xf32>
    %332 = math.exp %331 : vector<2x128xf32>
    %cst_99 = arith.constant 1.000000e+00 : f32
    %333 = vector.broadcast %cst_99 : f32 to vector<2x128xf32>
    %334 = arith.addf %333, %332 : vector<2x128xf32>
    %335 = arith.divf %333, %334 : vector<2x128xf32>
    %336 = arith.select %17, %330, %335 : vector<2x128xi1>, vector<2x128xf32>
    %337 = vector.extract_strided_slice %336 {offsets = [0, 0], sizes = [2, 32], strides = [1, 1]} : vector<2x128xf32> to vector<2x32xf32>
    %338 = vector.extract_strided_slice %336 {offsets = [0, 32], sizes = [2, 32], strides = [1, 1]} : vector<2x128xf32> to vector<2x32xf32>
    %339 = vector.extract_strided_slice %336 {offsets = [0, 64], sizes = [2, 32], strides = [1, 1]} : vector<2x128xf32> to vector<2x32xf32>
    %340 = vector.extract_strided_slice %336 {offsets = [0, 96], sizes = [2, 32], strides = [1, 1]} : vector<2x128xf32> to vector<2x32xf32>
    %341 = arith.mulf %338, %185 : vector<2x32xf32>
    %342 = arith.mulf %337, %339 : vector<2x32xf32>
    %343 = arith.addf %341, %342 : vector<2x32xf32>
    %344 = math.tanh %343 : vector<2x32xf32>
    %345 = arith.mulf %340, %344 : vector<2x32xf32>
    %346 = vector.broadcast %6 : vector<1x32xf32> to vector<2x32xf32>
    %347 = arith.mulf %343, %346 : vector<2x32xf32>
    %cst_100 = arith.constant dense<0.000000e+00> : vector<2xf32>
    %348 = vector.multi_reduction <add>, %347, %cst_100 [1] : vector<2x32xf32> to vector<2xf32>
    %349 = vector.shape_cast %348 : vector<2xf32> to vector<2x1xf32>
    %350 = vector.broadcast %7 : vector<1x1xf32> to vector<2x1xf32>
    %351 = arith.addf %349, %350 : vector<2x1xf32>
    %352 = arith.negf %351 : vector<2x1xf32>
    %353 = math.exp %352 : vector<2x1xf32>
    %cst_101 = arith.constant 1.000000e+00 : f32
    %354 = vector.broadcast %cst_101 : f32 to vector<2x1xf32>
    %355 = arith.addf %354, %353 : vector<2x1xf32>
    %356 = arith.divf %354, %355 : vector<2x1xf32>
    %cst_102 = arith.constant 1.000000e+00 : f32
    %357 = vector.broadcast %cst_102 : f32 to vector<2x1xf32>
    %358 = arith.subf %357, %200 : vector<2x1xf32>
    %359 = arith.minimumf %197, %358 : vector<2x1xf32>
    %360 = arith.addf %200, %359 : vector<2x1xf32>
    %361 = math.roundeven %360 : vector<2x1xf32>
    %362 = vector.broadcast %361 : vector<2x1xf32> to vector<2x32xf32>
    %363 = arith.mulf %362, %343 : vector<2x32xf32>
    %cst_103 = arith.constant 1.000000e+00 : f32
    %364 = vector.broadcast %cst_103 : f32 to vector<2x1xf32>
    %365 = arith.subf %364, %361 : vector<2x1xf32>
    %366 = vector.broadcast %365 : vector<2x1xf32> to vector<2x32xf32>
    %367 = arith.mulf %366, %185 : vector<2x32xf32>
    %368 = arith.addf %363, %367 : vector<2x32xf32>
    %369 = vector.broadcast %361 : vector<2x1xf32> to vector<2x32xf32>
    %370 = arith.mulf %369, %345 : vector<2x32xf32>
    %cst_104 = arith.constant 1.000000e+00 : f32
    %371 = vector.broadcast %cst_104 : f32 to vector<2x1xf32>
    %372 = arith.subf %371, %361 : vector<2x1xf32>
    %373 = vector.broadcast %372 : vector<2x1xf32> to vector<2x32xf32>
    %374 = arith.mulf %373, %192 : vector<2x32xf32>
    %375 = arith.addf %370, %374 : vector<2x32xf32>
    %376 = arith.mulf %361, %356 : vector<2x1xf32>
    %cst_105 = arith.constant 1.000000e+00 : f32
    %377 = vector.broadcast %cst_105 : f32 to vector<2x1xf32>
    %378 = arith.subf %377, %361 : vector<2x1xf32>
    %379 = arith.mulf %378, %197 : vector<2x1xf32>
    %380 = arith.addf %376, %379 : vector<2x1xf32>
    %cst_106 = arith.constant 1.000000e+00 : f32
    %381 = vector.broadcast %cst_106 : f32 to vector<2x1xf32>
    %382 = arith.subf %381, %361 : vector<2x1xf32>
    %383 = arith.mulf %382, %360 : vector<2x1xf32>
    %cst_107 = arith.constant dense<0.000000e+00> : vector<2x128xf32>
    %384 = tpu.matmul %375, %4, %cst_107 {dimension_numbers = #tpu.dot_dimension_numbers<[1], [0], [0], [1], [0, 0, 1, 1], [], []>} : vector<2x32xf32>, vector<32x128xf32>, vector<2x128xf32> -> vector<2x128xf32>
    %385 = arith.addf %325, %384 : vector<2x128xf32>
    %386 = vector.broadcast %5 : vector<1x128xf32> to vector<2x128xf32>
    %387 = arith.addf %385, %386 : vector<2x128xf32>
    %388 = math.tanh %387 : vector<2x128xf32>
    %389 = arith.negf %387 : vector<2x128xf32>
    %390 = math.exp %389 : vector<2x128xf32>
    %cst_108 = arith.constant 1.000000e+00 : f32
    %391 = vector.broadcast %cst_108 : f32 to vector<2x128xf32>
    %392 = arith.addf %391, %390 : vector<2x128xf32>
    %393 = arith.divf %391, %392 : vector<2x128xf32>
    %394 = arith.select %17, %388, %393 : vector<2x128xi1>, vector<2x128xf32>
    %395 = vector.extract_strided_slice %394 {offsets = [0, 0], sizes = [2, 32], strides = [1, 1]} : vector<2x128xf32> to vector<2x32xf32>
    %396 = vector.extract_strided_slice %394 {offsets = [0, 32], sizes = [2, 32], strides = [1, 1]} : vector<2x128xf32> to vector<2x32xf32>
    %397 = vector.extract_strided_slice %394 {offsets = [0, 64], sizes = [2, 32], strides = [1, 1]} : vector<2x128xf32> to vector<2x32xf32>
    %398 = vector.extract_strided_slice %394 {offsets = [0, 96], sizes = [2, 32], strides = [1, 1]} : vector<2x128xf32> to vector<2x32xf32>
    %399 = arith.mulf %396, %368 : vector<2x32xf32>
    %400 = arith.mulf %395, %397 : vector<2x32xf32>
    %401 = arith.addf %399, %400 : vector<2x32xf32>
    %402 = math.tanh %401 : vector<2x32xf32>
    %403 = arith.mulf %398, %402 : vector<2x32xf32>
    %404 = vector.broadcast %6 : vector<1x32xf32> to vector<2x32xf32>
    %405 = arith.mulf %401, %404 : vector<2x32xf32>
    %cst_109 = arith.constant dense<0.000000e+00> : vector<2xf32>
    %406 = vector.multi_reduction <add>, %405, %cst_109 [1] : vector<2x32xf32> to vector<2xf32>
    %407 = vector.shape_cast %406 : vector<2xf32> to vector<2x1xf32>
    %408 = vector.broadcast %7 : vector<1x1xf32> to vector<2x1xf32>
    %409 = arith.addf %407, %408 : vector<2x1xf32>
    %410 = arith.negf %409 : vector<2x1xf32>
    %411 = math.exp %410 : vector<2x1xf32>
    %cst_110 = arith.constant 1.000000e+00 : f32
    %412 = vector.broadcast %cst_110 : f32 to vector<2x1xf32>
    %413 = arith.addf %412, %411 : vector<2x1xf32>
    %414 = arith.divf %412, %413 : vector<2x1xf32>
    %cst_111 = arith.constant 1.000000e+00 : f32
    %415 = vector.broadcast %cst_111 : f32 to vector<2x1xf32>
    %416 = arith.subf %415, %383 : vector<2x1xf32>
    %417 = arith.minimumf %380, %416 : vector<2x1xf32>
    %418 = arith.addf %383, %417 : vector<2x1xf32>
    %419 = math.roundeven %418 : vector<2x1xf32>
    %420 = vector.broadcast %419 : vector<2x1xf32> to vector<2x32xf32>
    %421 = arith.mulf %420, %401 : vector<2x32xf32>
    %cst_112 = arith.constant 1.000000e+00 : f32
    %422 = vector.broadcast %cst_112 : f32 to vector<2x1xf32>
    %423 = arith.subf %422, %419 : vector<2x1xf32>
    %424 = vector.broadcast %423 : vector<2x1xf32> to vector<2x32xf32>
    %425 = arith.mulf %424, %368 : vector<2x32xf32>
    %426 = arith.addf %421, %425 : vector<2x32xf32>
    %427 = vector.broadcast %419 : vector<2x1xf32> to vector<2x32xf32>
    %428 = arith.mulf %427, %403 : vector<2x32xf32>
    %cst_113 = arith.constant 1.000000e+00 : f32
    %429 = vector.broadcast %cst_113 : f32 to vector<2x1xf32>
    %430 = arith.subf %429, %419 : vector<2x1xf32>
    %431 = vector.broadcast %430 : vector<2x1xf32> to vector<2x32xf32>
    %432 = arith.mulf %431, %375 : vector<2x32xf32>
    %433 = arith.addf %428, %432 : vector<2x32xf32>
    %434 = arith.mulf %419, %414 : vector<2x1xf32>
    %cst_114 = arith.constant 1.000000e+00 : f32
    %435 = vector.broadcast %cst_114 : f32 to vector<2x1xf32>
    %436 = arith.subf %435, %419 : vector<2x1xf32>
    %437 = arith.mulf %436, %380 : vector<2x1xf32>
    %438 = arith.addf %434, %437 : vector<2x1xf32>
    %cst_115 = arith.constant 1.000000e+00 : f32
    %439 = vector.broadcast %cst_115 : f32 to vector<2x1xf32>
    %440 = arith.subf %439, %419 : vector<2x1xf32>
    %441 = arith.mulf %440, %418 : vector<2x1xf32>
    %c0_116 = arith.constant 0 : index
    %c0_117 = arith.constant 0 : index
    %c0_118 = arith.constant 0 : index
    %c0_119 = arith.constant 0 : index
    %442 = vector.load %arg0[%c0_116, %c0_117, %c0_118, %c0_119] : memref<2x2x16x48xf32, #tpu.memory_space<vmem>>, vector<1x2x16x48xf32>
    %443 = vector.shape_cast %442 : vector<1x2x16x48xf32> to vector<2x16x48xf32>
    %cst_120 = arith.constant dense<0.000000e+00> : vector<2x128xf32>
    %444 = tpu.matmul %433, %0, %cst_120 {dimension_numbers = #tpu.dot_dimension_numbers<[1], [0], [0], [1], [0, 0, 1, 1], [], []>} : vector<2x32xf32>, vector<32x128xf32>, vector<2x128xf32> -> vector<2x128xf32>
    %445 = vector.broadcast %1 : vector<1x128xf32> to vector<2x128xf32>
    %446 = arith.addf %444, %445 : vector<2x128xf32>
    %447 = math.tanh %446 : vector<2x128xf32>
    %448 = vector.extract_strided_slice %447 {offsets = [0, 0], sizes = [2, 1], strides = [1, 1]} : vector<2x128xf32> to vector<2x1xf32>
    %449 = vector.extract_strided_slice %447 {offsets = [0, 1], sizes = [2, 1], strides = [1, 1]} : vector<2x128xf32> to vector<2x1xf32>
    %450 = vector.extract_strided_slice %447 {offsets = [0, 2], sizes = [2, 1], strides = [1, 1]} : vector<2x128xf32> to vector<2x1xf32>
    %cst_121 = arith.constant 1.000000e+00 : f32
    %451 = vector.broadcast %cst_121 : f32 to vector<2x1xf32>
    %452 = arith.addf %448, %451 : vector<2x1xf32>
    %cst_122 = arith.constant 1.500000e+01 : f32
    %453 = vector.broadcast %cst_122 : f32 to vector<2x1xf32>
    %454 = arith.mulf %453, %452 : vector<2x1xf32>
    %cst_123 = arith.constant 2.000000e+00 : f32
    %455 = vector.broadcast %cst_123 : f32 to vector<2x1xf32>
    %456 = arith.divf %454, %455 : vector<2x1xf32>
    %457 = math.absf %450 : vector<2x1xf32>
    %cst_124 = arith.constant 1.000000e+00 : f32
    %458 = vector.broadcast %cst_124 : f32 to vector<2x1xf32>
    %459 = arith.subf %458, %457 : vector<2x1xf32>
    %cst_125 = arith.constant 4.000000e+00 : f32
    %460 = vector.broadcast %cst_125 : f32 to vector<2x1xf32>
    %461 = arith.mulf %460, %459 : vector<2x1xf32>
    %462 = math.absf %450 : vector<2x1xf32>
    %cst_126 = arith.constant 2.000000e+00 : f32
    %463 = vector.broadcast %cst_126 : f32 to vector<2x1xf32>
    %464 = arith.mulf %463, %462 : vector<2x1xf32>
    %cst_127 = arith.constant 1.000000e+00 : f32
    %465 = vector.broadcast %cst_127 : f32 to vector<2x1xf32>
    %466 = arith.subf %465, %464 : vector<2x1xf32>
    %467 = math.exp %466 : vector<2x1xf32>
    %468 = tpu.iota {dimensions = array<i32: 1>} : vector<1x4xi32>
    %469 = arith.sitofp %468 : vector<1x4xi32> to vector<1x4xf32>
    %cst_128 = arith.constant 1.500000e+00 : f32
    %470 = vector.broadcast %cst_128 : f32 to vector<1x4xf32>
    %471 = arith.subf %469, %470 : vector<1x4xf32>
    %472 = vector.broadcast %461 : vector<2x1xf32> to vector<2x4xf32>
    %473 = vector.broadcast %471 : vector<1x4xf32> to vector<2x4xf32>
    %474 = arith.mulf %472, %473 : vector<2x4xf32>
    %475 = vector.broadcast %456 : vector<2x1xf32> to vector<2x4xf32>
    %476 = arith.addf %474, %475 : vector<2x4xf32>
    %477 = tpu.iota {dimensions = array<i32: 2>} : vector<1x1x16xi32>
    %478 = arith.sitofp %477 : vector<1x1x16xi32> to vector<1x1x16xf32>
    %479 = vector.shape_cast %476 : vector<2x4xf32> to vector<2x4x1xf32>
    %480 = vector.broadcast %478 : vector<1x1x16xf32> to vector<2x4x16xf32>
    %481 = vector.broadcast %479 : vector<2x4x1xf32> to vector<2x4x16xf32>
    %482 = arith.subf %480, %481 : vector<2x4x16xf32>
    %483 = vector.shape_cast %467 : vector<2x1xf32> to vector<2x1x1xf32>
    %484 = vector.broadcast %483 : vector<2x1x1xf32> to vector<2x4x16xf32>
    %485 = arith.divf %482, %484 : vector<2x4x16xf32>
    %486 = arith.mulf %485, %485 : vector<2x4x16xf32>
    %cst_129 = arith.constant 1.000000e+00 : f32
    %487 = vector.broadcast %cst_129 : f32 to vector<2x4x16xf32>
    %488 = arith.addf %487, %486 : vector<2x4x16xf32>
    %489 = vector.shape_cast %467 : vector<2x1xf32> to vector<2x1x1xf32>
    %cst_130 = arith.constant 3.14159274 : f32
    %490 = vector.broadcast %cst_130 : f32 to vector<2x1x1xf32>
    %491 = arith.mulf %490, %489 : vector<2x1x1xf32>
    %492 = vector.broadcast %491 : vector<2x1x1xf32> to vector<2x4x16xf32>
    %493 = arith.mulf %492, %488 : vector<2x4x16xf32>
    %cst_131 = arith.constant 1.000000e+00 : f32
    %494 = vector.broadcast %cst_131 : f32 to vector<2x4x16xf32>
    %495 = arith.divf %494, %493 : vector<2x4x16xf32>
    %cst_132 = arith.constant dense<0.000000e+00> : vector<2x4xf32>
    %496 = vector.multi_reduction <add>, %495, %cst_132 [2] : vector<2x4x16xf32> to vector<2x4xf32>
    %497 = vector.shape_cast %496 : vector<2x4xf32> to vector<2x4x1xf32>
    %cst_133 = arith.constant 9.99999974E-5 : f32
    %498 = vector.broadcast %cst_133 : f32 to vector<2x4x1xf32>
    %499 = arith.addf %497, %498 : vector<2x4x1xf32>
    %500 = vector.broadcast %499 : vector<2x4x1xf32> to vector<2x4x16xf32>
    %501 = arith.divf %495, %500 : vector<2x4x16xf32>
    %cst_134 = arith.constant 1.000000e+00 : f32
    %502 = vector.broadcast %cst_134 : f32 to vector<2x1xf32>
    %503 = arith.addf %449, %502 : vector<2x1xf32>
    %cst_135 = arith.constant 1.500000e+01 : f32
    %504 = vector.broadcast %cst_135 : f32 to vector<2x1xf32>
    %505 = arith.mulf %504, %503 : vector<2x1xf32>
    %cst_136 = arith.constant 2.000000e+00 : f32
    %506 = vector.broadcast %cst_136 : f32 to vector<2x1xf32>
    %507 = arith.divf %505, %506 : vector<2x1xf32>
    %508 = math.absf %450 : vector<2x1xf32>
    %cst_137 = arith.constant 1.000000e+00 : f32
    %509 = vector.broadcast %cst_137 : f32 to vector<2x1xf32>
    %510 = arith.subf %509, %508 : vector<2x1xf32>
    %cst_138 = arith.constant 4.000000e+00 : f32
    %511 = vector.broadcast %cst_138 : f32 to vector<2x1xf32>
    %512 = arith.mulf %511, %510 : vector<2x1xf32>
    %513 = math.absf %450 : vector<2x1xf32>
    %cst_139 = arith.constant 2.000000e+00 : f32
    %514 = vector.broadcast %cst_139 : f32 to vector<2x1xf32>
    %515 = arith.mulf %514, %513 : vector<2x1xf32>
    %cst_140 = arith.constant 1.000000e+00 : f32
    %516 = vector.broadcast %cst_140 : f32 to vector<2x1xf32>
    %517 = arith.subf %516, %515 : vector<2x1xf32>
    %518 = math.exp %517 : vector<2x1xf32>
    %519 = tpu.iota {dimensions = array<i32: 1>} : vector<1x4xi32>
    %520 = arith.sitofp %519 : vector<1x4xi32> to vector<1x4xf32>
    %cst_141 = arith.constant 1.500000e+00 : f32
    %521 = vector.broadcast %cst_141 : f32 to vector<1x4xf32>
    %522 = arith.subf %520, %521 : vector<1x4xf32>
    %523 = vector.broadcast %512 : vector<2x1xf32> to vector<2x4xf32>
    %524 = vector.broadcast %522 : vector<1x4xf32> to vector<2x4xf32>
    %525 = arith.mulf %523, %524 : vector<2x4xf32>
    %526 = vector.broadcast %507 : vector<2x1xf32> to vector<2x4xf32>
    %527 = arith.addf %525, %526 : vector<2x4xf32>
    %528 = tpu.iota {dimensions = array<i32: 2>} : vector<1x1x16xi32>
    %529 = arith.sitofp %528 : vector<1x1x16xi32> to vector<1x1x16xf32>
    %530 = vector.shape_cast %527 : vector<2x4xf32> to vector<2x4x1xf32>
    %531 = vector.broadcast %529 : vector<1x1x16xf32> to vector<2x4x16xf32>
    %532 = vector.broadcast %530 : vector<2x4x1xf32> to vector<2x4x16xf32>
    %533 = arith.subf %531, %532 : vector<2x4x16xf32>
    %534 = vector.shape_cast %518 : vector<2x1xf32> to vector<2x1x1xf32>
    %535 = vector.broadcast %534 : vector<2x1x1xf32> to vector<2x4x16xf32>
    %536 = arith.divf %533, %535 : vector<2x4x16xf32>
    %537 = arith.mulf %536, %536 : vector<2x4x16xf32>
    %cst_142 = arith.constant 1.000000e+00 : f32
    %538 = vector.broadcast %cst_142 : f32 to vector<2x4x16xf32>
    %539 = arith.addf %538, %537 : vector<2x4x16xf32>
    %540 = vector.shape_cast %518 : vector<2x1xf32> to vector<2x1x1xf32>
    %cst_143 = arith.constant 3.14159274 : f32
    %541 = vector.broadcast %cst_143 : f32 to vector<2x1x1xf32>
    %542 = arith.mulf %541, %540 : vector<2x1x1xf32>
    %543 = vector.broadcast %542 : vector<2x1x1xf32> to vector<2x4x16xf32>
    %544 = arith.mulf %543, %539 : vector<2x4x16xf32>
    %cst_144 = arith.constant 1.000000e+00 : f32
    %545 = vector.broadcast %cst_144 : f32 to vector<2x4x16xf32>
    %546 = arith.divf %545, %544 : vector<2x4x16xf32>
    %cst_145 = arith.constant dense<0.000000e+00> : vector<2x4xf32>
    %547 = vector.multi_reduction <add>, %546, %cst_145 [2] : vector<2x4x16xf32> to vector<2x4xf32>
    %548 = vector.shape_cast %547 : vector<2x4xf32> to vector<2x4x1xf32>
    %cst_146 = arith.constant 9.99999974E-5 : f32
    %549 = vector.broadcast %cst_146 : f32 to vector<2x4x1xf32>
    %550 = arith.addf %548, %549 : vector<2x4x1xf32>
    %551 = vector.broadcast %550 : vector<2x4x1xf32> to vector<2x4x16xf32>
    %552 = arith.divf %546, %551 : vector<2x4x16xf32>
    "tpu.trace_start"() <{level = 10 : i32, message = "bgh,bhn->bgn"}> : () -> ()
    %cst_147 = arith.constant dense<0.000000e+00> : vector<2x4x48xf32>
    %553 = tpu.matmul %501, %443, %cst_147 {dimension_numbers = #tpu.dot_dimension_numbers<[2], [1], [1], [2], [0, 0, 0, 1, 1, 2], [0], [0]>} : vector<2x4x16xf32>, vector<2x16x48xf32>, vector<2x4x48xf32> -> vector<2x4x48xf32>
    "tpu.trace_stop"() : () -> ()
    %554 = vector.extract_strided_slice %553 {offsets = [0, 0, 0], sizes = [2, 4, 16], strides = [1, 1, 1]} : vector<2x4x48xf32> to vector<2x4x16xf32>
    "tpu.trace_start"() <{level = 10 : i32, message = "bgw,bjw->bgj"}> : () -> ()
    %cst_148 = arith.constant dense<0.000000e+00> : vector<2x4x4xf32>
    %555 = tpu.matmul %554, %552, %cst_148 {dimension_numbers = #tpu.dot_dimension_numbers<[2], [2], [1], [1], [0, 0, 0, 1, 1, 1], [0], [0]>} : vector<2x4x16xf32>, vector<2x4x16xf32>, vector<2x4x4xf32> -> vector<2x4x4xf32>
    "tpu.trace_stop"() : () -> ()
    %556 = vector.shape_cast %555 : vector<2x4x4xf32> to vector<2x16xf32>
    %557 = vector.extract_strided_slice %553 {offsets = [0, 0, 16], sizes = [2, 4, 16], strides = [1, 1, 1]} : vector<2x4x48xf32> to vector<2x4x16xf32>
    "tpu.trace_start"() <{level = 10 : i32, message = "bgw,bjw->bgj"}> : () -> ()
    %cst_149 = arith.constant dense<0.000000e+00> : vector<2x4x4xf32>
    %558 = tpu.matmul %557, %552, %cst_149 {dimension_numbers = #tpu.dot_dimension_numbers<[2], [2], [1], [1], [0, 0, 0, 1, 1, 1], [0], [0]>} : vector<2x4x16xf32>, vector<2x4x16xf32>, vector<2x4x4xf32> -> vector<2x4x4xf32>
    "tpu.trace_stop"() : () -> ()
    %559 = vector.shape_cast %558 : vector<2x4x4xf32> to vector<2x16xf32>
    %560 = vector.extract_strided_slice %553 {offsets = [0, 0, 32], sizes = [2, 4, 16], strides = [1, 1, 1]} : vector<2x4x48xf32> to vector<2x4x16xf32>
    "tpu.trace_start"() <{level = 10 : i32, message = "bgw,bjw->bgj"}> : () -> ()
    %cst_150 = arith.constant dense<0.000000e+00> : vector<2x4x4xf32>
    %561 = tpu.matmul %560, %552, %cst_150 {dimension_numbers = #tpu.dot_dimension_numbers<[2], [2], [1], [1], [0, 0, 0, 1, 1, 1], [0], [0]>} : vector<2x4x16xf32>, vector<2x4x16xf32>, vector<2x4x4xf32> -> vector<2x4x4xf32>
    "tpu.trace_stop"() : () -> ()
    %562 = vector.shape_cast %561 : vector<2x4x4xf32> to vector<2x16xf32>
    %563 = tpu.concatenate %556, %559, %562 in 1 : vector<2x16xf32>, vector<2x16xf32>, vector<2x16xf32> -> vector<2x48xf32>
    %cst_151 = arith.constant dense<0.000000e+00> : vector<2x128xf32>
    %564 = tpu.matmul %563, %2, %cst_151 {dimension_numbers = #tpu.dot_dimension_numbers<[1], [0], [0], [1], [0, 0, 1, 1], [], []>} : vector<2x48xf32>, vector<48x128xf32>, vector<2x128xf32> -> vector<2x128xf32>
    %565 = vector.broadcast %3 : vector<1x128xf32> to vector<2x128xf32>
    %566 = arith.addf %564, %565 : vector<2x128xf32>
    %cst_152 = arith.constant dense<0.000000e+00> : vector<2x128xf32>
    %567 = tpu.matmul %433, %4, %cst_152 {dimension_numbers = #tpu.dot_dimension_numbers<[1], [0], [0], [1], [0, 0, 1, 1], [], []>} : vector<2x32xf32>, vector<32x128xf32>, vector<2x128xf32> -> vector<2x128xf32>
    %568 = arith.addf %142, %567 : vector<2x128xf32>
    %569 = vector.broadcast %5 : vector<1x128xf32> to vector<2x128xf32>
    %570 = arith.addf %568, %569 : vector<2x128xf32>
    %571 = math.tanh %570 : vector<2x128xf32>
    %572 = arith.negf %570 : vector<2x128xf32>
    %573 = math.exp %572 : vector<2x128xf32>
    %cst_153 = arith.constant 1.000000e+00 : f32
    %574 = vector.broadcast %cst_153 : f32 to vector<2x128xf32>
    %575 = arith.addf %574, %573 : vector<2x128xf32>
    %576 = arith.divf %574, %575 : vector<2x128xf32>
    %577 = arith.select %17, %571, %576 : vector<2x128xi1>, vector<2x128xf32>
    %578 = vector.extract_strided_slice %577 {offsets = [0, 0], sizes = [2, 32], strides = [1, 1]} : vector<2x128xf32> to vector<2x32xf32>
    %579 = vector.extract_strided_slice %577 {offsets = [0, 32], sizes = [2, 32], strides = [1, 1]} : vector<2x128xf32> to vector<2x32xf32>
    %580 = vector.extract_strided_slice %577 {offsets = [0, 64], sizes = [2, 32], strides = [1, 1]} : vector<2x128xf32> to vector<2x32xf32>
    %581 = vector.extract_strided_slice %577 {offsets = [0, 96], sizes = [2, 32], strides = [1, 1]} : vector<2x128xf32> to vector<2x32xf32>
    %582 = arith.mulf %579, %426 : vector<2x32xf32>
    %583 = arith.mulf %578, %580 : vector<2x32xf32>
    %584 = arith.addf %582, %583 : vector<2x32xf32>
    %585 = math.tanh %584 : vector<2x32xf32>
    %586 = arith.mulf %581, %585 : vector<2x32xf32>
    %587 = vector.broadcast %6 : vector<1x32xf32> to vector<2x32xf32>
    %588 = arith.mulf %584, %587 : vector<2x32xf32>
    %cst_154 = arith.constant dense<0.000000e+00> : vector<2xf32>
    %589 = vector.multi_reduction <add>, %588, %cst_154 [1] : vector<2x32xf32> to vector<2xf32>
    %590 = vector.shape_cast %589 : vector<2xf32> to vector<2x1xf32>
    %591 = vector.broadcast %7 : vector<1x1xf32> to vector<2x1xf32>
    %592 = arith.addf %590, %591 : vector<2x1xf32>
    %593 = arith.negf %592 : vector<2x1xf32>
    %594 = math.exp %593 : vector<2x1xf32>
    %cst_155 = arith.constant 1.000000e+00 : f32
    %595 = vector.broadcast %cst_155 : f32 to vector<2x1xf32>
    %596 = arith.addf %595, %594 : vector<2x1xf32>
    %597 = arith.divf %595, %596 : vector<2x1xf32>
    %cst_156 = arith.constant 1.000000e+00 : f32
    %598 = vector.broadcast %cst_156 : f32 to vector<2x1xf32>
    %599 = arith.subf %598, %441 : vector<2x1xf32>
    %600 = arith.minimumf %438, %599 : vector<2x1xf32>
    %601 = arith.addf %441, %600 : vector<2x1xf32>
    %602 = math.roundeven %601 : vector<2x1xf32>
    %603 = vector.broadcast %602 : vector<2x1xf32> to vector<2x32xf32>
    %604 = arith.mulf %603, %584 : vector<2x32xf32>
    %cst_157 = arith.constant 1.000000e+00 : f32
    %605 = vector.broadcast %cst_157 : f32 to vector<2x1xf32>
    %606 = arith.subf %605, %602 : vector<2x1xf32>
    %607 = vector.broadcast %606 : vector<2x1xf32> to vector<2x32xf32>
    %608 = arith.mulf %607, %426 : vector<2x32xf32>
    %609 = arith.addf %604, %608 : vector<2x32xf32>
    %610 = vector.broadcast %602 : vector<2x1xf32> to vector<2x32xf32>
    %611 = arith.mulf %610, %586 : vector<2x32xf32>
    %cst_158 = arith.constant 1.000000e+00 : f32
    %612 = vector.broadcast %cst_158 : f32 to vector<2x1xf32>
    %613 = arith.subf %612, %602 : vector<2x1xf32>
    %614 = vector.broadcast %613 : vector<2x1xf32> to vector<2x32xf32>
    %615 = arith.mulf %614, %433 : vector<2x32xf32>
    %616 = arith.addf %611, %615 : vector<2x32xf32>
    %617 = arith.mulf %602, %597 : vector<2x1xf32>
    %cst_159 = arith.constant 1.000000e+00 : f32
    %618 = vector.broadcast %cst_159 : f32 to vector<2x1xf32>
    %619 = arith.subf %618, %602 : vector<2x1xf32>
    %620 = arith.mulf %619, %438 : vector<2x1xf32>
    %621 = arith.addf %617, %620 : vector<2x1xf32>
    %cst_160 = arith.constant 1.000000e+00 : f32
    %622 = vector.broadcast %cst_160 : f32 to vector<2x1xf32>
    %623 = arith.subf %622, %602 : vector<2x1xf32>
    %624 = arith.mulf %623, %601 : vector<2x1xf32>
    %cst_161 = arith.constant dense<0.000000e+00> : vector<2x128xf32>
    %625 = tpu.matmul %616, %4, %cst_161 {dimension_numbers = #tpu.dot_dimension_numbers<[1], [0], [0], [1], [0, 0, 1, 1], [], []>} : vector<2x32xf32>, vector<32x128xf32>, vector<2x128xf32> -> vector<2x128xf32>
    %626 = arith.addf %325, %625 : vector<2x128xf32>
    %627 = vector.broadcast %5 : vector<1x128xf32> to vector<2x128xf32>
    %628 = arith.addf %626, %627 : vector<2x128xf32>
    %629 = math.tanh %628 : vector<2x128xf32>
    %630 = arith.negf %628 : vector<2x128xf32>
    %631 = math.exp %630 : vector<2x128xf32>
    %cst_162 = arith.constant 1.000000e+00 : f32
    %632 = vector.broadcast %cst_162 : f32 to vector<2x128xf32>
    %633 = arith.addf %632, %631 : vector<2x128xf32>
    %634 = arith.divf %632, %633 : vector<2x128xf32>
    %635 = arith.select %17, %629, %634 : vector<2x128xi1>, vector<2x128xf32>
    %636 = vector.extract_strided_slice %635 {offsets = [0, 0], sizes = [2, 32], strides = [1, 1]} : vector<2x128xf32> to vector<2x32xf32>
    %637 = vector.extract_strided_slice %635 {offsets = [0, 32], sizes = [2, 32], strides = [1, 1]} : vector<2x128xf32> to vector<2x32xf32>
    %638 = vector.extract_strided_slice %635 {offsets = [0, 64], sizes = [2, 32], strides = [1, 1]} : vector<2x128xf32> to vector<2x32xf32>
    %639 = vector.extract_strided_slice %635 {offsets = [0, 96], sizes = [2, 32], strides = [1, 1]} : vector<2x128xf32> to vector<2x32xf32>
    %640 = arith.mulf %637, %609 : vector<2x32xf32>
    %641 = arith.mulf %636, %638 : vector<2x32xf32>
    %642 = arith.addf %640, %641 : vector<2x32xf32>
    %643 = math.tanh %642 : vector<2x32xf32>
    %644 = arith.mulf %639, %643 : vector<2x32xf32>
    %645 = vector.broadcast %6 : vector<1x32xf32> to vector<2x32xf32>
    %646 = arith.mulf %642, %645 : vector<2x32xf32>
    %cst_163 = arith.constant dense<0.000000e+00> : vector<2xf32>
    %647 = vector.multi_reduction <add>, %646, %cst_163 [1] : vector<2x32xf32> to vector<2xf32>
    %648 = vector.shape_cast %647 : vector<2xf32> to vector<2x1xf32>
    %649 = vector.broadcast %7 : vector<1x1xf32> to vector<2x1xf32>
    %650 = arith.addf %648, %649 : vector<2x1xf32>
    %651 = arith.negf %650 : vector<2x1xf32>
    %652 = math.exp %651 : vector<2x1xf32>
    %cst_164 = arith.constant 1.000000e+00 : f32
    %653 = vector.broadcast %cst_164 : f32 to vector<2x1xf32>
    %654 = arith.addf %653, %652 : vector<2x1xf32>
    %655 = arith.divf %653, %654 : vector<2x1xf32>
    %cst_165 = arith.constant 1.000000e+00 : f32
    %656 = vector.broadcast %cst_165 : f32 to vector<2x1xf32>
    %657 = arith.subf %656, %624 : vector<2x1xf32>
    %658 = arith.minimumf %621, %657 : vector<2x1xf32>
    %659 = arith.addf %624, %658 : vector<2x1xf32>
    %660 = math.roundeven %659 : vector<2x1xf32>
    %661 = vector.broadcast %660 : vector<2x1xf32> to vector<2x32xf32>
    %662 = arith.mulf %661, %642 : vector<2x32xf32>
    %cst_166 = arith.constant 1.000000e+00 : f32
    %663 = vector.broadcast %cst_166 : f32 to vector<2x1xf32>
    %664 = arith.subf %663, %660 : vector<2x1xf32>
    %665 = vector.broadcast %664 : vector<2x1xf32> to vector<2x32xf32>
    %666 = arith.mulf %665, %609 : vector<2x32xf32>
    %667 = arith.addf %662, %666 : vector<2x32xf32>
    %668 = vector.broadcast %660 : vector<2x1xf32> to vector<2x32xf32>
    %669 = arith.mulf %668, %644 : vector<2x32xf32>
    %cst_167 = arith.constant 1.000000e+00 : f32
    %670 = vector.broadcast %cst_167 : f32 to vector<2x1xf32>
    %671 = arith.subf %670, %660 : vector<2x1xf32>
    %672 = vector.broadcast %671 : vector<2x1xf32> to vector<2x32xf32>
    %673 = arith.mulf %672, %616 : vector<2x32xf32>
    %674 = arith.addf %669, %673 : vector<2x32xf32>
    %675 = arith.mulf %660, %655 : vector<2x1xf32>
    %cst_168 = arith.constant 1.000000e+00 : f32
    %676 = vector.broadcast %cst_168 : f32 to vector<2x1xf32>
    %677 = arith.subf %676, %660 : vector<2x1xf32>
    %678 = arith.mulf %677, %621 : vector<2x1xf32>
    %679 = arith.addf %675, %678 : vector<2x1xf32>
    %cst_169 = arith.constant 1.000000e+00 : f32
    %680 = vector.broadcast %cst_169 : f32 to vector<2x1xf32>
    %681 = arith.subf %680, %660 : vector<2x1xf32>
    %682 = arith.mulf %681, %659 : vector<2x1xf32>
    %cst_170 = arith.constant dense<0.000000e+00> : vector<2x128xf32>
    %683 = tpu.matmul %674, %4, %cst_170 {dimension_numbers = #tpu.dot_dimension_numbers<[1], [0], [0], [1], [0, 0, 1, 1], [], []>} : vector<2x32xf32>, vector<32x128xf32>, vector<2x128xf32> -> vector<2x128xf32>
    %684 = arith.addf %566, %683 : vector<2x128xf32>
    %685 = vector.broadcast %5 : vector<1x128xf32> to vector<2x128xf32>
    %686 = arith.addf %684, %685 : vector<2x128xf32>
    %687 = math.tanh %686 : vector<2x128xf32>
    %688 = arith.negf %686 : vector<2x128xf32>
    %689 = math.exp %688 : vector<2x128xf32>
    %cst_171 = arith.constant 1.000000e+00 : f32
    %690 = vector.broadcast %cst_171 : f32 to vector<2x128xf32>
    %691 = arith.addf %690, %689 : vector<2x128xf32>
    %692 = arith.divf %690, %691 : vector<2x128xf32>
    %693 = arith.select %17, %687, %692 : vector<2x128xi1>, vector<2x128xf32>
    %694 = vector.extract_strided_slice %693 {offsets = [0, 0], sizes = [2, 32], strides = [1, 1]} : vector<2x128xf32> to vector<2x32xf32>
    %695 = vector.extract_strided_slice %693 {offsets = [0, 32], sizes = [2, 32], strides = [1, 1]} : vector<2x128xf32> to vector<2x32xf32>
    %696 = vector.extract_strided_slice %693 {offsets = [0, 64], sizes = [2, 32], strides = [1, 1]} : vector<2x128xf32> to vector<2x32xf32>
    %697 = vector.extract_strided_slice %693 {offsets = [0, 96], sizes = [2, 32], strides = [1, 1]} : vector<2x128xf32> to vector<2x32xf32>
    %698 = arith.mulf %695, %667 : vector<2x32xf32>
    %699 = arith.mulf %694, %696 : vector<2x32xf32>
    %700 = arith.addf %698, %699 : vector<2x32xf32>
    %701 = math.tanh %700 : vector<2x32xf32>
    %702 = arith.mulf %697, %701 : vector<2x32xf32>
    %703 = vector.broadcast %6 : vector<1x32xf32> to vector<2x32xf32>
    %704 = arith.mulf %700, %703 : vector<2x32xf32>
    %cst_172 = arith.constant dense<0.000000e+00> : vector<2xf32>
    %705 = vector.multi_reduction <add>, %704, %cst_172 [1] : vector<2x32xf32> to vector<2xf32>
    %706 = vector.shape_cast %705 : vector<2xf32> to vector<2x1xf32>
    %707 = vector.broadcast %7 : vector<1x1xf32> to vector<2x1xf32>
    %708 = arith.addf %706, %707 : vector<2x1xf32>
    %709 = arith.negf %708 : vector<2x1xf32>
    %710 = math.exp %709 : vector<2x1xf32>
    %cst_173 = arith.constant 1.000000e+00 : f32
    %711 = vector.broadcast %cst_173 : f32 to vector<2x1xf32>
    %712 = arith.addf %711, %710 : vector<2x1xf32>
    %713 = arith.divf %711, %712 : vector<2x1xf32>
    %cst_174 = arith.constant 1.000000e+00 : f32
    %714 = vector.broadcast %cst_174 : f32 to vector<2x1xf32>
    %715 = arith.subf %714, %682 : vector<2x1xf32>
    %716 = arith.minimumf %679, %715 : vector<2x1xf32>
    %717 = arith.addf %682, %716 : vector<2x1xf32>
    %718 = math.roundeven %717 : vector<2x1xf32>
    %719 = vector.broadcast %718 : vector<2x1xf32> to vector<2x32xf32>
    %720 = arith.mulf %719, %700 : vector<2x32xf32>
    %cst_175 = arith.constant 1.000000e+00 : f32
    %721 = vector.broadcast %cst_175 : f32 to vector<2x1xf32>
    %722 = arith.subf %721, %718 : vector<2x1xf32>
    %723 = vector.broadcast %722 : vector<2x1xf32> to vector<2x32xf32>
    %724 = arith.mulf %723, %667 : vector<2x32xf32>
    %725 = arith.addf %720, %724 : vector<2x32xf32>
    %726 = vector.broadcast %718 : vector<2x1xf32> to vector<2x32xf32>
    %727 = arith.mulf %726, %702 : vector<2x32xf32>
    %cst_176 = arith.constant 1.000000e+00 : f32
    %728 = vector.broadcast %cst_176 : f32 to vector<2x1xf32>
    %729 = arith.subf %728, %718 : vector<2x1xf32>
    %730 = vector.broadcast %729 : vector<2x1xf32> to vector<2x32xf32>
    %731 = arith.mulf %730, %674 : vector<2x32xf32>
    %732 = arith.addf %727, %731 : vector<2x32xf32>
    %733 = arith.mulf %718, %713 : vector<2x1xf32>
    %cst_177 = arith.constant 1.000000e+00 : f32
    %734 = vector.broadcast %cst_177 : f32 to vector<2x1xf32>
    %735 = arith.subf %734, %718 : vector<2x1xf32>
    %736 = arith.mulf %735, %679 : vector<2x1xf32>
    %737 = arith.addf %733, %736 : vector<2x1xf32>
    %cst_178 = arith.constant 1.000000e+00 : f32
    %738 = vector.broadcast %cst_178 : f32 to vector<2x1xf32>
    %739 = arith.subf %738, %718 : vector<2x1xf32>
    %740 = arith.mulf %739, %717 : vector<2x1xf32>
    %c1_179 = arith.constant 1 : index
    %c0_180 = arith.constant 0 : index
    %c0_181 = arith.constant 0 : index
    %c0_182 = arith.constant 0 : index
    %741 = vector.load %arg0[%c1_179, %c0_180, %c0_181, %c0_182] : memref<2x2x16x48xf32, #tpu.memory_space<vmem>>, vector<1x2x16x48xf32>
    %742 = vector.shape_cast %741 : vector<1x2x16x48xf32> to vector<2x16x48xf32>
    %cst_183 = arith.constant dense<0.000000e+00> : vector<2x128xf32>
    %743 = tpu.matmul %732, %0, %cst_183 {dimension_numbers = #tpu.dot_dimension_numbers<[1], [0], [0], [1], [0, 0, 1, 1], [], []>} : vector<2x32xf32>, vector<32x128xf32>, vector<2x128xf32> -> vector<2x128xf32>
    %744 = vector.broadcast %1 : vector<1x128xf32> to vector<2x128xf32>
    %745 = arith.addf %743, %744 : vector<2x128xf32>
    %746 = math.tanh %745 : vector<2x128xf32>
    %747 = vector.extract_strided_slice %746 {offsets = [0, 0], sizes = [2, 1], strides = [1, 1]} : vector<2x128xf32> to vector<2x1xf32>
    %748 = vector.extract_strided_slice %746 {offsets = [0, 1], sizes = [2, 1], strides = [1, 1]} : vector<2x128xf32> to vector<2x1xf32>
    %749 = vector.extract_strided_slice %746 {offsets = [0, 2], sizes = [2, 1], strides = [1, 1]} : vector<2x128xf32> to vector<2x1xf32>
    %cst_184 = arith.constant 1.000000e+00 : f32
    %750 = vector.broadcast %cst_184 : f32 to vector<2x1xf32>
    %751 = arith.addf %747, %750 : vector<2x1xf32>
    %cst_185 = arith.constant 1.500000e+01 : f32
    %752 = vector.broadcast %cst_185 : f32 to vector<2x1xf32>
    %753 = arith.mulf %752, %751 : vector<2x1xf32>
    %cst_186 = arith.constant 2.000000e+00 : f32
    %754 = vector.broadcast %cst_186 : f32 to vector<2x1xf32>
    %755 = arith.divf %753, %754 : vector<2x1xf32>
    %756 = math.absf %749 : vector<2x1xf32>
    %cst_187 = arith.constant 1.000000e+00 : f32
    %757 = vector.broadcast %cst_187 : f32 to vector<2x1xf32>
    %758 = arith.subf %757, %756 : vector<2x1xf32>
    %cst_188 = arith.constant 4.000000e+00 : f32
    %759 = vector.broadcast %cst_188 : f32 to vector<2x1xf32>
    %760 = arith.mulf %759, %758 : vector<2x1xf32>
    %761 = math.absf %749 : vector<2x1xf32>
    %cst_189 = arith.constant 2.000000e+00 : f32
    %762 = vector.broadcast %cst_189 : f32 to vector<2x1xf32>
    %763 = arith.mulf %762, %761 : vector<2x1xf32>
    %cst_190 = arith.constant 1.000000e+00 : f32
    %764 = vector.broadcast %cst_190 : f32 to vector<2x1xf32>
    %765 = arith.subf %764, %763 : vector<2x1xf32>
    %766 = math.exp %765 : vector<2x1xf32>
    %767 = tpu.iota {dimensions = array<i32: 1>} : vector<1x4xi32>
    %768 = arith.sitofp %767 : vector<1x4xi32> to vector<1x4xf32>
    %cst_191 = arith.constant 1.500000e+00 : f32
    %769 = vector.broadcast %cst_191 : f32 to vector<1x4xf32>
    %770 = arith.subf %768, %769 : vector<1x4xf32>
    %771 = vector.broadcast %760 : vector<2x1xf32> to vector<2x4xf32>
    %772 = vector.broadcast %770 : vector<1x4xf32> to vector<2x4xf32>
    %773 = arith.mulf %771, %772 : vector<2x4xf32>
    %774 = vector.broadcast %755 : vector<2x1xf32> to vector<2x4xf32>
    %775 = arith.addf %773, %774 : vector<2x4xf32>
    %776 = tpu.iota {dimensions = array<i32: 2>} : vector<1x1x16xi32>
    %777 = arith.sitofp %776 : vector<1x1x16xi32> to vector<1x1x16xf32>
    %778 = vector.shape_cast %775 : vector<2x4xf32> to vector<2x4x1xf32>
    %779 = vector.broadcast %777 : vector<1x1x16xf32> to vector<2x4x16xf32>
    %780 = vector.broadcast %778 : vector<2x4x1xf32> to vector<2x4x16xf32>
    %781 = arith.subf %779, %780 : vector<2x4x16xf32>
    %782 = vector.shape_cast %766 : vector<2x1xf32> to vector<2x1x1xf32>
    %783 = vector.broadcast %782 : vector<2x1x1xf32> to vector<2x4x16xf32>
    %784 = arith.divf %781, %783 : vector<2x4x16xf32>
    %785 = arith.mulf %784, %784 : vector<2x4x16xf32>
    %cst_192 = arith.constant 1.000000e+00 : f32
    %786 = vector.broadcast %cst_192 : f32 to vector<2x4x16xf32>
    %787 = arith.addf %786, %785 : vector<2x4x16xf32>
    %788 = vector.shape_cast %766 : vector<2x1xf32> to vector<2x1x1xf32>
    %cst_193 = arith.constant 3.14159274 : f32
    %789 = vector.broadcast %cst_193 : f32 to vector<2x1x1xf32>
    %790 = arith.mulf %789, %788 : vector<2x1x1xf32>
    %791 = vector.broadcast %790 : vector<2x1x1xf32> to vector<2x4x16xf32>
    %792 = arith.mulf %791, %787 : vector<2x4x16xf32>
    %cst_194 = arith.constant 1.000000e+00 : f32
    %793 = vector.broadcast %cst_194 : f32 to vector<2x4x16xf32>
    %794 = arith.divf %793, %792 : vector<2x4x16xf32>
    %cst_195 = arith.constant dense<0.000000e+00> : vector<2x4xf32>
    %795 = vector.multi_reduction <add>, %794, %cst_195 [2] : vector<2x4x16xf32> to vector<2x4xf32>
    %796 = vector.shape_cast %795 : vector<2x4xf32> to vector<2x4x1xf32>
    %cst_196 = arith.constant 9.99999974E-5 : f32
    %797 = vector.broadcast %cst_196 : f32 to vector<2x4x1xf32>
    %798 = arith.addf %796, %797 : vector<2x4x1xf32>
    %799 = vector.broadcast %798 : vector<2x4x1xf32> to vector<2x4x16xf32>
    %800 = arith.divf %794, %799 : vector<2x4x16xf32>
    %cst_197 = arith.constant 1.000000e+00 : f32
    %801 = vector.broadcast %cst_197 : f32 to vector<2x1xf32>
    %802 = arith.addf %748, %801 : vector<2x1xf32>
    %cst_198 = arith.constant 1.500000e+01 : f32
    %803 = vector.broadcast %cst_198 : f32 to vector<2x1xf32>
    %804 = arith.mulf %803, %802 : vector<2x1xf32>
    %cst_199 = arith.constant 2.000000e+00 : f32
    %805 = vector.broadcast %cst_199 : f32 to vector<2x1xf32>
    %806 = arith.divf %804, %805 : vector<2x1xf32>
    %807 = math.absf %749 : vector<2x1xf32>
    %cst_200 = arith.constant 1.000000e+00 : f32
    %808 = vector.broadcast %cst_200 : f32 to vector<2x1xf32>
    %809 = arith.subf %808, %807 : vector<2x1xf32>
    %cst_201 = arith.constant 4.000000e+00 : f32
    %810 = vector.broadcast %cst_201 : f32 to vector<2x1xf32>
    %811 = arith.mulf %810, %809 : vector<2x1xf32>
    %812 = math.absf %749 : vector<2x1xf32>
    %cst_202 = arith.constant 2.000000e+00 : f32
    %813 = vector.broadcast %cst_202 : f32 to vector<2x1xf32>
    %814 = arith.mulf %813, %812 : vector<2x1xf32>
    %cst_203 = arith.constant 1.000000e+00 : f32
    %815 = vector.broadcast %cst_203 : f32 to vector<2x1xf32>
    %816 = arith.subf %815, %814 : vector<2x1xf32>
    %817 = math.exp %816 : vector<2x1xf32>
    %818 = tpu.iota {dimensions = array<i32: 1>} : vector<1x4xi32>
    %819 = arith.sitofp %818 : vector<1x4xi32> to vector<1x4xf32>
    %cst_204 = arith.constant 1.500000e+00 : f32
    %820 = vector.broadcast %cst_204 : f32 to vector<1x4xf32>
    %821 = arith.subf %819, %820 : vector<1x4xf32>
    %822 = vector.broadcast %811 : vector<2x1xf32> to vector<2x4xf32>
    %823 = vector.broadcast %821 : vector<1x4xf32> to vector<2x4xf32>
    %824 = arith.mulf %822, %823 : vector<2x4xf32>
    %825 = vector.broadcast %806 : vector<2x1xf32> to vector<2x4xf32>
    %826 = arith.addf %824, %825 : vector<2x4xf32>
    %827 = tpu.iota {dimensions = array<i32: 2>} : vector<1x1x16xi32>
    %828 = arith.sitofp %827 : vector<1x1x16xi32> to vector<1x1x16xf32>
    %829 = vector.shape_cast %826 : vector<2x4xf32> to vector<2x4x1xf32>
    %830 = vector.broadcast %828 : vector<1x1x16xf32> to vector<2x4x16xf32>
    %831 = vector.broadcast %829 : vector<2x4x1xf32> to vector<2x4x16xf32>
    %832 = arith.subf %830, %831 : vector<2x4x16xf32>
    %833 = vector.shape_cast %817 : vector<2x1xf32> to vector<2x1x1xf32>
    %834 = vector.broadcast %833 : vector<2x1x1xf32> to vector<2x4x16xf32>
    %835 = arith.divf %832, %834 : vector<2x4x16xf32>
    %836 = arith.mulf %835, %835 : vector<2x4x16xf32>
    %cst_205 = arith.constant 1.000000e+00 : f32
    %837 = vector.broadcast %cst_205 : f32 to vector<2x4x16xf32>
    %838 = arith.addf %837, %836 : vector<2x4x16xf32>
    %839 = vector.shape_cast %817 : vector<2x1xf32> to vector<2x1x1xf32>
    %cst_206 = arith.constant 3.14159274 : f32
    %840 = vector.broadcast %cst_206 : f32 to vector<2x1x1xf32>
    %841 = arith.mulf %840, %839 : vector<2x1x1xf32>
    %842 = vector.broadcast %841 : vector<2x1x1xf32> to vector<2x4x16xf32>
    %843 = arith.mulf %842, %838 : vector<2x4x16xf32>
    %cst_207 = arith.constant 1.000000e+00 : f32
    %844 = vector.broadcast %cst_207 : f32 to vector<2x4x16xf32>
    %845 = arith.divf %844, %843 : vector<2x4x16xf32>
    %cst_208 = arith.constant dense<0.000000e+00> : vector<2x4xf32>
    %846 = vector.multi_reduction <add>, %845, %cst_208 [2] : vector<2x4x16xf32> to vector<2x4xf32>
    %847 = vector.shape_cast %846 : vector<2x4xf32> to vector<2x4x1xf32>
    %cst_209 = arith.constant 9.99999974E-5 : f32
    %848 = vector.broadcast %cst_209 : f32 to vector<2x4x1xf32>
    %849 = arith.addf %847, %848 : vector<2x4x1xf32>
    %850 = vector.broadcast %849 : vector<2x4x1xf32> to vector<2x4x16xf32>
    %851 = arith.divf %845, %850 : vector<2x4x16xf32>
    "tpu.trace_start"() <{level = 10 : i32, message = "bgh,bhn->bgn"}> : () -> ()
    %cst_210 = arith.constant dense<0.000000e+00> : vector<2x4x48xf32>
    %852 = tpu.matmul %800, %742, %cst_210 {dimension_numbers = #tpu.dot_dimension_numbers<[2], [1], [1], [2], [0, 0, 0, 1, 1, 2], [0], [0]>} : vector<2x4x16xf32>, vector<2x16x48xf32>, vector<2x4x48xf32> -> vector<2x4x48xf32>
    "tpu.trace_stop"() : () -> ()
    %853 = vector.extract_strided_slice %852 {offsets = [0, 0, 0], sizes = [2, 4, 16], strides = [1, 1, 1]} : vector<2x4x48xf32> to vector<2x4x16xf32>
    "tpu.trace_start"() <{level = 10 : i32, message = "bgw,bjw->bgj"}> : () -> ()
    %cst_211 = arith.constant dense<0.000000e+00> : vector<2x4x4xf32>
    %854 = tpu.matmul %853, %851, %cst_211 {dimension_numbers = #tpu.dot_dimension_numbers<[2], [2], [1], [1], [0, 0, 0, 1, 1, 1], [0], [0]>} : vector<2x4x16xf32>, vector<2x4x16xf32>, vector<2x4x4xf32> -> vector<2x4x4xf32>
    "tpu.trace_stop"() : () -> ()
    %855 = vector.shape_cast %854 : vector<2x4x4xf32> to vector<2x16xf32>
    %856 = vector.extract_strided_slice %852 {offsets = [0, 0, 16], sizes = [2, 4, 16], strides = [1, 1, 1]} : vector<2x4x48xf32> to vector<2x4x16xf32>
    "tpu.trace_start"() <{level = 10 : i32, message = "bgw,bjw->bgj"}> : () -> ()
    %cst_212 = arith.constant dense<0.000000e+00> : vector<2x4x4xf32>
    %857 = tpu.matmul %856, %851, %cst_212 {dimension_numbers = #tpu.dot_dimension_numbers<[2], [2], [1], [1], [0, 0, 0, 1, 1, 1], [0], [0]>} : vector<2x4x16xf32>, vector<2x4x16xf32>, vector<2x4x4xf32> -> vector<2x4x4xf32>
    "tpu.trace_stop"() : () -> ()
    %858 = vector.shape_cast %857 : vector<2x4x4xf32> to vector<2x16xf32>
    %859 = vector.extract_strided_slice %852 {offsets = [0, 0, 32], sizes = [2, 4, 16], strides = [1, 1, 1]} : vector<2x4x48xf32> to vector<2x4x16xf32>
    "tpu.trace_start"() <{level = 10 : i32, message = "bgw,bjw->bgj"}> : () -> ()
    %cst_213 = arith.constant dense<0.000000e+00> : vector<2x4x4xf32>
    %860 = tpu.matmul %859, %851, %cst_213 {dimension_numbers = #tpu.dot_dimension_numbers<[2], [2], [1], [1], [0, 0, 0, 1, 1, 1], [0], [0]>} : vector<2x4x16xf32>, vector<2x4x16xf32>, vector<2x4x4xf32> -> vector<2x4x4xf32>
    "tpu.trace_stop"() : () -> ()
    %861 = vector.shape_cast %860 : vector<2x4x4xf32> to vector<2x16xf32>
    %862 = tpu.concatenate %855, %858, %861 in 1 : vector<2x16xf32>, vector<2x16xf32>, vector<2x16xf32> -> vector<2x48xf32>
    %cst_214 = arith.constant dense<0.000000e+00> : vector<2x128xf32>
    %863 = tpu.matmul %862, %2, %cst_214 {dimension_numbers = #tpu.dot_dimension_numbers<[1], [0], [0], [1], [0, 0, 1, 1], [], []>} : vector<2x48xf32>, vector<48x128xf32>, vector<2x128xf32> -> vector<2x128xf32>
    %864 = vector.broadcast %3 : vector<1x128xf32> to vector<2x128xf32>
    %865 = arith.addf %863, %864 : vector<2x128xf32>
    %cst_215 = arith.constant dense<0.000000e+00> : vector<2x128xf32>
    %866 = tpu.matmul %732, %4, %cst_215 {dimension_numbers = #tpu.dot_dimension_numbers<[1], [0], [0], [1], [0, 0, 1, 1], [], []>} : vector<2x32xf32>, vector<32x128xf32>, vector<2x128xf32> -> vector<2x128xf32>
    %867 = arith.addf %142, %866 : vector<2x128xf32>
    %868 = vector.broadcast %5 : vector<1x128xf32> to vector<2x128xf32>
    %869 = arith.addf %867, %868 : vector<2x128xf32>
    %870 = math.tanh %869 : vector<2x128xf32>
    %871 = arith.negf %869 : vector<2x128xf32>
    %872 = math.exp %871 : vector<2x128xf32>
    %cst_216 = arith.constant 1.000000e+00 : f32
    %873 = vector.broadcast %cst_216 : f32 to vector<2x128xf32>
    %874 = arith.addf %873, %872 : vector<2x128xf32>
    %875 = arith.divf %873, %874 : vector<2x128xf32>
    %876 = arith.select %17, %870, %875 : vector<2x128xi1>, vector<2x128xf32>
    %877 = vector.extract_strided_slice %876 {offsets = [0, 0], sizes = [2, 32], strides = [1, 1]} : vector<2x128xf32> to vector<2x32xf32>
    %878 = vector.extract_strided_slice %876 {offsets = [0, 32], sizes = [2, 32], strides = [1, 1]} : vector<2x128xf32> to vector<2x32xf32>
    %879 = vector.extract_strided_slice %876 {offsets = [0, 64], sizes = [2, 32], strides = [1, 1]} : vector<2x128xf32> to vector<2x32xf32>
    %880 = vector.extract_strided_slice %876 {offsets = [0, 96], sizes = [2, 32], strides = [1, 1]} : vector<2x128xf32> to vector<2x32xf32>
    %881 = arith.mulf %878, %725 : vector<2x32xf32>
    %882 = arith.mulf %877, %879 : vector<2x32xf32>
    %883 = arith.addf %881, %882 : vector<2x32xf32>
    %884 = math.tanh %883 : vector<2x32xf32>
    %885 = arith.mulf %880, %884 : vector<2x32xf32>
    %886 = vector.broadcast %6 : vector<1x32xf32> to vector<2x32xf32>
    %887 = arith.mulf %883, %886 : vector<2x32xf32>
    %cst_217 = arith.constant dense<0.000000e+00> : vector<2xf32>
    %888 = vector.multi_reduction <add>, %887, %cst_217 [1] : vector<2x32xf32> to vector<2xf32>
    %889 = vector.shape_cast %888 : vector<2xf32> to vector<2x1xf32>
    %890 = vector.broadcast %7 : vector<1x1xf32> to vector<2x1xf32>
    %891 = arith.addf %889, %890 : vector<2x1xf32>
    %892 = arith.negf %891 : vector<2x1xf32>
    %893 = math.exp %892 : vector<2x1xf32>
    %cst_218 = arith.constant 1.000000e+00 : f32
    %894 = vector.broadcast %cst_218 : f32 to vector<2x1xf32>
    %895 = arith.addf %894, %893 : vector<2x1xf32>
    %896 = arith.divf %894, %895 : vector<2x1xf32>
    %cst_219 = arith.constant 1.000000e+00 : f32
    %897 = vector.broadcast %cst_219 : f32 to vector<2x1xf32>
    %898 = arith.subf %897, %740 : vector<2x1xf32>
    %899 = arith.minimumf %737, %898 : vector<2x1xf32>
    %900 = arith.addf %740, %899 : vector<2x1xf32>
    %901 = math.roundeven %900 : vector<2x1xf32>
    %902 = vector.broadcast %901 : vector<2x1xf32> to vector<2x32xf32>
    %903 = arith.mulf %902, %883 : vector<2x32xf32>
    %cst_220 = arith.constant 1.000000e+00 : f32
    %904 = vector.broadcast %cst_220 : f32 to vector<2x1xf32>
    %905 = arith.subf %904, %901 : vector<2x1xf32>
    %906 = vector.broadcast %905 : vector<2x1xf32> to vector<2x32xf32>
    %907 = arith.mulf %906, %725 : vector<2x32xf32>
    %908 = arith.addf %903, %907 : vector<2x32xf32>
    %909 = vector.broadcast %901 : vector<2x1xf32> to vector<2x32xf32>
    %910 = arith.mulf %909, %885 : vector<2x32xf32>
    %cst_221 = arith.constant 1.000000e+00 : f32
    %911 = vector.broadcast %cst_221 : f32 to vector<2x1xf32>
    %912 = arith.subf %911, %901 : vector<2x1xf32>
    %913 = vector.broadcast %912 : vector<2x1xf32> to vector<2x32xf32>
    %914 = arith.mulf %913, %732 : vector<2x32xf32>
    %915 = arith.addf %910, %914 : vector<2x32xf32>
    %916 = arith.mulf %901, %896 : vector<2x1xf32>
    %cst_222 = arith.constant 1.000000e+00 : f32
    %917 = vector.broadcast %cst_222 : f32 to vector<2x1xf32>
    %918 = arith.subf %917, %901 : vector<2x1xf32>
    %919 = arith.mulf %918, %737 : vector<2x1xf32>
    %920 = arith.addf %916, %919 : vector<2x1xf32>
    %cst_223 = arith.constant 1.000000e+00 : f32
    %921 = vector.broadcast %cst_223 : f32 to vector<2x1xf32>
    %922 = arith.subf %921, %901 : vector<2x1xf32>
    %923 = arith.mulf %922, %900 : vector<2x1xf32>
    %cst_224 = arith.constant dense<0.000000e+00> : vector<2x128xf32>
    %924 = tpu.matmul %915, %4, %cst_224 {dimension_numbers = #tpu.dot_dimension_numbers<[1], [0], [0], [1], [0, 0, 1, 1], [], []>} : vector<2x32xf32>, vector<32x128xf32>, vector<2x128xf32> -> vector<2x128xf32>
    %925 = arith.addf %325, %924 : vector<2x128xf32>
    %926 = vector.broadcast %5 : vector<1x128xf32> to vector<2x128xf32>
    %927 = arith.addf %925, %926 : vector<2x128xf32>
    %928 = math.tanh %927 : vector<2x128xf32>
    %929 = arith.negf %927 : vector<2x128xf32>
    %930 = math.exp %929 : vector<2x128xf32>
    %cst_225 = arith.constant 1.000000e+00 : f32
    %931 = vector.broadcast %cst_225 : f32 to vector<2x128xf32>
    %932 = arith.addf %931, %930 : vector<2x128xf32>
    %933 = arith.divf %931, %932 : vector<2x128xf32>
    %934 = arith.select %17, %928, %933 : vector<2x128xi1>, vector<2x128xf32>
    %935 = vector.extract_strided_slice %934 {offsets = [0, 0], sizes = [2, 32], strides = [1, 1]} : vector<2x128xf32> to vector<2x32xf32>
    %936 = vector.extract_strided_slice %934 {offsets = [0, 32], sizes = [2, 32], strides = [1, 1]} : vector<2x128xf32> to vector<2x32xf32>
    %937 = vector.extract_strided_slice %934 {offsets = [0, 64], sizes = [2, 32], strides = [1, 1]} : vector<2x128xf32> to vector<2x32xf32>
    %938 = vector.extract_strided_slice %934 {offsets = [0, 96], sizes = [2, 32], strides = [1, 1]} : vector<2x128xf32> to vector<2x32xf32>
    %939 = arith.mulf %936, %908 : vector<2x32xf32>
    %940 = arith.mulf %935, %937 : vector<2x32xf32>
    %941 = arith.addf %939, %940 : vector<2x32xf32>
    %942 = math.tanh %941 : vector<2x32xf32>
    %943 = arith.mulf %938, %942 : vector<2x32xf32>
    %944 = vector.broadcast %6 : vector<1x32xf32> to vector<2x32xf32>
    %945 = arith.mulf %941, %944 : vector<2x32xf32>
    %cst_226 = arith.constant dense<0.000000e+00> : vector<2xf32>
    %946 = vector.multi_reduction <add>, %945, %cst_226 [1] : vector<2x32xf32> to vector<2xf32>
    %947 = vector.shape_cast %946 : vector<2xf32> to vector<2x1xf32>
    %948 = vector.broadcast %7 : vector<1x1xf32> to vector<2x1xf32>
    %949 = arith.addf %947, %948 : vector<2x1xf32>
    %950 = arith.negf %949 : vector<2x1xf32>
    %951 = math.exp %950 : vector<2x1xf32>
    %cst_227 = arith.constant 1.000000e+00 : f32
    %952 = vector.broadcast %cst_227 : f32 to vector<2x1xf32>
    %953 = arith.addf %952, %951 : vector<2x1xf32>
    %954 = arith.divf %952, %953 : vector<2x1xf32>
    %cst_228 = arith.constant 1.000000e+00 : f32
    %955 = vector.broadcast %cst_228 : f32 to vector<2x1xf32>
    %956 = arith.subf %955, %923 : vector<2x1xf32>
    %957 = arith.minimumf %920, %956 : vector<2x1xf32>
    %958 = arith.addf %923, %957 : vector<2x1xf32>
    %959 = math.roundeven %958 : vector<2x1xf32>
    %960 = vector.broadcast %959 : vector<2x1xf32> to vector<2x32xf32>
    %961 = arith.mulf %960, %941 : vector<2x32xf32>
    %cst_229 = arith.constant 1.000000e+00 : f32
    %962 = vector.broadcast %cst_229 : f32 to vector<2x1xf32>
    %963 = arith.subf %962, %959 : vector<2x1xf32>
    %964 = vector.broadcast %963 : vector<2x1xf32> to vector<2x32xf32>
    %965 = arith.mulf %964, %908 : vector<2x32xf32>
    %966 = arith.addf %961, %965 : vector<2x32xf32>
    %967 = vector.broadcast %959 : vector<2x1xf32> to vector<2x32xf32>
    %968 = arith.mulf %967, %943 : vector<2x32xf32>
    %cst_230 = arith.constant 1.000000e+00 : f32
    %969 = vector.broadcast %cst_230 : f32 to vector<2x1xf32>
    %970 = arith.subf %969, %959 : vector<2x1xf32>
    %971 = vector.broadcast %970 : vector<2x1xf32> to vector<2x32xf32>
    %972 = arith.mulf %971, %915 : vector<2x32xf32>
    %973 = arith.addf %968, %972 : vector<2x32xf32>
    %974 = arith.mulf %959, %954 : vector<2x1xf32>
    %cst_231 = arith.constant 1.000000e+00 : f32
    %975 = vector.broadcast %cst_231 : f32 to vector<2x1xf32>
    %976 = arith.subf %975, %959 : vector<2x1xf32>
    %977 = arith.mulf %976, %920 : vector<2x1xf32>
    %978 = arith.addf %974, %977 : vector<2x1xf32>
    %cst_232 = arith.constant 1.000000e+00 : f32
    %979 = vector.broadcast %cst_232 : f32 to vector<2x1xf32>
    %980 = arith.subf %979, %959 : vector<2x1xf32>
    %981 = arith.mulf %980, %958 : vector<2x1xf32>
    %cst_233 = arith.constant dense<0.000000e+00> : vector<2x128xf32>
    %982 = tpu.matmul %973, %4, %cst_233 {dimension_numbers = #tpu.dot_dimension_numbers<[1], [0], [0], [1], [0, 0, 1, 1], [], []>} : vector<2x32xf32>, vector<32x128xf32>, vector<2x128xf32> -> vector<2x128xf32>
    %983 = arith.addf %566, %982 : vector<2x128xf32>
    %984 = vector.broadcast %5 : vector<1x128xf32> to vector<2x128xf32>
    %985 = arith.addf %983, %984 : vector<2x128xf32>
    %986 = math.tanh %985 : vector<2x128xf32>
    %987 = arith.negf %985 : vector<2x128xf32>
    %988 = math.exp %987 : vector<2x128xf32>
    %cst_234 = arith.constant 1.000000e+00 : f32
    %989 = vector.broadcast %cst_234 : f32 to vector<2x128xf32>
    %990 = arith.addf %989, %988 : vector<2x128xf32>
    %991 = arith.divf %989, %990 : vector<2x128xf32>
    %992 = arith.select %17, %986, %991 : vector<2x128xi1>, vector<2x128xf32>
    %993 = vector.extract_strided_slice %992 {offsets = [0, 0], sizes = [2, 32], strides = [1, 1]} : vector<2x128xf32> to vector<2x32xf32>
    %994 = vector.extract_strided_slice %992 {offsets = [0, 32], sizes = [2, 32], strides = [1, 1]} : vector<2x128xf32> to vector<2x32xf32>
    %995 = vector.extract_strided_slice %992 {offsets = [0, 64], sizes = [2, 32], strides = [1, 1]} : vector<2x128xf32> to vector<2x32xf32>
    %996 = vector.extract_strided_slice %992 {offsets = [0, 96], sizes = [2, 32], strides = [1, 1]} : vector<2x128xf32> to vector<2x32xf32>
    %997 = arith.mulf %994, %966 : vector<2x32xf32>
    %998 = arith.mulf %993, %995 : vector<2x32xf32>
    %999 = arith.addf %997, %998 : vector<2x32xf32>
    %1000 = math.tanh %999 : vector<2x32xf32>
    %1001 = arith.mulf %996, %1000 : vector<2x32xf32>
    %1002 = vector.broadcast %6 : vector<1x32xf32> to vector<2x32xf32>
    %1003 = arith.mulf %999, %1002 : vector<2x32xf32>
    %cst_235 = arith.constant dense<0.000000e+00> : vector<2xf32>
    %1004 = vector.multi_reduction <add>, %1003, %cst_235 [1] : vector<2x32xf32> to vector<2xf32>
    %1005 = vector.shape_cast %1004 : vector<2xf32> to vector<2x1xf32>
    %1006 = vector.broadcast %7 : vector<1x1xf32> to vector<2x1xf32>
    %1007 = arith.addf %1005, %1006 : vector<2x1xf32>
    %1008 = arith.negf %1007 : vector<2x1xf32>
    %1009 = math.exp %1008 : vector<2x1xf32>
    %cst_236 = arith.constant 1.000000e+00 : f32
    %1010 = vector.broadcast %cst_236 : f32 to vector<2x1xf32>
    %1011 = arith.addf %1010, %1009 : vector<2x1xf32>
    %1012 = arith.divf %1010, %1011 : vector<2x1xf32>
    %cst_237 = arith.constant 1.000000e+00 : f32
    %1013 = vector.broadcast %cst_237 : f32 to vector<2x1xf32>
    %1014 = arith.subf %1013, %981 : vector<2x1xf32>
    %1015 = arith.minimumf %978, %1014 : vector<2x1xf32>
    %1016 = arith.addf %981, %1015 : vector<2x1xf32>
    %1017 = math.roundeven %1016 : vector<2x1xf32>
    %1018 = vector.broadcast %1017 : vector<2x1xf32> to vector<2x32xf32>
    %1019 = arith.mulf %1018, %999 : vector<2x32xf32>
    %cst_238 = arith.constant 1.000000e+00 : f32
    %1020 = vector.broadcast %cst_238 : f32 to vector<2x1xf32>
    %1021 = arith.subf %1020, %1017 : vector<2x1xf32>
    %1022 = vector.broadcast %1021 : vector<2x1xf32> to vector<2x32xf32>
    %1023 = arith.mulf %1022, %966 : vector<2x32xf32>
    %1024 = arith.addf %1019, %1023 : vector<2x32xf32>
    %1025 = vector.broadcast %1017 : vector<2x1xf32> to vector<2x32xf32>
    %1026 = arith.mulf %1025, %1001 : vector<2x32xf32>
    %cst_239 = arith.constant 1.000000e+00 : f32
    %1027 = vector.broadcast %cst_239 : f32 to vector<2x1xf32>
    %1028 = arith.subf %1027, %1017 : vector<2x1xf32>
    %1029 = vector.broadcast %1028 : vector<2x1xf32> to vector<2x32xf32>
    %1030 = arith.mulf %1029, %973 : vector<2x32xf32>
    %1031 = arith.addf %1026, %1030 : vector<2x32xf32>
    %1032 = arith.mulf %1017, %1012 : vector<2x1xf32>
    %cst_240 = arith.constant 1.000000e+00 : f32
    %1033 = vector.broadcast %cst_240 : f32 to vector<2x1xf32>
    %1034 = arith.subf %1033, %1017 : vector<2x1xf32>
    %1035 = arith.mulf %1034, %978 : vector<2x1xf32>
    %1036 = arith.addf %1032, %1035 : vector<2x1xf32>
    %cst_241 = arith.constant 1.000000e+00 : f32
    %1037 = vector.broadcast %cst_241 : f32 to vector<2x1xf32>
    %1038 = arith.subf %1037, %1017 : vector<2x1xf32>
    %1039 = arith.mulf %1038, %1016 : vector<2x1xf32>
    %cst_242 = arith.constant dense<0.000000e+00> : vector<2x128xf32>
    %1040 = tpu.matmul %1031, %4, %cst_242 {dimension_numbers = #tpu.dot_dimension_numbers<[1], [0], [0], [1], [0, 0, 1, 1], [], []>} : vector<2x32xf32>, vector<32x128xf32>, vector<2x128xf32> -> vector<2x128xf32>
    %1041 = arith.addf %865, %1040 : vector<2x128xf32>
    %1042 = vector.broadcast %5 : vector<1x128xf32> to vector<2x128xf32>
    %1043 = arith.addf %1041, %1042 : vector<2x128xf32>
    %1044 = math.tanh %1043 : vector<2x128xf32>
    %1045 = arith.negf %1043 : vector<2x128xf32>
    %1046 = math.exp %1045 : vector<2x128xf32>
    %cst_243 = arith.constant 1.000000e+00 : f32
    %1047 = vector.broadcast %cst_243 : f32 to vector<2x128xf32>
    %1048 = arith.addf %1047, %1046 : vector<2x128xf32>
    %1049 = arith.divf %1047, %1048 : vector<2x128xf32>
    %1050 = arith.select %17, %1044, %1049 : vector<2x128xi1>, vector<2x128xf32>
    %1051 = vector.extract_strided_slice %1050 {offsets = [0, 0], sizes = [2, 32], strides = [1, 1]} : vector<2x128xf32> to vector<2x32xf32>
    %1052 = vector.extract_strided_slice %1050 {offsets = [0, 32], sizes = [2, 32], strides = [1, 1]} : vector<2x128xf32> to vector<2x32xf32>
    %1053 = vector.extract_strided_slice %1050 {offsets = [0, 64], sizes = [2, 32], strides = [1, 1]} : vector<2x128xf32> to vector<2x32xf32>
    %1054 = vector.extract_strided_slice %1050 {offsets = [0, 96], sizes = [2, 32], strides = [1, 1]} : vector<2x128xf32> to vector<2x32xf32>
    %1055 = arith.mulf %1052, %1024 : vector<2x32xf32>
    %1056 = arith.mulf %1051, %1053 : vector<2x32xf32>
    %1057 = arith.addf %1055, %1056 : vector<2x32xf32>
    %1058 = math.tanh %1057 : vector<2x32xf32>
    %1059 = arith.mulf %1054, %1058 : vector<2x32xf32>
    %cst_244 = arith.constant 1.000000e+00 : f32
    %1060 = vector.broadcast %cst_244 : f32 to vector<2x1xf32>
    %1061 = arith.subf %1060, %1039 : vector<2x1xf32>
    %1062 = arith.minimumf %1036, %1061 : vector<2x1xf32>
    %1063 = arith.addf %1039, %1062 : vector<2x1xf32>
    %1064 = math.roundeven %1063 : vector<2x1xf32>
    %1065 = vector.broadcast %1064 : vector<2x1xf32> to vector<2x32xf32>
    %1066 = arith.mulf %1065, %1059 : vector<2x32xf32>
    %cst_245 = arith.constant 1.000000e+00 : f32
    %1067 = vector.broadcast %cst_245 : f32 to vector<2x1xf32>
    %1068 = arith.subf %1067, %1064 : vector<2x1xf32>
    %1069 = vector.broadcast %1068 : vector<2x1xf32> to vector<2x32xf32>
    %1070 = arith.mulf %1069, %1031 : vector<2x32xf32>
    %1071 = arith.addf %1066, %1070 : vector<2x32xf32>
    %c0_246 = arith.constant 0 : index
    %c0_247 = arith.constant 0 : index
    %1072 = vector.load %arg9[%c0_246, %c0_247] : memref<2x32xf32, #tpu.memory_space<vmem>>, vector<2x32xf32>
    tpu.vector_store %arg9[%c0_246, %c0_247], %1071 {strides = array<i32>} : memref<2x32xf32, #tpu.memory_space<vmem>>, vector<2x32xf32>,
    %1073 = tpu.concatenate %178, %419, %718, %1064 in 1 : vector<2x1xf32>, vector<2x1xf32>, vector<2x1xf32>, vector<2x1xf32> -> vector<2x4xf32>
    %c0_248 = arith.constant 0 : index
    %c0_249 = arith.constant 0 : index
    %1074 = vector.load %arg10[%c0_248, %c0_249] : memref<2x4xf32, #tpu.memory_space<vmem>>, vector<2x4xf32>
    tpu.vector_store %arg10[%c0_248, %c0_249], %1073 {strides = array<i32>} : memref<2x4xf32, #tpu.memory_space<vmem>>, vector<2x4xf32>,
    return
  }
}

</mosaic_0001>

<llo_original>
// kernel: skip_arc_forward.1
$region0: #{skip_arc_forward.1}
  #allocation0 [shape = 'u32[]', space=smem, size = 0x4, offset = 0x4, fixed_abs, tag = 'smem constant byte address 0x4 - core index']
  #allocation1 [shape = 'u32[72,128]{1,0:T(1,128)}', space=vmem, size = 0x9000, scoped, tag = 'internal scratch']
  #allocation2 [shape = 'f32[1,1]{1,0:T(1,128)S(1)}', space=vmem, size = 0x200, scoped, tag = 'scoped memory for skip_arc_forward.1']
  %s0 = inlined_call_operand.vmem [shape: f32[2,2,16,48], index: 0, kind: input, shape index: {}]
  %s1 = inlined_call_operand.vmem [shape: f32[32,128], index: 1, kind: input, shape index: {}]
  %s2 = inlined_call_operand.vmem [shape: f32[1,128], index: 2, kind: input, shape index: {}]
  %s3 = inlined_call_operand.vmem [shape: f32[48,128], index: 3, kind: input, shape index: {}]
  %s4 = inlined_call_operand.vmem [shape: f32[1,128], index: 4, kind: input, shape index: {}]
  %s5 = inlined_call_operand.vmem [shape: f32[32,128], index: 5, kind: input, shape index: {}]
  %s6 = inlined_call_operand.vmem [shape: f32[1,128], index: 6, kind: input, shape index: {}]
  %s7 = inlined_call_operand.vmem [shape: f32[1,32], index: 7, kind: input, shape index: {}]
  %s8 = inlined_call_operand.<no memory space> [shape: f32[1,1], index: 8, kind: input, shape index: {}]
  %s9 = inlined_call_operand.hbm [shape: f32[2,32], index: 9, kind: output, shape index: {0}]
  %s10 = inlined_call_operand.hbm [shape: f32[2,4], index: 10, kind: output, shape index: {1}]
  %11 = xla_tuple %s9, %s10
  %s12 = sld [smem:[#allocation0]]
  $region54: #{skip_arc_forward.1} parent=0
    _
  %s14 = ssub.s32 1, %s12
  %s15 = scalar_select 0, %s14, %s12
  %v16 = vstv %s8
  %17 = vst [vmem:[#allocation2] sm:$0x1] %v16
  $region1: #{skip_arc_forward.1} parent=0
    #allocation3 [shape = 'u8[1024]{0}', space=vmem, size = 0x400, scoped, tag = 'output window, operand 0, single buffered']
    #allocation4 [shape = 's32[1]{0}', space=sflag, size = 0x4, scoped, tag = 'scoped memory for skip_arc_forward.1']
    #allocation5 [shape = 'u8[1024]{0}', space=vmem, size = 0x400, scoped, tag = 'output window, operand 1, single buffered']
    #allocation6 [shape = 's32[1]{0}', space=sflag, size = 0x4, scoped, tag = 'scoped memory for skip_arc_forward.1']
    %18 = vsyncpa [#allocation4], 0
    %19 = vsyncpa [#allocation6], 0
    // Predicated region
    $region2: #{skip_arc_forward.1} parent=1 // pred_check
      _
    $region3: #{skip_arc_forward.1} parent=1 // pred_check_branch
      %21 = sbr.rel (0) target = $region5
    $region4: #{skip_arc_forward.1} parent=1 // pred_region
      _
    $region5: #{skip_arc_forward.1} parent=1 // pred_fallthru
      _
    // Predicated region
    $region6: #{skip_arc_forward.1} parent=1 // pred_check
      _
    $region7: #{skip_arc_forward.1} parent=1 // pred_check_branch
      %23 = sbr.rel (0) target = $region9
    $region8: #{skip_arc_forward.1} parent=1 // pred_region
      _
    $region9: #{skip_arc_forward.1} parent=1 // pred_fallthru
      _
    // Predicated region
    $region10: #{skip_arc_forward.1} parent=1 // pred_check
      _
    $region11: #{skip_arc_forward.1} parent=1 // pred_check_branch
      %25 = sbr.rel (0) target = $region13
    $region12: #{skip_arc_forward.1} parent=1 // pred_region
      _
    $region13: #{skip_arc_forward.1} parent=1 // pred_fallthru
      _
    // Predicated region
    $region14: #{skip_arc_forward.1} parent=1 // pred_check
      _
    $region15: #{skip_arc_forward.1} parent=1 // pred_check_branch
      %27 = sbr.rel (0) target = $region17
    $region16: #{skip_arc_forward.1} parent=1 // pred_region
      _
    $region17: #{skip_arc_forward.1} parent=1 // pred_fallthru
      _
    // Predicated region
    $region18: #{skip_arc_forward.1} parent=1 // pred_check
      _
    $region19: #{skip_arc_forward.1} parent=1 // pred_check_branch
      %29 = sbr.rel (0) target = $region21
    $region20: #{skip_arc_forward.1} parent=1 // pred_region
      _
    $region21: #{skip_arc_forward.1} parent=1 // pred_fallthru
      _
    // Predicated region
    $region22: #{skip_arc_forward.1} parent=1 // pred_check
      _
    $region23: #{skip_arc_forward.1} parent=1 // pred_check_branch
      %31 = sbr.rel (0) target = $region25
    $region24: #{skip_arc_forward.1} parent=1 // pred_region
      _
    $region25: #{skip_arc_forward.1} parent=1 // pred_fallthru
      _
    // Predicated region
    $region26: #{skip_arc_forward.1} parent=1 // pred_check
      _
    $region27: #{skip_arc_forward.1} parent=1 // pred_check_branch
      %33 = sbr.rel (0) target = $region29
    $region28: #{skip_arc_forward.1} parent=1 // pred_region
      _
    $region29: #{skip_arc_forward.1} parent=1 // pred_fallthru
      _
    // Predicated region
    $region30: #{skip_arc_forward.1} parent=1 // pred_check
      _
    $region31: #{skip_arc_forward.1} parent=1 // pred_check_branch
      %35 = sbr.rel (0) target = $region33
    $region32: #{skip_arc_forward.1} parent=1 // pred_region
      _
    $region33: #{skip_arc_forward.1} parent=1 // pred_fallthru
      _
    // Predicated region
    $region34: #{skip_arc_forward.1} parent=1 // pred_check
      _
    $region35: #{skip_arc_forward.1} parent=1 // pred_check_branch
      %37 = sbr.rel (0) target = $region37
    $region36: #{skip_arc_forward.1} parent=1 // pred_region
      _
    $region37: #{skip_arc_forward.1} parent=1 // pred_fallthru
      _
    %v38 = vld [vmem:[%s1] sm:$0xff]
    %v39 = vld [vmem:[%s1 + $0x8] sm:$0xff]
    %v40 = vld [vmem:[%s1 + $0x10] sm:$0xff]
    %v41 = vld [vmem:[%s1 + $0x18] sm:$0xff]
    %v42 = vld [vmem:[%s2] sm:$0x1]
    %v43 = vld [vmem:[%s3] sm:$0xff]
    %v44 = vld [vmem:[%s3 + $0x8] sm:$0xff]
    %v45 = vld [vmem:[%s3 + $0x10] sm:$0xff]
    %v46 = vld [vmem:[%s3 + $0x18] sm:$0xff]
    %v47 = vld [vmem:[%s3 + $0x20] sm:$0xff]
    %v48 = vld [vmem:[%s3 + $0x28] sm:$0xff]
    %v49 = vld [vmem:[%s4] sm:$0x1]
    %v50 = vld [vmem:[%s5] sm:$0xff]
    %v51 = vld [vmem:[%s5 + $0x8] sm:$0xff]
    %v52 = vld [vmem:[%s5 + $0x10] sm:$0xff]
    %v53 = vld [vmem:[%s5 + $0x18] sm:$0xff]
    %v54 = vld [vmem:[%s6] sm:$0x1]
    %v55 = vld [vmem:[%s7] sm:$0x1]
    %v56 = vld [vmem:[#allocation2] sm:$0x1]
    %v57 = vlaneseq
    %v58 = vand.u32 %v57, 127
    %vm59 = vcmp.ge.s32.totalorder %v58, 64
    %vm60 = vcmp.lt.s32.totalorder %v58, 96
    %vm61 = vmand %vm59, %vm60
    %v62 = vld [vmem:[%s0] sm:$0xff]
    %v63 = vld [vmem:[%s0 + $0x8] sm:$0xff]
    %v64 = vld [vmem:[%s0 + $0x10] sm:$0xff]
    %v65 = vld [vmem:[%s0 + $0x18] sm:$0xff]
    %v67 = vperm.slane %v42, 0
    %vm69 = vcmask 261120
    %v71 = vsel %vm69, 0.0, 0
    %73 = vmatpush.msra.mxu0 0.0
    %74 = vmatpush.msra.mxu0 0.0
    %75 = vmatpush.msra.mxu0 0.0
    %76 = vmatpush.msra.mxu0 0.0
    %77 = vmatpush.msra.mxu0 0.0
    %78 = vmatpush.msra.mxu0 0.0
    %79 = vmatpush.msra.mxu0 0.0
    %80 = vmatpush.msra.mxu0 0.0
    %81 = vmatpush.msra.mxu0 0.0
    %82 = vmatpush.msra.mxu0 0.0
    %83 = vmatpush.msra.mxu0 0.0
    %84 = vmatpush.msra.mxu0 0.0
    %85 = vmatpush.msra.mxu0 %v41
    %86 = vmatpush.msra.mxu0 %v40
    %87 = vmatpush.msra.mxu0 %v39
    %88 = vmatpush.msra.mxu0 %v38
    %89 = vmatmul.f32.gmra.mxu0 %v71
    %v90 = vpop.f32.mrf.mxu0
    %v91 = vadd.f32 %v67, %v90
    %92 = vdwg.mxu0
    %v93 = vtanh.pop %v91
    %v94 = vadd.f32 %v93, 1.0
    %v95 = vmul.f32 %v94, 15.0
    %v96 = vrcp.pop 2.0
    %v97 = vmul.f32 2.0, %v96
    %v98 = vsub.f32 1.0, %v97
    %v99 = vmul.f32 %v96, %v98
    %v100 = vadd.f32 %v96, %v99
    %vm101 = vweird.f32 %v96
    %v102 = vsel %vm101, %v96, %v100
    %v103 = vmul.f32 %v95, %v102
    %v104 = vand.u32 2147483647, %v93
    %v105 = vsub.f32 1.0, %v104
    %v106 = vmul.f32 %v105, 4.0
    %v107 = vmul.f32 %v104, 2.0
    %v108 = vsub.f32 1.0, %v107
    %v109 = vmul.f32 %v108, 1.442695
    %v110 = vpow.pop %v109
    %v111 = vcvt.s32.f32 %v58
    %v112 = vsub.f32 %v111, 1.5
    %114 = vset.pattern.permute.xlu0 2
    %115 = vperm.xlu0 %114, %v106
    %v116 = vpop.permute.xlu0 %115
    %v118 = vmul.f32 %v116, %v112
    %120 = vset.pattern.permute.xlu0 0
    %121 = vperm.xlu0 %120, %v103
    %v122 = vpop.permute.xlu0 %121
    %v124 = vadd.f32 %v118, %v122
    %v125 = vperm.slane %v124, 0
    %v126 = vlaneseq
    %v127 = vshrl.u32 %v126, 7
    %129 = vset.pattern.permute.xlu0 %v127
    %130 = vperm.xlu0 %129, %v125
    %v131 = vpop.permute.xlu0 %130
    %v132 = vperm.slane %v124, 1
    %v133 = vlaneseq
    %v134 = vshrl.u32 %v133, 7
    %136 = vset.pattern.permute.xlu0 %v134
    %137 = vperm.xlu0 %136, %v132
    %v138 = vpop.permute.xlu0 %137
    %v139 = vsub.f32 %v111, %v131
    %v140 = vsub.f32 %v111, %v138
    %v142 = vrot.slane %v110, 1
    %v144 = vperm.slane %v110, 0
    %v145 = vperm.slane %v142, 0
    %146 = vset.pattern.permute.xlu0 2
    %147 = vperm.xlu0 %146, %v144
    %v148 = vpop.permute.xlu0 %147
    %150 = vset.pattern.permute.xlu0 2
    %151 = vperm.xlu0 %150, %v145
    %v152 = vpop.permute.xlu0 %151
    %v154 = vrcp.pop %v148
    %v155 = vmul.f32 %v148, %v154
    %v156 = vsub.f32 1.0, %v155
    %v157 = vmul.f32 %v154, %v156
    %v158 = vadd.f32 %v154, %v157
    %vm159 = vweird.f32 %v148
    %vm160 = vweird.f32 %v154
    %vm161 = vmor %vm159, %vm160
    %v162 = vsel %vm161, %v154, %v158
    %v163 = vand.u32 2147483647, %v148
    %vm164 = vcmp.eq.f32.partialorder %v163, 8.507059e+37
    %v165 = vand.u32 %v148, 2147483648
    %v166 = vor.u32 1.1754944e-38, %v165
    %v167 = vsel %vm164, %v166, %v162
    %v168 = vmul.f32 %v139, %v167
    %v169 = vrcp.pop %v152
    %v170 = vmul.f32 %v152, %v169
    %v171 = vsub.f32 1.0, %v170
    %v172 = vmul.f32 %v169, %v171
    %v173 = vadd.f32 %v169, %v172
    %vm174 = vweird.f32 %v152
    %vm175 = vweird.f32 %v169
    %vm176 = vmor %vm174, %vm175
    %v177 = vsel %vm176, %v169, %v173
    %v178 = vand.u32 2147483647, %v152
    %vm179 = vcmp.eq.f32.partialorder %v178, 8.507059e+37
    %v180 = vand.u32 %v152, 2147483648
    %v181 = vor.u32 1.1754944e-38, %v180
    %v182 = vsel %vm179, %v181, %v177
    %v183 = vmul.f32 %v140, %v182
    %v184 = vmul.f32 %v168, %v168
    %v185 = vmul.f32 %v183, %v183
    %v186 = vadd.f32 %v184, 1.0
    %v187 = vadd.f32 %v185, 1.0
    %v188 = vmul.f32 %v110, 3.1415927
    %v189 = vmul.f32 %v142, 3.1415927
    %v192 = vperm.slane %v188, 0
    %v193 = vperm.slane %v189, 0
    %194 = vset.pattern.permute.xlu0 2
    %195 = vperm.xlu0 %194, %v192
    %v196 = vpop.permute.xlu0 %195
    %198 = vset.pattern.permute.xlu0 2
    %199 = vperm.xlu0 %198, %v193
    %v200 = vpop.permute.xlu0 %199
    %v202 = vmul.f32 %v196, %v186
    %v203 = vmul.f32 %v200, %v187
    %v204 = vrcp.pop %v202
    %v205 = vmul.f32 %v202, %v204
    %v206 = vsub.f32 1.0, %v205
    %v207 = vmul.f32 %v204, %v206
    %v208 = vadd.f32 %v204, %v207
    %vm209 = vweird.f32 %v202
    %vm210 = vweird.f32 %v204
    %vm211 = vmor %vm209, %vm210
    %v212 = vsel %vm211, %v204, %v208
    %v213 = vand.u32 2147483647, %v202
    %vm214 = vcmp.eq.f32.partialorder %v213, 8.507059e+37
    %v215 = vand.u32 %v202, 2147483648
    %v216 = vor.u32 1.1754944e-38, %v215
    %v217 = vsel %vm214, %v216, %v212
    %v218 = vmul.f32 1.0, %v217
    %v219 = vrcp.pop %v203
    %v220 = vmul.f32 %v203, %v219
    %v221 = vsub.f32 1.0, %v220
    %v222 = vmul.f32 %v219, %v221
    %v223 = vadd.f32 %v219, %v222
    %vm224 = vweird.f32 %v203
    %vm225 = vweird.f32 %v219
    %vm226 = vmor %vm224, %vm225
    %v227 = vsel %vm226, %v219, %v223
    %v228 = vand.u32 2147483647, %v203
    %vm229 = vcmp.eq.f32.partialorder %v228, 8.507059e+37
    %v230 = vand.u32 %v203, 2147483648
    %v231 = vor.u32 1.1754944e-38, %v230
    %v232 = vsel %vm229, %v231, %v227
    %v233 = vmul.f32 1.0, %v232
    %vm234 = vcmask 125952
    %v235 = vsel %vm234, %v218, 0.0
    %236 = vadd.xlane.f32.xlu0 %v235
    %v237 = vpop.xlane.xlu0 %236
    %v238 = vsel %vm234, %v233, 0.0
    %239 = vadd.xlane.f32.xlu0 %v238
    %v240 = vpop.xlane.xlu0 %239
    %v241 = vadd.f32 %v237, 0.0001
    %v242 = vadd.f32 %v240, 0.0001
    %v243 = vrcp.pop %v241
    %v244 = vmul.f32 %v241, %v243
    %v245 = vsub.f32 1.0, %v244
    %v246 = vmul.f32 %v243, %v245
    %v247 = vadd.f32 %v243, %v246
    %vm248 = vweird.f32 %v241
    %vm249 = vweird.f32 %v243
    %vm250 = vmor %vm248, %vm249
    %v251 = vsel %vm250, %v243, %v247
    %v252 = vand.u32 2147483647, %v241
    %vm253 = vcmp.eq.f32.partialorder %v252, 8.507059e+37
    %v254 = vand.u32 %v241, 2147483648
    %v255 = vor.u32 1.1754944e-38, %v254
    %v256 = vsel %vm253, %v255, %v251
    %v257 = vmul.f32 %v218, %v256
    %v258 = vrcp.pop %v242
    %v259 = vmul.f32 %v242, %v258
    %v260 = vsub.f32 1.0, %v259
    %v261 = vmul.f32 %v258, %v260
    %v262 = vadd.f32 %v258, %v261
    %vm263 = vweird.f32 %v242
    %vm264 = vweird.f32 %v258
    %vm265 = vmor %vm263, %vm264
    %v266 = vsel %vm265, %v258, %v262
    %v267 = vand.u32 2147483647, %v242
    %vm268 = vcmp.eq.f32.partialorder %v267, 8.507059e+37
    %v269 = vand.u32 %v242, 2147483648
    %v270 = vor.u32 1.1754944e-38, %v269
    %v271 = vsel %vm268, %v270, %v266
    %v272 = vmul.f32 %v233, %v271
    %273 = vset.pattern.permute.xlu0 1
    %274 = vperm.xlu0 %273, %v103
    %v275 = vpop.permute.xlu0 %274
    %v277 = vadd.f32 %v118, %v275
    %v278 = vperm.slane %v277, 0
    %v279 = vlaneseq
    %v280 = vshrl.u32 %v279, 7
    %282 = vset.pattern.permute.xlu0 %v280
    %283 = vperm.xlu0 %282, %v278
    %v284 = vpop.permute.xlu0 %283
    %v285 = vperm.slane %v277, 1
    %v286 = vlaneseq
    %v287 = vshrl.u32 %v286, 7
    %289 = vset.pattern.permute.xlu0 %v287
    %290 = vperm.xlu0 %289, %v285
    %v291 = vpop.permute.xlu0 %290
    %v292 = vsub.f32 %v111, %v284
    %v293 = vsub.f32 %v111, %v291
    %v294 = vmul.f32 %v292, %v167
    %v295 = vmul.f32 %v293, %v182
    %v296 = vmul.f32 %v294, %v294
    %v297 = vmul.f32 %v295, %v295
    %v298 = vadd.f32 %v296, 1.0
    %v299 = vadd.f32 %v297, 1.0
    %v300 = vmul.f32 %v196, %v298
    %v301 = vmul.f32 %v200, %v299
    %v302 = vrcp.pop %v300
    %v303 = vmul.f32 %v300, %v302
    %v304 = vsub.f32 1.0, %v303
    %v305 = vmul.f32 %v302, %v304
    %v306 = vadd.f32 %v302, %v305
    %vm307 = vweird.f32 %v300
    %vm308 = vweird.f32 %v302
    %vm309 = vmor %vm307, %vm308
    %v310 = vsel %vm309, %v302, %v306
    %v311 = vand.u32 2147483647, %v300
    %vm312 = vcmp.eq.f32.partialorder %v311, 8.507059e+37
    %v313 = vand.u32 %v300, 2147483648
    %v314 = vor.u32 1.1754944e-38, %v313
    %v315 = vsel %vm312, %v314, %v310
    %v316 = vmul.f32 1.0, %v315
    %v317 = vrcp.pop %v301
    %v318 = vmul.f32 %v301, %v317
    %v319 = vsub.f32 1.0, %v318
    %v320 = vmul.f32 %v317, %v319
    %v321 = vadd.f32 %v317, %v320
    %vm322 = vweird.f32 %v301
    %vm323 = vweird.f32 %v317
    %vm324 = vmor %vm322, %vm323
    %v325 = vsel %vm324, %v317, %v321
    %v326 = vand.u32 2147483647, %v301
    %vm327 = vcmp.eq.f32.partialorder %v326, 8.507059e+37
    %v328 = vand.u32 %v301, 2147483648
    %v329 = vor.u32 1.1754944e-38, %v328
    %v330 = vsel %vm327, %v329, %v325
    %v331 = vmul.f32 1.0, %v330
    %v332 = vsel %vm234, %v316, 0.0
    %333 = vadd.xlane.f32.xlu0 %v332
    %v334 = vpop.xlane.xlu0 %333
    %v335 = vsel %vm234, %v331, 0.0
    %336 = vadd.xlane.f32.xlu0 %v335
    %v337 = vpop.xlane.xlu0 %336
    %v338 = vadd.f32 %v334, 0.0001
    %v339 = vadd.f32 %v337, 0.0001
    %v340 = vrcp.pop %v338
    %v341 = vmul.f32 %v338, %v340
    %v342 = vsub.f32 1.0, %v341
    %v343 = vmul.f32 %v340, %v342
    %v344 = vadd.f32 %v340, %v343
    %vm345 = vweird.f32 %v338
    %vm346 = vweird.f32 %v340
    %vm347 = vmor %vm345, %vm346
    %v348 = vsel %vm347, %v340, %v344
    %v349 = vand.u32 2147483647, %v338
    %vm350 = vcmp.eq.f32.partialorder %v349, 8.507059e+37
    %v351 = vand.u32 %v338, 2147483648
    %v352 = vor.u32 1.1754944e-38, %v351
    %v353 = vsel %vm350, %v352, %v348
    %v354 = vmul.f32 %v316, %v353
    %v355 = vrcp.pop %v339
    %v356 = vmul.f32 %v339, %v355
    %v357 = vsub.f32 1.0, %v356
    %v358 = vmul.f32 %v355, %v357
    %v359 = vadd.f32 %v355, %v358
    %vm360 = vweird.f32 %v339
    %vm361 = vweird.f32 %v355
    %vm362 = vmor %vm360, %vm361
    %v363 = vsel %vm362, %v355, %v359
    %v364 = vand.u32 2147483647, %v339
    %vm365 = vcmp.eq.f32.partialorder %v364, 8.507059e+37
    %v366 = vand.u32 %v339, 2147483648
    %v367 = vor.u32 1.1754944e-38, %v366
    %v368 = vsel %vm365, %v367, %v363
    %v369 = vmul.f32 %v331, %v368
    %vm370 = vcmask 130048
    %v372 = vsel %vm370, %v257, 0
    %374 = vmatpush.msra.mxu0 0.0
    %375 = vmatpush.msra.mxu0 0.0
    %376 = vmatpush.msra.mxu0 0.0
    %377 = vmatpush.msra.mxu0 0.0
    %378 = vmatpush.msra.mxu0 0.0
    %379 = vmatpush.msra.mxu0 0.0
    %380 = vmatpush.msra.mxu0 0.0
    %381 = vmatpush.msra.mxu0 0.0
    %382 = vmatpush.msra.mxu0 0.0
    %383 = vmatpush.msra.mxu0 0.0
    %384 = vmatpush.msra.mxu0 0.0
    %385 = vmatpush.msra.mxu0 0.0
    %386 = vmatpush.msra.mxu0 0.0
    %387 = vmatpush.msra.mxu0 0.0
    %388 = vmatpush.msra.mxu0 %v63
    %389 = vmatpush.msra.mxu0 %v62
    %390 = vmatmul.f32.gmra.mxu0 %v372
    %v391 = vpop.f32.mrf.mxu0
    %v392 = vadd.f32 0.0, %v391
    %393 = vdwg.mxu0
    %v395 = vsel %vm370, %v272, 0
    %397 = vmatpush.msra.mxu0 0.0
    %398 = vmatpush.msra.mxu0 0.0
    %399 = vmatpush.msra.mxu0 0.0
    %400 = vmatpush.msra.mxu0 0.0
    %401 = vmatpush.msra.mxu0 0.0
    %402 = vmatpush.msra.mxu0 0.0
    %403 = vmatpush.msra.mxu0 0.0
    %404 = vmatpush.msra.mxu0 0.0
    %405 = vmatpush.msra.mxu0 0.0
    %406 = vmatpush.msra.mxu0 0.0
    %407 = vmatpush.msra.mxu0 0.0
    %408 = vmatpush.msra.mxu0 0.0
    %409 = vmatpush.msra.mxu0 0.0
    %410 = vmatpush.msra.mxu0 0.0
    %411 = vmatpush.msra.mxu0 %v65
    %412 = vmatpush.msra.mxu0 %v64
    %413 = vmatmul.f32.gmra.mxu0 %v395
    %v414 = vpop.f32.mrf.mxu0
    %v415 = vadd.f32 0.0, %v414
    %416 = vdwg.mxu0
    %v418 = vsel %vm370, %v392, 0
    %v421 = vsel %vm370, %v354, 0
    %423 = vmatpush.xpose.msra.mxu0 0.0
    %424 = vmatpush.xpose.msra.mxu0 0.0
    %425 = vmatpush.xpose.msra.mxu0 0.0
    %426 = vmatpush.xpose.msra.mxu0 0.0
    %427 = vmatpush.xpose.msra.mxu0 0.0
    %428 = vmatpush.xpose.msra.mxu0 0.0
    %429 = vmatpush.xpose.msra.mxu0 0.0
    %430 = vmatpush.xpose.msra.mxu0 0.0
    %431 = vmatpush.xpose.msra.mxu0 0.0
    %432 = vmatpush.xpose.msra.mxu0 0.0
    %433 = vmatpush.xpose.msra.mxu0 0.0
    %434 = vmatpush.xpose.msra.mxu0 0.0
    %435 = vmatpush.xpose.msra.mxu0 0.0
    %436 = vmatpush.xpose.msra.mxu0 0.0
    %437 = vmatpush.xpose.msra.mxu0 0.0
    %438 = vmatpush.xpose.msra.mxu0 %v421
    %439 = vmatmul.f32.gmra.mxu0 %v418
    %v440 = vpop.f32.mrf.mxu0
    %v441 = vadd.f32 0.0, %v440
    %442 = vdwg.mxu0
    %v444 = vsel %vm370, %v415, 0
    %v447 = vsel %vm370, %v369, 0
    %449 = vmatpush.xpose.msra.mxu0 0.0
    %450 = vmatpush.xpose.msra.mxu0 0.0
    %451 = vmatpush.xpose.msra.mxu0 0.0
    %452 = vmatpush.xpose.msra.mxu0 0.0
    %453 = vmatpush.xpose.msra.mxu0 0.0
    %454 = vmatpush.xpose.msra.mxu0 0.0
    %455 = vmatpush.xpose.msra.mxu0 0.0
    %456 = vmatpush.xpose.msra.mxu0 0.0
    %457 = vmatpush.xpose.msra.mxu0 0.0
    %458 = vmatpush.xpose.msra.mxu0 0.0
    %459 = vmatpush.xpose.msra.mxu0 0.0
    %460 = vmatpush.xpose.msra.mxu0 0.0
    %461 = vmatpush.xpose.msra.mxu0 0.0
    %462 = vmatpush.xpose.msra.mxu0 0.0
    %463 = vmatpush.xpose.msra.mxu0 0.0
    %464 = vmatpush.xpose.msra.mxu0 %v447
    %465 = vmatmul.f32.gmra.mxu0 %v444
    %v466 = vpop.f32.mrf.mxu0
    %v467 = vadd.f32 0.0, %v466
    %468 = vdwg.mxu0
    %v470 = vunpack.c.l.s4 1983009808
    %v471 = vunpack.c.0.s8 %v470
    %v472 = vperm.slane %v441, %v471
    %v474 = vunpack.c.l.s4 1983009808
    %v475 = vunpack.c.0.s8 %v474
    %v476 = vperm.slane %v467, %v475
    %v477 = vrot.slane %v476, 4
    %vm478 = vcmask 1047556
    %v479 = vsel %vm478, %v477, %v472
    %v480 = vrot.slane %v472, 4
    %v481 = vsel %vm478, %v476, %v480
    %v483 = vunpack.c.l.s4 1934713408
    %v484 = vunpack.c.0.s8 %v483
    %v485 = vperm.slane %v479, %v484
    %v487 = vunpack.c.l.s4 1934713408
    %v488 = vunpack.c.0.s8 %v487
    %v489 = vperm.slane %v481, %v488
    %v490 = vrot.slane %v485, 4
    %v491 = vsel %vm478, 0.0, %v490
    %v492 = vrot.slane %v489, 4
    %v493 = vsel %vm478, 0.0, %v492
    %495 = vrot.lane.b32.xlu0 %v491, 4
    %v496 = vpop.permute.xlu0 %495
    %499 = vrot.lane.b32.xlu0 %v489, 8
    %v500 = vpop.permute.xlu0 %499
    %503 = vrot.lane.b32.xlu0 %v493, 12
    %v504 = vpop.permute.xlu0 %503
    %vm506 = vcmask 31744
    %v507 = vsel %vm506, %v485, %v496
    %vm508 = vcmask 64512
    %v509 = vsel %vm508, %v507, %v500
    %vm510 = vcmask 97280
    %v511 = vsel %vm510, %v509, %v504
    %512 = vrot.lane.b32.xlu0 %v392, 112
    %v513 = vpop.permute.xlu0 %512
    %v514 = vsel %vm370, %v513, 0
    %516 = vmatpush.xpose.msra.mxu0 0.0
    %517 = vmatpush.xpose.msra.mxu0 0.0
    %518 = vmatpush.xpose.msra.mxu0 0.0
    %519 = vmatpush.xpose.msra.mxu0 0.0
    %520 = vmatpush.xpose.msra.mxu0 0.0
    %521 = vmatpush.xpose.msra.mxu0 0.0
    %522 = vmatpush.xpose.msra.mxu0 0.0
    %523 = vmatpush.xpose.msra.mxu0 0.0
    %524 = vmatpush.xpose.msra.mxu0 0.0
    %525 = vmatpush.xpose.msra.mxu0 0.0
    %526 = vmatpush.xpose.msra.mxu0 0.0
    %527 = vmatpush.xpose.msra.mxu0 0.0
    %528 = vmatpush.xpose.msra.mxu0 0.0
    %529 = vmatpush.xpose.msra.mxu0 0.0
    %530 = vmatpush.xpose.msra.mxu0 0.0
    %531 = vmatpush.xpose.msra.mxu0 %v421
    %532 = vmatmul.f32.gmra.mxu0 %v514
    %v533 = vpop.f32.mrf.mxu0
    %v534 = vadd.f32 0.0, %v533
    %535 = vdwg.mxu0
    %536 = vrot.lane.b32.xlu0 %v415, 112
    %v537 = vpop.permute.xlu0 %536
    %v538 = vsel %vm370, %v537, 0
    %540 = vmatpush.xpose.msra.mxu0 0.0
    %541 = vmatpush.xpose.msra.mxu0 0.0
    %542 = vmatpush.xpose.msra.mxu0 0.0
    %543 = vmatpush.xpose.msra.mxu0 0.0
    %544 = vmatpush.xpose.msra.mxu0 0.0
    %545 = vmatpush.xpose.msra.mxu0 0.0
    %546 = vmatpush.xpose.msra.mxu0 0.0
    %547 = vmatpush.xpose.msra.mxu0 0.0
    %548 = vmatpush.xpose.msra.mxu0 0.0
    %549 = vmatpush.xpose.msra.mxu0 0.0
    %550 = vmatpush.xpose.msra.mxu0 0.0
    %551 = vmatpush.xpose.msra.mxu0 0.0
    %552 = vmatpush.xpose.msra.mxu0 0.0
    %553 = vmatpush.xpose.msra.mxu0 0.0
    %554 = vmatpush.xpose.msra.mxu0 0.0
    %555 = vmatpush.xpose.msra.mxu0 %v447
    %556 = vmatmul.f32.gmra.mxu0 %v538
    %v557 = vpop.f32.mrf.mxu0
    %v558 = vadd.f32 0.0, %v557
    %559 = vdwg.mxu0
    %v561 = vunpack.c.l.s4 1983009808
    %v562 = vunpack.c.0.s8 %v561
    %v563 = vperm.slane %v534, %v562
    %v565 = vunpack.c.l.s4 1983009808
    %v566 = vunpack.c.0.s8 %v565
    %v567 = vperm.slane %v558, %v566
    %v568 = vrot.slane %v567, 4
    %v569 = vsel %vm478, %v568, %v563
    %v570 = vrot.slane %v563, 4
    %v571 = vsel %vm478, %v567, %v570
    %v573 = vunpack.c.l.s4 1934713408
    %v574 = vunpack.c.0.s8 %v573
    %v575 = vperm.slane %v569, %v574
    %v577 = vunpack.c.l.s4 1934713408
    %v578 = vunpack.c.0.s8 %v577
    %v579 = vperm.slane %v571, %v578
    %v580 = vrot.slane %v575, 4
    %v581 = vsel %vm478, 0.0, %v580
    %v582 = vrot.slane %v579, 4
    %v583 = vsel %vm478, 0.0, %v582
    %585 = vrot.lane.b32.xlu0 %v581, 4
    %v586 = vpop.permute.xlu0 %585
    %589 = vrot.lane.b32.xlu0 %v579, 8
    %v590 = vpop.permute.xlu0 %589
    %593 = vrot.lane.b32.xlu0 %v583, 12
    %v594 = vpop.permute.xlu0 %593
    %v596 = vsel %vm506, %v575, %v586
    %v597 = vsel %vm508, %v596, %v590
    %v598 = vsel %vm510, %v597, %v594
    %599 = vrot.lane.b32.xlu0 %v392, 96
    %v600 = vpop.permute.xlu0 %599
    %v601 = vsel %vm370, %v600, 0
    %603 = vmatpush.xpose.msra.mxu0 0.0
    %604 = vmatpush.xpose.msra.mxu0 0.0
    %605 = vmatpush.xpose.msra.mxu0 0.0
    %606 = vmatpush.xpose.msra.mxu0 0.0
    %607 = vmatpush.xpose.msra.mxu0 0.0
    %608 = vmatpush.xpose.msra.mxu0 0.0
    %609 = vmatpush.xpose.msra.mxu0 0.0
    %610 = vmatpush.xpose.msra.mxu0 0.0
    %611 = vmatpush.xpose.msra.mxu0 0.0
    %612 = vmatpush.xpose.msra.mxu0 0.0
    %613 = vmatpush.xpose.msra.mxu0 0.0
    %614 = vmatpush.xpose.msra.mxu0 0.0
    %615 = vmatpush.xpose.msra.mxu0 0.0
    %616 = vmatpush.xpose.msra.mxu0 0.0
    %617 = vmatpush.xpose.msra.mxu0 0.0
    %618 = vmatpush.xpose.msra.mxu0 %v421
    %619 = vmatmul.f32.gmra.mxu0 %v601
    %v620 = vpop.f32.mrf.mxu0
    %v621 = vadd.f32 0.0, %v620
    %622 = vdwg.mxu0
    %623 = vrot.lane.b32.xlu0 %v415, 96
    %v624 = vpop.permute.xlu0 %623
    %v625 = vsel %vm370, %v624, 0
    %627 = vmatpush.xpose.msra.mxu0 0.0
    %628 = vmatpush.xpose.msra.mxu0 0.0
    %629 = vmatpush.xpose.msra.mxu0 0.0
    %630 = vmatpush.xpose.msra.mxu0 0.0
    %631 = vmatpush.xpose.msra.mxu0 0.0
    %632 = vmatpush.xpose.msra.mxu0 0.0
    %633 = vmatpush.xpose.msra.mxu0 0.0
    %634 = vmatpush.xpose.msra.mxu0 0.0
    %635 = vmatpush.xpose.msra.mxu0 0.0
    %636 = vmatpush.xpose.msra.mxu0 0.0
    %637 = vmatpush.xpose.msra.mxu0 0.0
    %638 = vmatpush.xpose.msra.mxu0 0.0
    %639 = vmatpush.xpose.msra.mxu0 0.0
    %640 = vmatpush.xpose.msra.mxu0 0.0
    %641 = vmatpush.xpose.msra.mxu0 0.0
    %642 = vmatpush.xpose.msra.mxu0 %v447
    %643 = vmatmul.f32.gmra.mxu0 %v625
    %v644 = vpop.f32.mrf.mxu0
    %v645 = vadd.f32 0.0, %v644
    %646 = vdwg.mxu0
    %v648 = vunpack.c.l.s4 1983009808
    %v649 = vunpack.c.0.s8 %v648
    %v650 = vperm.slane %v621, %v649
    %v652 = vunpack.c.l.s4 1983009808
    %v653 = vunpack.c.0.s8 %v652
    %v654 = vperm.slane %v645, %v653
    %v655 = vrot.slane %v654, 4
    %v656 = vsel %vm478, %v655, %v650
    %v657 = vrot.slane %v650, 4
    %v658 = vsel %vm478, %v654, %v657
    %v660 = vunpack.c.l.s4 1934713408
    %v661 = vunpack.c.0.s8 %v660
    %v662 = vperm.slane %v656, %v661
    %v664 = vunpack.c.l.s4 1934713408
    %v665 = vunpack.c.0.s8 %v664
    %v666 = vperm.slane %v658, %v665
    %v667 = vrot.slane %v662, 4
    %v668 = vsel %vm478, 0.0, %v667
    %v669 = vrot.slane %v666, 4
    %v670 = vsel %vm478, 0.0, %v669
    %672 = vrot.lane.b32.xlu0 %v668, 4
    %v673 = vpop.permute.xlu0 %672
    %676 = vrot.lane.b32.xlu0 %v666, 8
    %v677 = vpop.permute.xlu0 %676
    %680 = vrot.lane.b32.xlu0 %v670, 12
    %v681 = vpop.permute.xlu0 %680
    %v683 = vsel %vm506, %v662, %v673
    %v684 = vsel %vm508, %v683, %v677
    %v685 = vsel %vm510, %v684, %v681
    %687 = vrot.lane.b32.xlu0 %v598, 16
    %v688 = vpop.permute.xlu0 %687
    %691 = vrot.lane.b32.xlu0 %v685, 32
    %v692 = vpop.permute.xlu0 %691
    %v694 = vsel %vm370, %v511, %v688
    %v695 = vsel %vm69, %v694, %v692
    %v697 = vperm.slane %v49, 0
    %vm699 = vcmask 392192
    %v701 = vsel %vm699, %v695, 0
    %703 = vmatpush.msra.mxu0 0.0
    %704 = vmatpush.msra.mxu0 0.0
    %705 = vmatpush.msra.mxu0 0.0
    %706 = vmatpush.msra.mxu0 0.0
    %707 = vmatpush.msra.mxu0 0.0
    %708 = vmatpush.msra.mxu0 0.0
    %709 = vmatpush.msra.mxu0 0.0
    %710 = vmatpush.msra.mxu0 0.0
    %711 = vmatpush.msra.mxu0 0.0
    %712 = vmatpush.msra.mxu0 0.0
    %713 = vmatpush.msra.mxu0 %v48
    %714 = vmatpush.msra.mxu0 %v47
    %715 = vmatpush.msra.mxu0 %v46
    %716 = vmatpush.msra.mxu0 %v45
    %717 = vmatpush.msra.mxu0 %v44
    %718 = vmatpush.msra.mxu0 %v43
    %719 = vmatmul.f32.gmra.mxu0 %v701
    %v720 = vpop.f32.mrf.mxu0
    %v721 = vadd.f32 %v697, %v720
    %722 = vdwg.mxu0
    %723 = vmatpush.msra.mxu0 0.0
    %724 = vmatpush.msra.mxu0 0.0
    %725 = vmatpush.msra.mxu0 0.0
    %726 = vmatpush.msra.mxu0 0.0
    %727 = vmatpush.msra.mxu0 0.0
    %728 = vmatpush.msra.mxu0 0.0
    %729 = vmatpush.msra.mxu0 0.0
    %730 = vmatpush.msra.mxu0 0.0
    %731 = vmatpush.msra.mxu0 0.0
    %732 = vmatpush.msra.mxu0 0.0
    %733 = vmatpush.msra.mxu0 0.0
    %734 = vmatpush.msra.mxu0 0.0
    %735 = vmatpush.msra.mxu0 %v53
    %736 = vmatpush.msra.mxu0 %v52
    %737 = vmatpush.msra.mxu0 %v51
    %738 = vmatpush.msra.mxu0 %v50
    %739 = vmatmul.f32.gmra.mxu0 %v71
    %v740 = vpop.f32.mrf.mxu0
    %v741 = vadd.f32 0.0, %v740
    %742 = vdwg.mxu0
    %v743 = vadd.f32 %v721, %v741
    %v745 = vperm.slane %v54, 0
    %v747 = vadd.f32 %v743, %v745
    %v748 = vtanh.pop %v747
    %v749 = vxor.u32 %v747, 2147483648
    %v750 = vmul.f32 %v749, 1.442695
    %v751 = vpow.pop %v750
    %v752 = vadd.f32 %v751, 1.0
    %v753 = vrcp.pop %v752
    %v754 = vmul.f32 %v752, %v753
    %v755 = vsub.f32 1.0, %v754
    %v756 = vmul.f32 %v753, %v755
    %v757 = vadd.f32 %v753, %v756
    %vm758 = vweird.f32 %v752
    %vm759 = vweird.f32 %v753
    %vm760 = vmor %vm758, %vm759
    %v761 = vsel %vm760, %v753, %v757
    %v762 = vand.u32 2147483647, %v752
    %vm763 = vcmp.eq.f32.partialorder %v762, 8.507059e+37
    %v764 = vand.u32 %v752, 2147483648
    %v765 = vor.u32 1.1754944e-38, %v764
    %v766 = vsel %vm763, %v765, %v761
    %v767 = vmul.f32 1.0, %v766
    %v768 = vsel %vm61, %v748, %v767
    %v769 = vmul.f32 %v768, 0.0
    %771 = vrot.lane.b32.xlu0 %v768, 64
    %v772 = vpop.permute.xlu0 %771
    %v774 = vmul.f32 %v768, %v772
    %776 = vrot.lane.b32.xlu0 %v774, 32
    %v777 = vpop.permute.xlu0 %776
    %v779 = vadd.f32 %v769, %v777
    %v780 = vtanh.pop %v779
    %782 = vrot.lane.b32.xlu0 %v780, 64
    %v783 = vpop.permute.xlu0 %782
    %v785 = vmul.f32 %v768, %v783
    %v787 = vperm.slane %v55, 0
    %788 = vrot.lane.b32.xlu0 %v787, 32
    %v789 = vpop.permute.xlu0 %788
    %v791 = vmul.f32 %v779, %v789
    %793 = vrot.lane.b32.xlu0 %v791, 96
    %v794 = vpop.permute.xlu0 %793
    %vm796 = vcmask 254976
    %v797 = vsel %vm796, %v794, 0.0
    %798 = vadd.xlane.f32.xlu0 %v797
    %v799 = vpop.xlane.xlu0 %798
    %v801 = vperm.slane %v56, 0
    %v803 = vadd.f32 %v799, %v801
    %v804 = vxor.u32 %v803, 2147483648
    %v805 = vmul.f32 %v804, 1.442695
    %v806 = vpow.pop %v805
    %v807 = vadd.f32 %v806, 1.0
    %v808 = vrcp.pop %v807
    %v809 = vmul.f32 %v807, %v808
    %v810 = vsub.f32 1.0, %v809
    %v811 = vmul.f32 %v808, %v810
    %v812 = vadd.f32 %v808, %v811
    %vm813 = vweird.f32 %v807
    %vm814 = vweird.f32 %v808
    %vm815 = vmor %vm813, %vm814
    %v816 = vsel %vm815, %v808, %v812
    %v817 = vand.u32 2147483647, %v807
    %vm818 = vcmp.eq.f32.partialorder %v817, 8.507059e+37
    %v819 = vand.u32 %v807, 2147483648
    %v820 = vor.u32 1.1754944e-38, %v819
    %v821 = vsel %vm818, %v820, %v816
    %v822 = vmul.f32 1.0, %v821
    %v823 = vadd.f32 %v779, 0.0
    %v824 = vadd.f32 %v785, 0.0
    %v825 = vadd.f32 %v822, 0.0
    %s826 = scalar_lea.vmem %s0, 32
    %v827 = vld [vmem:[%s826] sm:$0xff]
    %v828 = vld [vmem:[%s826 + $0x8] sm:$0xff]
    %v829 = vld [vmem:[%s826 + $0x10] sm:$0xff]
    %v830 = vld [vmem:[%s826 + $0x18] sm:$0xff]
    %832 = vrot.lane.b32.xlu0 %v824, 32
    %v833 = vpop.permute.xlu0 %832
    %v834 = vsel %vm69, %v833, 0
    %836 = vmatpush.msra.mxu0 0.0
    %837 = vmatpush.msra.mxu0 0.0
    %838 = vmatpush.msra.mxu0 0.0
    %839 = vmatpush.msra.mxu0 0.0
    %840 = vmatpush.msra.mxu0 0.0
    %841 = vmatpush.msra.mxu0 0.0
    %842 = vmatpush.msra.mxu0 0.0
    %843 = vmatpush.msra.mxu0 0.0
    %844 = vmatpush.msra.mxu0 0.0
    %845 = vmatpush.msra.mxu0 0.0
    %846 = vmatpush.msra.mxu0 0.0
    %847 = vmatpush.msra.mxu0 0.0
    %848 = vmatpush.msra.mxu0 %v41
    %849 = vmatpush.msra.mxu0 %v40
    %850 = vmatpush.msra.mxu0 %v39
    %851 = vmatpush.msra.mxu0 %v38
    %852 = vmatmul.f32.gmra.mxu0 %v834
    %v853 = vpop.f32.mrf.mxu0
    %v854 = vadd.f32 %v67, %v853
    %855 = vdwg.mxu0
    %v856 = vtanh.pop %v854
    %v857 = vadd.f32 %v856, 1.0
    %v858 = vmul.f32 %v857, 15.0
    %v859 = vmul.f32 %v858, %v102
    %v860 = vand.u32 2147483647, %v856
    %v861 = vsub.f32 1.0, %v860
    %v862 = vmul.f32 %v861, 4.0
    %v863 = vmul.f32 %v860, 2.0
    %v864 = vsub.f32 1.0, %v863
    %v865 = vmul.f32 %v864, 1.442695
    %v866 = vpow.pop %v865
    %868 = vset.pattern.permute.xlu0 2
    %869 = vperm.xlu0 %868, %v862
    %v870 = vpop.permute.xlu0 %869
    %v872 = vmul.f32 %v870, %v112
    %874 = vset.pattern.permute.xlu0 0
    %875 = vperm.xlu0 %874, %v859
    %v876 = vpop.permute.xlu0 %875
    %v878 = vadd.f32 %v872, %v876
    %v879 = vperm.slane %v878, 0
    %v880 = vlaneseq
    %v881 = vshrl.u32 %v880, 7
    %883 = vset.pattern.permute.xlu0 %v881
    %884 = vperm.xlu0 %883, %v879
    %v885 = vpop.permute.xlu0 %884
    %v886 = vperm.slane %v878, 1
    %v887 = vlaneseq
    %v888 = vshrl.u32 %v887, 7
    %890 = vset.pattern.permute.xlu0 %v888
    %891 = vperm.xlu0 %890, %v886
    %v892 = vpop.permute.xlu0 %891
    %v893 = vsub.f32 %v111, %v885
    %v894 = vsub.f32 %v111, %v892
    %v896 = vrot.slane %v866, 1
    %v898 = vperm.slane %v866, 0
    %v899 = vperm.slane %v896, 0
    %900 = vset.pattern.permute.xlu0 2
    %901 = vperm.xlu0 %900, %v898
    %v902 = vpop.permute.xlu0 %901
    %904 = vset.pattern.permute.xlu0 2
    %905 = vperm.xlu0 %904, %v899
    %v906 = vpop.permute.xlu0 %905
    %v908 = vrcp.pop %v902
    %v909 = vmul.f32 %v902, %v908
    %v910 = vsub.f32 1.0, %v909
    %v911 = vmul.f32 %v908, %v910
    %v912 = vadd.f32 %v908, %v911
    %vm913 = vweird.f32 %v902
    %vm914 = vweird.f32 %v908
    %vm915 = vmor %vm913, %vm914
    %v916 = vsel %vm915, %v908, %v912
    %v917 = vand.u32 2147483647, %v902
    %vm918 = vcmp.eq.f32.partialorder %v917, 8.507059e+37
    %v919 = vand.u32 %v902, 2147483648
    %v920 = vor.u32 1.1754944e-38, %v919
    %v921 = vsel %vm918, %v920, %v916
    %v922 = vmul.f32 %v893, %v921
    %v923 = vrcp.pop %v906
    %v924 = vmul.f32 %v906, %v923
    %v925 = vsub.f32 1.0, %v924
    %v926 = vmul.f32 %v923, %v925
    %v927 = vadd.f32 %v923, %v926
    %vm928 = vweird.f32 %v906
    %vm929 = vweird.f32 %v923
    %vm930 = vmor %vm928, %vm929
    %v931 = vsel %vm930, %v923, %v927
    %v932 = vand.u32 2147483647, %v906
    %vm933 = vcmp.eq.f32.partialorder %v932, 8.507059e+37
    %v934 = vand.u32 %v906, 2147483648
    %v935 = vor.u32 1.1754944e-38, %v934
    %v936 = vsel %vm933, %v935, %v931
    %v937 = vmul.f32 %v894, %v936
    %v938 = vmul.f32 %v922, %v922
    %v939 = vmul.f32 %v937, %v937
    %v940 = vadd.f32 %v938, 1.0
    %v941 = vadd.f32 %v939, 1.0
    %v942 = vmul.f32 %v866, 3.1415927
    %v943 = vmul.f32 %v896, 3.1415927
    %v946 = vperm.slane %v942, 0
    %v947 = vperm.slane %v943, 0
    %948 = vset.pattern.permute.xlu0 2
    %949 = vperm.xlu0 %948, %v946
    %v950 = vpop.permute.xlu0 %949
    %952 = vset.pattern.permute.xlu0 2
    %953 = vperm.xlu0 %952, %v947
    %v954 = vpop.permute.xlu0 %953
    %v956 = vmul.f32 %v950, %v940
    %v957 = vmul.f32 %v954, %v941
    %v958 = vrcp.pop %v956
    %v959 = vmul.f32 %v956, %v958
    %v960 = vsub.f32 1.0, %v959
    %v961 = vmul.f32 %v958, %v960
    %v962 = vadd.f32 %v958, %v961
    %vm963 = vweird.f32 %v956
    %vm964 = vweird.f32 %v958
    %vm965 = vmor %vm963, %vm964
    %v966 = vsel %vm965, %v958, %v962
    %v967 = vand.u32 2147483647, %v956
    %vm968 = vcmp.eq.f32.partialorder %v967, 8.507059e+37
    %v969 = vand.u32 %v956, 2147483648
    %v970 = vor.u32 1.1754944e-38, %v969
    %v971 = vsel %vm968, %v970, %v966
    %v972 = vmul.f32 1.0, %v971
    %v973 = vrcp.pop %v957
    %v974 = vmul.f32 %v957, %v973
    %v975 = vsub.f32 1.0, %v974
    %v976 = vmul.f32 %v973, %v975
    %v977 = vadd.f32 %v973, %v976
    %vm978 = vweird.f32 %v957
    %vm979 = vweird.f32 %v973
    %vm980 = vmor %vm978, %vm979
    %v981 = vsel %vm980, %v973, %v977
    %v982 = vand.u32 2147483647, %v957
    %vm983 = vcmp.eq.f32.partialorder %v982, 8.507059e+37
    %v984 = vand.u32 %v957, 2147483648
    %v985 = vor.u32 1.1754944e-38, %v984
    %v986 = vsel %vm983, %v985, %v981
    %v987 = vmul.f32 1.0, %v986
    %v988 = vsel %vm234, %v972, 0.0
    %989 = vadd.xlane.f32.xlu0 %v988
    %v990 = vpop.xlane.xlu0 %989
    %v991 = vsel %vm234, %v987, 0.0
    %992 = vadd.xlane.f32.xlu0 %v991
    %v993 = vpop.xlane.xlu0 %992
    %v994 = vadd.f32 %v990, 0.0001
    %v995 = vadd.f32 %v993, 0.0001
    %v996 = vrcp.pop %v994
    %v997 = vmul.f32 %v994, %v996
    %v998 = vsub.f32 1.0, %v997
    %v999 = vmul.f32 %v996, %v998
    %v1000 = vadd.f32 %v996, %v999
    %vm1001 = vweird.f32 %v994
    %vm1002 = vweird.f32 %v996
    %vm1003 = vmor %vm1001, %vm1002
    %v1004 = vsel %vm1003, %v996, %v1000
    %v1005 = vand.u32 2147483647, %v994
    %vm1006 = vcmp.eq.f32.partialorder %v1005, 8.507059e+37
    %v1007 = vand.u32 %v994, 2147483648
    %v1008 = vor.u32 1.1754944e-38, %v1007
    %v1009 = vsel %vm1006, %v1008, %v1004
    %v1010 = vmul.f32 %v972, %v1009
    %v1011 = vrcp.pop %v995
    %v1012 = vmul.f32 %v995, %v1011
    %v1013 = vsub.f32 1.0, %v1012
    %v1014 = vmul.f32 %v1011, %v1013
    %v1015 = vadd.f32 %v1011, %v1014
    %vm1016 = vweird.f32 %v995
    %vm1017 = vweird.f32 %v1011
    %vm1018 = vmor %vm1016, %vm1017
    %v1019 = vsel %vm1018, %v1011, %v1015
    %v1020 = vand.u32 2147483647, %v995
    %vm1021 = vcmp.eq.f32.partialorder %v1020, 8.507059e+37
    %v1022 = vand.u32 %v995, 2147483648
    %v1023 = vor.u32 1.1754944e-38, %v1022
    %v1024 = vsel %vm1021, %v1023, %v1019
    %v1025 = vmul.f32 %v987, %v1024
    %1026 = vset.pattern.permute.xlu0 1
    %1027 = vperm.xlu0 %1026, %v859
    %v1028 = vpop.permute.xlu0 %1027
    %v1030 = vadd.f32 %v872, %v1028
    %v1031 = vperm.slane %v1030, 0
    %v1032 = vlaneseq
    %v1033 = vshrl.u32 %v1032, 7
    %1035 = vset.pattern.permute.xlu0 %v1033
    %1036 = vperm.xlu0 %1035, %v1031
    %v1037 = vpop.permute.xlu0 %1036
    %v1038 = vperm.slane %v1030, 1
    %v1039 = vlaneseq
    %v1040 = vshrl.u32 %v1039, 7
    %1042 = vset.pattern.permute.xlu0 %v1040
    %1043 = vperm.xlu0 %1042, %v1038
    %v1044 = vpop.permute.xlu0 %1043
    %v1045 = vsub.f32 %v111, %v1037
    %v1046 = vsub.f32 %v111, %v1044
    %v1047 = vmul.f32 %v1045, %v921
    %v1048 = vmul.f32 %v1046, %v936
    %v1049 = vmul.f32 %v1047, %v1047
    %v1050 = vmul.f32 %v1048, %v1048
    %v1051 = vadd.f32 %v1049, 1.0
    %v1052 = vadd.f32 %v1050, 1.0
    %v1053 = vmul.f32 %v950, %v1051
    %v1054 = vmul.f32 %v954, %v1052
    %v1055 = vrcp.pop %v1053
    %v1056 = vmul.f32 %v1053, %v1055
    %v1057 = vsub.f32 1.0, %v1056
    %v1058 = vmul.f32 %v1055, %v1057
    %v1059 = vadd.f32 %v1055, %v1058
    %vm1060 = vweird.f32 %v1053
    %vm1061 = vweird.f32 %v1055
    %vm1062 = vmor %vm1060, %vm1061
    %v1063 = vsel %vm1062, %v1055, %v1059
    %v1064 = vand.u32 2147483647, %v1053
    %vm1065 = vcmp.eq.f32.partialorder %v1064, 8.507059e+37
    %v1066 = vand.u32 %v1053, 2147483648
    %v1067 = vor.u32 1.1754944e-38, %v1066
    %v1068 = vsel %vm1065, %v1067, %v1063
    %v1069 = vmul.f32 1.0, %v1068
    %v1070 = vrcp.pop %v1054
    %v1071 = vmul.f32 %v1054, %v1070
    %v1072 = vsub.f32 1.0, %v1071
    %v1073 = vmul.f32 %v1070, %v1072
    %v1074 = vadd.f32 %v1070, %v1073
    %vm1075 = vweird.f32 %v1054
    %vm1076 = vweird.f32 %v1070
    %vm1077 = vmor %vm1075, %vm1076
    %v1078 = vsel %vm1077, %v1070, %v1074
    %v1079 = vand.u32 2147483647, %v1054
    %vm1080 = vcmp.eq.f32.partialorder %v1079, 8.507059e+37
    %v1081 = vand.u32 %v1054, 2147483648
    %v1082 = vor.u32 1.1754944e-38, %v1081
    %v1083 = vsel %vm1080, %v1082, %v1078
    %v1084 = vmul.f32 1.0, %v1083
    %v1085 = vsel %vm234, %v1069, 0.0
    %1086 = vadd.xlane.f32.xlu0 %v1085
    %v1087 = vpop.xlane.xlu0 %1086
    %v1088 = vsel %vm234, %v1084, 0.0
    %1089 = vadd.xlane.f32.xlu0 %v1088
    %v1090 = vpop.xlane.xlu0 %1089
    %v1091 = vadd.f32 %v1087, 0.0001
    %v1092 = vadd.f32 %v1090, 0.0001
    %v1093 = vrcp.pop %v1091
    %v1094 = vmul.f32 %v1091, %v1093
    %v1095 = vsub.f32 1.0, %v1094
    %v1096 = vmul.f32 %v1093, %v1095
    %v1097 = vadd.f32 %v1093, %v1096
    %vm1098 = vweird.f32 %v1091
    %vm1099 = vweird.f32 %v1093
    %vm1100 = vmor %vm1098, %vm1099
    %v1101 = vsel %vm1100, %v1093, %v1097
    %v1102 = vand.u32 2147483647, %v1091
    %vm1103 = vcmp.eq.f32.partialorder %v1102, 8.507059e+37
    %v1104 = vand.u32 %v1091, 2147483648
    %v1105 = vor.u32 1.1754944e-38, %v1104
    %v1106 = vsel %vm1103, %v1105, %v1101
    %v1107 = vmul.f32 %v1069, %v1106
    %v1108 = vrcp.pop %v1092
    %v1109 = vmul.f32 %v1092, %v1108
    %v1110 = vsub.f32 1.0, %v1109
    %v1111 = vmul.f32 %v1108, %v1110
    %v1112 = vadd.f32 %v1108, %v1111
    %vm1113 = vweird.f32 %v1092
    %vm1114 = vweird.f32 %v1108
    %vm1115 = vmor %vm1113, %vm1114
    %v1116 = vsel %vm1115, %v1108, %v1112
    %v1117 = vand.u32 2147483647, %v1092
    %vm1118 = vcmp.eq.f32.partialorder %v1117, 8.507059e+37
    %v1119 = vand.u32 %v1092, 2147483648
    %v1120 = vor.u32 1.1754944e-38, %v1119
    %v1121 = vsel %vm1118, %v1120, %v1116
    %v1122 = vmul.f32 %v1084, %v1121
    %v1124 = vsel %vm370, %v1010, 0
    %1126 = vmatpush.msra.mxu0 0.0
    %1127 = vmatpush.msra.mxu0 0.0
    %1128 = vmatpush.msra.mxu0 0.0
    %1129 = vmatpush.msra.mxu0 0.0
    %1130 = vmatpush.msra.mxu0 0.0
    %1131 = vmatpush.msra.mxu0 0.0
    %1132 = vmatpush.msra.mxu0 0.0
    %1133 = vmatpush.msra.mxu0 0.0
    %1134 = vmatpush.msra.mxu0 0.0
    %1135 = vmatpush.msra.mxu0 0.0
    %1136 = vmatpush.msra.mxu0 0.0
    %1137 = vmatpush.msra.mxu0 0.0
    %1138 = vmatpush.msra.mxu0 0.0
    %1139 = vmatpush.msra.mxu0 0.0
    %1140 = vmatpush.msra.mxu0 %v828
    %1141 = vmatpush.msra.mxu0 %v827
    %1142 = vmatmul.f32.gmra.mxu0 %v1124
    %v1143 = vpop.f32.mrf.mxu0
    %v1144 = vadd.f32 0.0, %v1143
    %1145 = vdwg.mxu0
    %v1147 = vsel %vm370, %v1025, 0
    %1149 = vmatpush.msra.mxu0 0.0
    %1150 = vmatpush.msra.mxu0 0.0
    %1151 = vmatpush.msra.mxu0 0.0
    %1152 = vmatpush.msra.mxu0 0.0
    %1153 = vmatpush.msra.mxu0 0.0
    %1154 = vmatpush.msra.mxu0 0.0
    %1155 = vmatpush.msra.mxu0 0.0
    %1156 = vmatpush.msra.mxu0 0.0
    %1157 = vmatpush.msra.mxu0 0.0
    %1158 = vmatpush.msra.mxu0 0.0
    %1159 = vmatpush.msra.mxu0 0.0
    %1160 = vmatpush.msra.mxu0 0.0
    %1161 = vmatpush.msra.mxu0 0.0
    %1162 = vmatpush.msra.mxu0 0.0
    %1163 = vmatpush.msra.mxu0 %v830
    %1164 = vmatpush.msra.mxu0 %v829
    %1165 = vmatmul.f32.gmra.mxu0 %v1147
    %v1166 = vpop.f32.mrf.mxu0
    %v1167 = vadd.f32 0.0, %v1166
    %1168 = vdwg.mxu0
    %v1170 = vsel %vm370, %v1144, 0
    %v1173 = vsel %vm370, %v1107, 0
    %1175 = vmatpush.xpose.msra.mxu0 0.0
    %1176 = vmatpush.xpose.msra.mxu0 0.0
    %1177 = vmatpush.xpose.msra.mxu0 0.0
    %1178 = vmatpush.xpose.msra.mxu0 0.0
    %1179 = vmatpush.xpose.msra.mxu0 0.0
    %1180 = vmatpush.xpose.msra.mxu0 0.0
    %1181 = vmatpush.xpose.msra.mxu0 0.0
    %1182 = vmatpush.xpose.msra.mxu0 0.0
    %1183 = vmatpush.xpose.msra.mxu0 0.0
    %1184 = vmatpush.xpose.msra.mxu0 0.0
    %1185 = vmatpush.xpose.msra.mxu0 0.0
    %1186 = vmatpush.xpose.msra.mxu0 0.0
    %1187 = vmatpush.xpose.msra.mxu0 0.0
    %1188 = vmatpush.xpose.msra.mxu0 0.0
    %1189 = vmatpush.xpose.msra.mxu0 0.0
    %1190 = vmatpush.xpose.msra.mxu0 %v1173
    %1191 = vmatmul.f32.gmra.mxu0 %v1170
    %v1192 = vpop.f32.mrf.mxu0
    %v1193 = vadd.f32 0.0, %v1192
    %1194 = vdwg.mxu0
    %v1196 = vsel %vm370, %v1167, 0
    %v1199 = vsel %vm370, %v1122, 0
    %1201 = vmatpush.xpose.msra.mxu0 0.0
    %1202 = vmatpush.xpose.msra.mxu0 0.0
    %1203 = vmatpush.xpose.msra.mxu0 0.0
    %1204 = vmatpush.xpose.msra.mxu0 0.0
    %1205 = vmatpush.xpose.msra.mxu0 0.0
    %1206 = vmatpush.xpose.msra.mxu0 0.0
    %1207 = vmatpush.xpose.msra.mxu0 0.0
    %1208 = vmatpush.xpose.msra.mxu0 0.0
    %1209 = vmatpush.xpose.msra.mxu0 0.0
    %1210 = vmatpush.xpose.msra.mxu0 0.0
    %1211 = vmatpush.xpose.msra.mxu0 0.0
    %1212 = vmatpush.xpose.msra.mxu0 0.0
    %1213 = vmatpush.xpose.msra.mxu0 0.0
    %1214 = vmatpush.xpose.msra.mxu0 0.0
    %1215 = vmatpush.xpose.msra.mxu0 0.0
    %1216 = vmatpush.xpose.msra.mxu0 %v1199
    %1217 = vmatmul.f32.gmra.mxu0 %v1196
    %v1218 = vpop.f32.mrf.mxu0
    %v1219 = vadd.f32 0.0, %v1218
    %1220 = vdwg.mxu0
    %v1222 = vunpack.c.l.s4 1983009808
    %v1223 = vunpack.c.0.s8 %v1222
    %v1224 = vperm.slane %v1193, %v1223
    %v1226 = vunpack.c.l.s4 1983009808
    %v1227 = vunpack.c.0.s8 %v1226
    %v1228 = vperm.slane %v1219, %v1227
    %v1229 = vrot.slane %v1228, 4
    %v1230 = vsel %vm478, %v1229, %v1224
    %v1231 = vrot.slane %v1224, 4
    %v1232 = vsel %vm478, %v1228, %v1231
    %v1234 = vunpack.c.l.s4 1934713408
    %v1235 = vunpack.c.0.s8 %v1234
    %v1236 = vperm.slane %v1230, %v1235
    %v1238 = vunpack.c.l.s4 1934713408
    %v1239 = vunpack.c.0.s8 %v1238
    %v1240 = vperm.slane %v1232, %v1239
    %v1241 = vrot.slane %v1236, 4
    %v1242 = vsel %vm478, 0.0, %v1241
    %v1243 = vrot.slane %v1240, 4
    %v1244 = vsel %vm478, 0.0, %v1243
    %1246 = vrot.lane.b32.xlu0 %v1242, 4
    %v1247 = vpop.permute.xlu0 %1246
    %1250 = vrot.lane.b32.xlu0 %v1240, 8
    %v1251 = vpop.permute.xlu0 %1250
    %1254 = vrot.lane.b32.xlu0 %v1244, 12
    %v1255 = vpop.permute.xlu0 %1254
    %v1257 = vsel %vm506, %v1236, %v1247
    %v1258 = vsel %vm508, %v1257, %v1251
    %v1259 = vsel %vm510, %v1258, %v1255
    %1260 = vrot.lane.b32.xlu0 %v1144, 112
    %v1261 = vpop.permute.xlu0 %1260
    %v1262 = vsel %vm370, %v1261, 0
    %1264 = vmatpush.xpose.msra.mxu0 0.0
    %1265 = vmatpush.xpose.msra.mxu0 0.0
    %1266 = vmatpush.xpose.msra.mxu0 0.0
    %1267 = vmatpush.xpose.msra.mxu0 0.0
    %1268 = vmatpush.xpose.msra.mxu0 0.0
    %1269 = vmatpush.xpose.msra.mxu0 0.0
    %1270 = vmatpush.xpose.msra.mxu0 0.0
    %1271 = vmatpush.xpose.msra.mxu0 0.0
    %1272 = vmatpush.xpose.msra.mxu0 0.0
    %1273 = vmatpush.xpose.msra.mxu0 0.0
    %1274 = vmatpush.xpose.msra.mxu0 0.0
    %1275 = vmatpush.xpose.msra.mxu0 0.0
    %1276 = vmatpush.xpose.msra.mxu0 0.0
    %1277 = vmatpush.xpose.msra.mxu0 0.0
    %1278 = vmatpush.xpose.msra.mxu0 0.0
    %1279 = vmatpush.xpose.msra.mxu0 %v1173
    %1280 = vmatmul.f32.gmra.mxu0 %v1262
    %v1281 = vpop.f32.mrf.mxu0
    %v1282 = vadd.f32 0.0, %v1281
    %1283 = vdwg.mxu0
    %1284 = vrot.lane.b32.xlu0 %v1167, 112
    %v1285 = vpop.permute.xlu0 %1284
    %v1286 = vsel %vm370, %v1285, 0
    %1288 = vmatpush.xpose.msra.mxu0 0.0
    %1289 = vmatpush.xpose.msra.mxu0 0.0
    %1290 = vmatpush.xpose.msra.mxu0 0.0
    %1291 = vmatpush.xpose.msra.mxu0 0.0
    %1292 = vmatpush.xpose.msra.mxu0 0.0
    %1293 = vmatpush.xpose.msra.mxu0 0.0
    %1294 = vmatpush.xpose.msra.mxu0 0.0
    %1295 = vmatpush.xpose.msra.mxu0 0.0
    %1296 = vmatpush.xpose.msra.mxu0 0.0
    %1297 = vmatpush.xpose.msra.mxu0 0.0
    %1298 = vmatpush.xpose.msra.mxu0 0.0
    %1299 = vmatpush.xpose.msra.mxu0 0.0
    %1300 = vmatpush.xpose.msra.mxu0 0.0
    %1301 = vmatpush.xpose.msra.mxu0 0.0
    %1302 = vmatpush.xpose.msra.mxu0 0.0
    %1303 = vmatpush.xpose.msra.mxu0 %v1199
    %1304 = vmatmul.f32.gmra.mxu0 %v1286
    %v1305 = vpop.f32.mrf.mxu0
    %v1306 = vadd.f32 0.0, %v1305
    %1307 = vdwg.mxu0
    %v1309 = vunpack.c.l.s4 1983009808
    %v1310 = vunpack.c.0.s8 %v1309
    %v1311 = vperm.slane %v1282, %v1310
    %v1313 = vunpack.c.l.s4 1983009808
    %v1314 = vunpack.c.0.s8 %v1313
    %v1315 = vperm.slane %v1306, %v1314
    %v1316 = vrot.slane %v1315, 4
    %v1317 = vsel %vm478, %v1316, %v1311
    %v1318 = vrot.slane %v1311, 4
    %v1319 = vsel %vm478, %v1315, %v1318
    %v1321 = vunpack.c.l.s4 1934713408
    %v1322 = vunpack.c.0.s8 %v1321
    %v1323 = vperm.slane %v1317, %v1322
    %v1325 = vunpack.c.l.s4 1934713408
    %v1326 = vunpack.c.0.s8 %v1325
    %v1327 = vperm.slane %v1319, %v1326
    %v1328 = vrot.slane %v1323, 4
    %v1329 = vsel %vm478, 0.0, %v1328
    %v1330 = vrot.slane %v1327, 4
    %v1331 = vsel %vm478, 0.0, %v1330
    %1333 = vrot.lane.b32.xlu0 %v1329, 4
    %v1334 = vpop.permute.xlu0 %1333
    %1337 = vrot.lane.b32.xlu0 %v1327, 8
    %v1338 = vpop.permute.xlu0 %1337
    %1341 = vrot.lane.b32.xlu0 %v1331, 12
    %v1342 = vpop.permute.xlu0 %1341
    %v1344 = vsel %vm506, %v1323, %v1334
    %v1345 = vsel %vm508, %v1344, %v1338
    %v1346 = vsel %vm510, %v1345, %v1342
    %1347 = vrot.lane.b32.xlu0 %v1144, 96
    %v1348 = vpop.permute.xlu0 %1347
    %v1349 = vsel %vm370, %v1348, 0
    %1351 = vmatpush.xpose.msra.mxu0 0.0
    %1352 = vmatpush.xpose.msra.mxu0 0.0
    %1353 = vmatpush.xpose.msra.mxu0 0.0
    %1354 = vmatpush.xpose.msra.mxu0 0.0
    %1355 = vmatpush.xpose.msra.mxu0 0.0
    %1356 = vmatpush.xpose.msra.mxu0 0.0
    %1357 = vmatpush.xpose.msra.mxu0 0.0
    %1358 = vmatpush.xpose.msra.mxu0 0.0
    %1359 = vmatpush.xpose.msra.mxu0 0.0
    %1360 = vmatpush.xpose.msra.mxu0 0.0
    %1361 = vmatpush.xpose.msra.mxu0 0.0
    %1362 = vmatpush.xpose.msra.mxu0 0.0
    %1363 = vmatpush.xpose.msra.mxu0 0.0
    %1364 = vmatpush.xpose.msra.mxu0 0.0
    %1365 = vmatpush.xpose.msra.mxu0 0.0
    %1366 = vmatpush.xpose.msra.mxu0 %v1173
    %1367 = vmatmul.f32.gmra.mxu0 %v1349
    %v1368 = vpop.f32.mrf.mxu0
    %v1369 = vadd.f32 0.0, %v1368
    %1370 = vdwg.mxu0
    %1371 = vrot.lane.b32.xlu0 %v1167, 96
    %v1372 = vpop.permute.xlu0 %1371
    %v1373 = vsel %vm370, %v1372, 0
    %1375 = vmatpush.xpose.msra.mxu0 0.0
    %1376 = vmatpush.xpose.msra.mxu0 0.0
    %1377 = vmatpush.xpose.msra.mxu0 0.0
    %1378 = vmatpush.xpose.msra.mxu0 0.0
    %1379 = vmatpush.xpose.msra.mxu0 0.0
    %1380 = vmatpush.xpose.msra.mxu0 0.0
    %1381 = vmatpush.xpose.msra.mxu0 0.0
    %1382 = vmatpush.xpose.msra.mxu0 0.0
    %1383 = vmatpush.xpose.msra.mxu0 0.0
    %1384 = vmatpush.xpose.msra.mxu0 0.0
    %1385 = vmatpush.xpose.msra.mxu0 0.0
    %1386 = vmatpush.xpose.msra.mxu0 0.0
    %1387 = vmatpush.xpose.msra.mxu0 0.0
    %1388 = vmatpush.xpose.msra.mxu0 0.0
    %1389 = vmatpush.xpose.msra.mxu0 0.0
    %1390 = vmatpush.xpose.msra.mxu0 %v1199
    %1391 = vmatmul.f32.gmra.mxu0 %v1373
    %v1392 = vpop.f32.mrf.mxu0
    %v1393 = vadd.f32 0.0, %v1392
    %1394 = vdwg.mxu0
    %v1396 = vunpack.c.l.s4 1983009808
    %v1397 = vunpack.c.0.s8 %v1396
    %v1398 = vperm.slane %v1369, %v1397
    %v1400 = vunpack.c.l.s4 1983009808
    %v1401 = vunpack.c.0.s8 %v1400
    %v1402 = vperm.slane %v1393, %v1401
    %v1403 = vrot.slane %v1402, 4
    %v1404 = vsel %vm478, %v1403, %v1398
    %v1405 = vrot.slane %v1398, 4
    %v1406 = vsel %vm478, %v1402, %v1405
    %v1408 = vunpack.c.l.s4 1934713408
    %v1409 = vunpack.c.0.s8 %v1408
    %v1410 = vperm.slane %v1404, %v1409
    %v1412 = vunpack.c.l.s4 1934713408
    %v1413 = vunpack.c.0.s8 %v1412
    %v1414 = vperm.slane %v1406, %v1413
    %v1415 = vrot.slane %v1410, 4
    %v1416 = vsel %vm478, 0.0, %v1415
    %v1417 = vrot.slane %v1414, 4
    %v1418 = vsel %vm478, 0.0, %v1417
    %1420 = vrot.lane.b32.xlu0 %v1416, 4
    %v1421 = vpop.permute.xlu0 %1420
    %1424 = vrot.lane.b32.xlu0 %v1414, 8
    %v1425 = vpop.permute.xlu0 %1424
    %1428 = vrot.lane.b32.xlu0 %v1418, 12
    %v1429 = vpop.permute.xlu0 %1428
    %v1431 = vsel %vm506, %v1410, %v1421
    %v1432 = vsel %vm508, %v1431, %v1425
    %v1433 = vsel %vm510, %v1432, %v1429
    %1435 = vrot.lane.b32.xlu0 %v1346, 16
    %v1436 = vpop.permute.xlu0 %1435
    %1439 = vrot.lane.b32.xlu0 %v1433, 32
    %v1440 = vpop.permute.xlu0 %1439
    %v1442 = vsel %vm370, %v1259, %v1436
    %v1443 = vsel %vm69, %v1442, %v1440
    %v1445 = vsel %vm699, %v1443, 0
    %1447 = vmatpush.msra.mxu0 0.0
    %1448 = vmatpush.msra.mxu0 0.0
    %1449 = vmatpush.msra.mxu0 0.0
    %1450 = vmatpush.msra.mxu0 0.0
    %1451 = vmatpush.msra.mxu0 0.0
    %1452 = vmatpush.msra.mxu0 0.0
    %1453 = vmatpush.msra.mxu0 0.0
    %1454 = vmatpush.msra.mxu0 0.0
    %1455 = vmatpush.msra.mxu0 0.0
    %1456 = vmatpush.msra.mxu0 0.0
    %1457 = vmatpush.msra.mxu0 %v48
    %1458 = vmatpush.msra.mxu0 %v47
    %1459 = vmatpush.msra.mxu0 %v46
    %1460 = vmatpush.msra.mxu0 %v45
    %1461 = vmatpush.msra.mxu0 %v44
    %1462 = vmatpush.msra.mxu0 %v43
    %1463 = vmatmul.f32.gmra.mxu0 %v1445
    %v1464 = vpop.f32.mrf.mxu0
    %v1465 = vadd.f32 %v697, %v1464
    %1466 = vdwg.mxu0
    %1467 = vmatpush.msra.mxu0 0.0
    %1468 = vmatpush.msra.mxu0 0.0
    %1469 = vmatpush.msra.mxu0 0.0
    %1470 = vmatpush.msra.mxu0 0.0
    %1471 = vmatpush.msra.mxu0 0.0
    %1472 = vmatpush.msra.mxu0 0.0
    %1473 = vmatpush.msra.mxu0 0.0
    %1474 = vmatpush.msra.mxu0 0.0
    %1475 = vmatpush.msra.mxu0 0.0
    %1476 = vmatpush.msra.mxu0 0.0
    %1477 = vmatpush.msra.mxu0 0.0
    %1478 = vmatpush.msra.mxu0 0.0
    %1479 = vmatpush.msra.mxu0 %v53
    %1480 = vmatpush.msra.mxu0 %v52
    %1481 = vmatpush.msra.mxu0 %v51
    %1482 = vmatpush.msra.mxu0 %v50
    %1483 = vmatmul.f32.gmra.mxu0 %v834
    %v1484 = vpop.f32.mrf.mxu0
    %v1485 = vadd.f32 0.0, %v1484
    %1486 = vdwg.mxu0
    %v1487 = vadd.f32 %v721, %v1485
    %v1488 = vadd.f32 %v1487, %v745
    %v1489 = vtanh.pop %v1488
    %v1490 = vxor.u32 %v1488, 2147483648
    %v1491 = vmul.f32 %v1490, 1.442695
    %v1492 = vpow.pop %v1491
    %v1493 = vadd.f32 %v1492, 1.0
    %v1494 = vrcp.pop %v1493
    %v1495 = vmul.f32 %v1493, %v1494
    %v1496 = vsub.f32 1.0, %v1495
    %v1497 = vmul.f32 %v1494, %v1496
    %v1498 = vadd.f32 %v1494, %v1497
    %vm1499 = vweird.f32 %v1493
    %vm1500 = vweird.f32 %v1494
    %vm1501 = vmor %vm1499, %vm1500
    %v1502 = vsel %vm1501, %v1494, %v1498
    %v1503 = vand.u32 2147483647, %v1493
    %vm1504 = vcmp.eq.f32.partialorder %v1503, 8.507059e+37
    %v1505 = vand.u32 %v1493, 2147483648
    %v1506 = vor.u32 1.1754944e-38, %v1505
    %v1507 = vsel %vm1504, %v1506, %v1502
    %v1508 = vmul.f32 1.0, %v1507
    %v1509 = vsel %vm61, %v1489, %v1508
    %v1510 = vmul.f32 %v1509, %v823
    %1512 = vrot.lane.b32.xlu0 %v1509, 64
    %v1513 = vpop.permute.xlu0 %1512
    %v1515 = vmul.f32 %v1509, %v1513
    %1517 = vrot.lane.b32.xlu0 %v1515, 32
    %v1518 = vpop.permute.xlu0 %1517
    %v1520 = vadd.f32 %v1510, %v1518
    %v1521 = vtanh.pop %v1520
    %1523 = vrot.lane.b32.xlu0 %v1521, 64
    %v1524 = vpop.permute.xlu0 %1523
    %v1526 = vmul.f32 %v1509, %v1524
    %v1527 = vmul.f32 %v1520, %v789
    %1529 = vrot.lane.b32.xlu0 %v1527, 96
    %v1530 = vpop.permute.xlu0 %1529
    %v1532 = vsel %vm796, %v1530, 0.0
    %1533 = vadd.xlane.f32.xlu0 %v1532
    %v1534 = vpop.xlane.xlu0 %1533
    %v1535 = vadd.f32 %v1534, %v801
    %v1536 = vxor.u32 %v1535, 2147483648
    %v1537 = vmul.f32 %v1536, 1.442695
    %v1538 = vpow.pop %v1537
    %v1539 = vadd.f32 %v1538, 1.0
    %v1540 = vrcp.pop %v1539
    %v1541 = vmul.f32 %v1539, %v1540
    %v1542 = vsub.f32 1.0, %v1541
    %v1543 = vmul.f32 %v1540, %v1542
    %v1544 = vadd.f32 %v1540, %v1543
    %vm1545 = vweird.f32 %v1539
    %vm1546 = vweird.f32 %v1540
    %vm1547 = vmor %vm1545, %vm1546
    %v1548 = vsel %vm1547, %v1540, %v1544
    %v1549 = vand.u32 2147483647, %v1539
    %vm1550 = vcmp.eq.f32.partialorder %v1549, 8.507059e+37
    %v1551 = vand.u32 %v1539, 2147483648
    %v1552 = vor.u32 1.1754944e-38, %v1551
    %v1553 = vsel %vm1550, %v1552, %v1548
    %v1554 = vmul.f32 1.0, %v1553
    %v1555 = vmin.f32 %v825, 1.0
    %v1556 = vadd.f32 %v1555, 0.0
    %v1557 = vround.ne.pseudo %v1556
    %1559 = vset.pattern.permute.xlu0 0
    %1560 = vperm.xlu0 %1559, %v1557
    %v1561 = vpop.permute.xlu0 %1560
    %v1563 = vmul.f32 %v1561, %v1520
    %v1564 = vsub.f32 1.0, %v1557
    %1566 = vset.pattern.permute.xlu0 0
    %1567 = vperm.xlu0 %1566, %v1564
    %v1568 = vpop.permute.xlu0 %1567
    %v1570 = vmul.f32 %v1568, %v823
    %v1571 = vadd.f32 %v1563, %v1570
    %v1572 = vmul.f32 %v1561, %v1526
    %v1573 = vmul.f32 %v1568, %v824
    %v1574 = vadd.f32 %v1572, %v1573
    %v1575 = vmul.f32 %v1557, %v1554
    %v1576 = vmul.f32 %v1564, %v825
    %v1577 = vadd.f32 %v1575, %v1576
    %v1578 = vmul.f32 %v1564, %v1556
    %1580 = vrot.lane.b32.xlu0 %v1574, 32
    %v1581 = vpop.permute.xlu0 %1580
    %v1582 = vsel %vm69, %v1581, 0
    %1584 = vmatpush.msra.mxu0 0.0
    %1585 = vmatpush.msra.mxu0 0.0
    %1586 = vmatpush.msra.mxu0 0.0
    %1587 = vmatpush.msra.mxu0 0.0
    %1588 = vmatpush.msra.mxu0 0.0
    %1589 = vmatpush.msra.mxu0 0.0
    %1590 = vmatpush.msra.mxu0 0.0
    %1591 = vmatpush.msra.mxu0 0.0
    %1592 = vmatpush.msra.mxu0 0.0
    %1593 = vmatpush.msra.mxu0 0.0
    %1594 = vmatpush.msra.mxu0 0.0
    %1595 = vmatpush.msra.mxu0 0.0
    %1596 = vmatpush.msra.mxu0 %v53
    %1597 = vmatpush.msra.mxu0 %v52
    %1598 = vmatpush.msra.mxu0 %v51
    %1599 = vmatpush.msra.mxu0 %v50
    %1600 = vmatmul.f32.gmra.mxu0 %v1582
    %v1601 = vpop.f32.mrf.mxu0
    %v1602 = vadd.f32 0.0, %v1601
    %1603 = vdwg.mxu0
    %v1604 = vadd.f32 %v1465, %v1602
    %v1605 = vadd.f32 %v1604, %v745
    %v1606 = vtanh.pop %v1605
    %v1607 = vxor.u32 %v1605, 2147483648
    %v1608 = vmul.f32 %v1607, 1.442695
    %v1609 = vpow.pop %v1608
    %v1610 = vadd.f32 %v1609, 1.0
    %v1611 = vrcp.pop %v1610
    %v1612 = vmul.f32 %v1610, %v1611
    %v1613 = vsub.f32 1.0, %v1612
    %v1614 = vmul.f32 %v1611, %v1613
    %v1615 = vadd.f32 %v1611, %v1614
    %vm1616 = vweird.f32 %v1610
    %vm1617 = vweird.f32 %v1611
    %vm1618 = vmor %vm1616, %vm1617
    %v1619 = vsel %vm1618, %v1611, %v1615
    %v1620 = vand.u32 2147483647, %v1610
    %vm1621 = vcmp.eq.f32.partialorder %v1620, 8.507059e+37
    %v1622 = vand.u32 %v1610, 2147483648
    %v1623 = vor.u32 1.1754944e-38, %v1622
    %v1624 = vsel %vm1621, %v1623, %v1619
    %v1625 = vmul.f32 1.0, %v1624
    %v1626 = vsel %vm61, %v1606, %v1625
    %v1627 = vmul.f32 %v1626, %v1571
    %1629 = vrot.lane.b32.xlu0 %v1626, 64
    %v1630 = vpop.permute.xlu0 %1629
    %v1632 = vmul.f32 %v1626, %v1630
    %1634 = vrot.lane.b32.xlu0 %v1632, 32
    %v1635 = vpop.permute.xlu0 %1634
    %v1637 = vadd.f32 %v1627, %v1635
    %v1638 = vtanh.pop %v1637
    %1640 = vrot.lane.b32.xlu0 %v1638, 64
    %v1641 = vpop.permute.xlu0 %1640
    %v1643 = vmul.f32 %v1626, %v1641
    %v1644 = vmul.f32 %v1637, %v789
    %1646 = vrot.lane.b32.xlu0 %v1644, 96
    %v1647 = vpop.permute.xlu0 %1646
    %v1649 = vsel %vm796, %v1647, 0.0
    %1650 = vadd.xlane.f32.xlu0 %v1649
    %v1651 = vpop.xlane.xlu0 %1650
    %v1652 = vadd.f32 %v1651, %v801
    %v1653 = vxor.u32 %v1652, 2147483648
    %v1654 = vmul.f32 %v1653, 1.442695
    %v1655 = vpow.pop %v1654
    %v1656 = vadd.f32 %v1655, 1.0
    %v1657 = vrcp.pop %v1656
    %v1658 = vmul.f32 %v1656, %v1657
    %v1659 = vsub.f32 1.0, %v1658
    %v1660 = vmul.f32 %v1657, %v1659
    %v1661 = vadd.f32 %v1657, %v1660
    %vm1662 = vweird.f32 %v1656
    %vm1663 = vweird.f32 %v1657
    %vm1664 = vmor %vm1662, %vm1663
    %v1665 = vsel %vm1664, %v1657, %v1661
    %v1666 = vand.u32 2147483647, %v1656
    %vm1667 = vcmp.eq.f32.partialorder %v1666, 8.507059e+37
    %v1668 = vand.u32 %v1656, 2147483648
    %v1669 = vor.u32 1.1754944e-38, %v1668
    %v1670 = vsel %vm1667, %v1669, %v1665
    %v1671 = vmul.f32 1.0, %v1670
    %v1672 = vsub.f32 1.0, %v1578
    %v1673 = vmin.f32 %v1577, %v1672
    %v1674 = vadd.f32 %v1578, %v1673
    %v1675 = vround.ne.pseudo %v1674
    %1677 = vset.pattern.permute.xlu0 0
    %1678 = vperm.xlu0 %1677, %v1675
    %v1679 = vpop.permute.xlu0 %1678
    %v1681 = vmul.f32 %v1679, %v1637
    %v1682 = vsub.f32 1.0, %v1675
    %1684 = vset.pattern.permute.xlu0 0
    %1685 = vperm.xlu0 %1684, %v1682
    %v1686 = vpop.permute.xlu0 %1685
    %v1688 = vmul.f32 %v1686, %v1571
    %v1689 = vadd.f32 %v1681, %v1688
    %v1690 = vmul.f32 %v1679, %v1643
    %v1691 = vmul.f32 %v1686, %v1574
    %v1692 = vadd.f32 %v1690, %v1691
    %v1693 = vmul.f32 %v1675, %v1671
    %v1694 = vmul.f32 %v1682, %v1577
    %v1695 = vadd.f32 %v1693, %v1694
    %v1696 = vmul.f32 %v1682, %v1674
    %v1697 = vld [vmem:[%s0] sm:$0xff]
    %v1698 = vld [vmem:[%s0 + $0x8] sm:$0xff]
    %v1699 = vld [vmem:[%s0 + $0x10] sm:$0xff]
    %v1700 = vld [vmem:[%s0 + $0x18] sm:$0xff]
    %1702 = vrot.lane.b32.xlu0 %v1692, 32
    %v1703 = vpop.permute.xlu0 %1702
    %v1704 = vsel %vm69, %v1703, 0
    %1706 = vmatpush.msra.mxu0 0.0
    %1707 = vmatpush.msra.mxu0 0.0
    %1708 = vmatpush.msra.mxu0 0.0
    %1709 = vmatpush.msra.mxu0 0.0
    %1710 = vmatpush.msra.mxu0 0.0
    %1711 = vmatpush.msra.mxu0 0.0
    %1712 = vmatpush.msra.mxu0 0.0
    %1713 = vmatpush.msra.mxu0 0.0
    %1714 = vmatpush.msra.mxu0 0.0
    %1715 = vmatpush.msra.mxu0 0.0
    %1716 = vmatpush.msra.mxu0 0.0
    %1717 = vmatpush.msra.mxu0 0.0
    %1718 = vmatpush.msra.mxu0 %v41
    %1719 = vmatpush.msra.mxu0 %v40
    %1720 = vmatpush.msra.mxu0 %v39
    %1721 = vmatpush.msra.mxu0 %v38
    %1722 = vmatmul.f32.gmra.mxu0 %v1704
    %v1723 = vpop.f32.mrf.mxu0
    %v1724 = vadd.f32 %v67, %v1723
    %1725 = vdwg.mxu0
    %v1726 = vtanh.pop %v1724
    %v1727 = vadd.f32 %v1726, 1.0
    %v1728 = vmul.f32 %v1727, 15.0
    %v1729 = vmul.f32 %v1728, %v102
    %v1730 = vand.u32 2147483647, %v1726
    %v1731 = vsub.f32 1.0, %v1730
    %v1732 = vmul.f32 %v1731, 4.0
    %v1733 = vmul.f32 %v1730, 2.0
    %v1734 = vsub.f32 1.0, %v1733
    %v1735 = vmul.f32 %v1734, 1.442695
    %v1736 = vpow.pop %v1735
    %1738 = vset.pattern.permute.xlu0 2
    %1739 = vperm.xlu0 %1738, %v1732
    %v1740 = vpop.permute.xlu0 %1739
    %v1742 = vmul.f32 %v1740, %v112
    %1744 = vset.pattern.permute.xlu0 0
    %1745 = vperm.xlu0 %1744, %v1729
    %v1746 = vpop.permute.xlu0 %1745
    %v1748 = vadd.f32 %v1742, %v1746
    %v1749 = vperm.slane %v1748, 0
    %v1750 = vlaneseq
    %v1751 = vshrl.u32 %v1750, 7
    %1753 = vset.pattern.permute.xlu0 %v1751
    %1754 = vperm.xlu0 %1753, %v1749
    %v1755 = vpop.permute.xlu0 %1754
    %v1756 = vperm.slane %v1748, 1
    %v1757 = vlaneseq
    %v1758 = vshrl.u32 %v1757, 7
    %1760 = vset.pattern.permute.xlu0 %v1758
    %1761 = vperm.xlu0 %1760, %v1756
    %v1762 = vpop.permute.xlu0 %1761
    %v1763 = vsub.f32 %v111, %v1755
    %v1764 = vsub.f32 %v111, %v1762
    %v1766 = vrot.slane %v1736, 1
    %v1768 = vperm.slane %v1736, 0
    %v1769 = vperm.slane %v1766, 0
    %1770 = vset.pattern.permute.xlu0 2
    %1771 = vperm.xlu0 %1770, %v1768
    %v1772 = vpop.permute.xlu0 %1771
    %1774 = vset.pattern.permute.xlu0 2
    %1775 = vperm.xlu0 %1774, %v1769
    %v1776 = vpop.permute.xlu0 %1775
    %v1778 = vrcp.pop %v1772
    %v1779 = vmul.f32 %v1772, %v1778
    %v1780 = vsub.f32 1.0, %v1779
    %v1781 = vmul.f32 %v1778, %v1780
    %v1782 = vadd.f32 %v1778, %v1781
    %vm1783 = vweird.f32 %v1772
    %vm1784 = vweird.f32 %v1778
    %vm1785 = vmor %vm1783, %vm1784
    %v1786 = vsel %vm1785, %v1778, %v1782
    %v1787 = vand.u32 2147483647, %v1772
    %vm1788 = vcmp.eq.f32.partialorder %v1787, 8.507059e+37
    %v1789 = vand.u32 %v1772, 2147483648
    %v1790 = vor.u32 1.1754944e-38, %v1789
    %v1791 = vsel %vm1788, %v1790, %v1786
    %v1792 = vmul.f32 %v1763, %v1791
    %v1793 = vrcp.pop %v1776
    %v1794 = vmul.f32 %v1776, %v1793
    %v1795 = vsub.f32 1.0, %v1794
    %v1796 = vmul.f32 %v1793, %v1795
    %v1797 = vadd.f32 %v1793, %v1796
    %vm1798 = vweird.f32 %v1776
    %vm1799 = vweird.f32 %v1793
    %vm1800 = vmor %vm1798, %vm1799
    %v1801 = vsel %vm1800, %v1793, %v1797
    %v1802 = vand.u32 2147483647, %v1776
    %vm1803 = vcmp.eq.f32.partialorder %v1802, 8.507059e+37
    %v1804 = vand.u32 %v1776, 2147483648
    %v1805 = vor.u32 1.1754944e-38, %v1804
    %v1806 = vsel %vm1803, %v1805, %v1801
    %v1807 = vmul.f32 %v1764, %v1806
    %v1808 = vmul.f32 %v1792, %v1792
    %v1809 = vmul.f32 %v1807, %v1807
    %v1810 = vadd.f32 %v1808, 1.0
    %v1811 = vadd.f32 %v1809, 1.0
    %v1812 = vmul.f32 %v1736, 3.1415927
    %v1813 = vmul.f32 %v1766, 3.1415927
    %v1816 = vperm.slane %v1812, 0
    %v1817 = vperm.slane %v1813, 0
    %1818 = vset.pattern.permute.xlu0 2
    %1819 = vperm.xlu0 %1818, %v1816
    %v1820 = vpop.permute.xlu0 %1819
    %1822 = vset.pattern.permute.xlu0 2
    %1823 = vperm.xlu0 %1822, %v1817
    %v1824 = vpop.permute.xlu0 %1823
    %v1826 = vmul.f32 %v1820, %v1810
    %v1827 = vmul.f32 %v1824, %v1811
    %v1828 = vrcp.pop %v1826
    %v1829 = vmul.f32 %v1826, %v1828
    %v1830 = vsub.f32 1.0, %v1829
    %v1831 = vmul.f32 %v1828, %v1830
    %v1832 = vadd.f32 %v1828, %v1831
    %vm1833 = vweird.f32 %v1826
    %vm1834 = vweird.f32 %v1828
    %vm1835 = vmor %vm1833, %vm1834
    %v1836 = vsel %vm1835, %v1828, %v1832
    %v1837 = vand.u32 2147483647, %v1826
    %vm1838 = vcmp.eq.f32.partialorder %v1837, 8.507059e+37
    %v1839 = vand.u32 %v1826, 2147483648
    %v1840 = vor.u32 1.1754944e-38, %v1839
    %v1841 = vsel %vm1838, %v1840, %v1836
    %v1842 = vmul.f32 1.0, %v1841
    %v1843 = vrcp.pop %v1827
    %v1844 = vmul.f32 %v1827, %v1843
    %v1845 = vsub.f32 1.0, %v1844
    %v1846 = vmul.f32 %v1843, %v1845
    %v1847 = vadd.f32 %v1843, %v1846
    %vm1848 = vweird.f32 %v1827
    %vm1849 = vweird.f32 %v1843
    %vm1850 = vmor %vm1848, %vm1849
    %v1851 = vsel %vm1850, %v1843, %v1847
    %v1852 = vand.u32 2147483647, %v1827
    %vm1853 = vcmp.eq.f32.partialorder %v1852, 8.507059e+37
    %v1854 = vand.u32 %v1827, 2147483648
    %v1855 = vor.u32 1.1754944e-38, %v1854
    %v1856 = vsel %vm1853, %v1855, %v1851
    %v1857 = vmul.f32 1.0, %v1856
    %v1858 = vsel %vm234, %v1842, 0.0
    %1859 = vadd.xlane.f32.xlu0 %v1858
    %v1860 = vpop.xlane.xlu0 %1859
    %v1861 = vsel %vm234, %v1857, 0.0
    %1862 = vadd.xlane.f32.xlu0 %v1861
    %v1863 = vpop.xlane.xlu0 %1862
    %v1864 = vadd.f32 %v1860, 0.0001
    %v1865 = vadd.f32 %v1863, 0.0001
    %v1866 = vrcp.pop %v1864
    %v1867 = vmul.f32 %v1864, %v1866
    %v1868 = vsub.f32 1.0, %v1867
    %v1869 = vmul.f32 %v1866, %v1868
    %v1870 = vadd.f32 %v1866, %v1869
    %vm1871 = vweird.f32 %v1864
    %vm1872 = vweird.f32 %v1866
    %vm1873 = vmor %vm1871, %vm1872
    %v1874 = vsel %vm1873, %v1866, %v1870
    %v1875 = vand.u32 2147483647, %v1864
    %vm1876 = vcmp.eq.f32.partialorder %v1875, 8.507059e+37
    %v1877 = vand.u32 %v1864, 2147483648
    %v1878 = vor.u32 1.1754944e-38, %v1877
    %v1879 = vsel %vm1876, %v1878, %v1874
    %v1880 = vmul.f32 %v1842, %v1879
    %v1881 = vrcp.pop %v1865
    %v1882 = vmul.f32 %v1865, %v1881
    %v1883 = vsub.f32 1.0, %v1882
    %v1884 = vmul.f32 %v1881, %v1883
    %v1885 = vadd.f32 %v1881, %v1884
    %vm1886 = vweird.f32 %v1865
    %vm1887 = vweird.f32 %v1881
    %vm1888 = vmor %vm1886, %vm1887
    %v1889 = vsel %vm1888, %v1881, %v1885
    %v1890 = vand.u32 2147483647, %v1865
    %vm1891 = vcmp.eq.f32.partialorder %v1890, 8.507059e+37
    %v1892 = vand.u32 %v1865, 2147483648
    %v1893 = vor.u32 1.1754944e-38, %v1892
    %v1894 = vsel %vm1891, %v1893, %v1889
    %v1895 = vmul.f32 %v1857, %v1894
    %1896 = vset.pattern.permute.xlu0 1
    %1897 = vperm.xlu0 %1896, %v1729
    %v1898 = vpop.permute.xlu0 %1897
    %v1900 = vadd.f32 %v1742, %v1898
    %v1901 = vperm.slane %v1900, 0
    %v1902 = vlaneseq
    %v1903 = vshrl.u32 %v1902, 7
    %1905 = vset.pattern.permute.xlu0 %v1903
    %1906 = vperm.xlu0 %1905, %v1901
    %v1907 = vpop.permute.xlu0 %1906
    %v1908 = vperm.slane %v1900, 1
    %v1909 = vlaneseq
    %v1910 = vshrl.u32 %v1909, 7
    %1912 = vset.pattern.permute.xlu0 %v1910
    %1913 = vperm.xlu0 %1912, %v1908
    %v1914 = vpop.permute.xlu0 %1913
    %v1915 = vsub.f32 %v111, %v1907
    %v1916 = vsub.f32 %v111, %v1914
    %v1917 = vmul.f32 %v1915, %v1791
    %v1918 = vmul.f32 %v1916, %v1806
    %v1919 = vmul.f32 %v1917, %v1917
    %v1920 = vmul.f32 %v1918, %v1918
    %v1921 = vadd.f32 %v1919, 1.0
    %v1922 = vadd.f32 %v1920, 1.0
    %v1923 = vmul.f32 %v1820, %v1921
    %v1924 = vmul.f32 %v1824, %v1922
    %v1925 = vrcp.pop %v1923
    %v1926 = vmul.f32 %v1923, %v1925
    %v1927 = vsub.f32 1.0, %v1926
    %v1928 = vmul.f32 %v1925, %v1927
    %v1929 = vadd.f32 %v1925, %v1928
    %vm1930 = vweird.f32 %v1923
    %vm1931 = vweird.f32 %v1925
    %vm1932 = vmor %vm1930, %vm1931
    %v1933 = vsel %vm1932, %v1925, %v1929
    %v1934 = vand.u32 2147483647, %v1923
    %vm1935 = vcmp.eq.f32.partialorder %v1934, 8.507059e+37
    %v1936 = vand.u32 %v1923, 2147483648
    %v1937 = vor.u32 1.1754944e-38, %v1936
    %v1938 = vsel %vm1935, %v1937, %v1933
    %v1939 = vmul.f32 1.0, %v1938
    %v1940 = vrcp.pop %v1924
    %v1941 = vmul.f32 %v1924, %v1940
    %v1942 = vsub.f32 1.0, %v1941
    %v1943 = vmul.f32 %v1940, %v1942
    %v1944 = vadd.f32 %v1940, %v1943
    %vm1945 = vweird.f32 %v1924
    %vm1946 = vweird.f32 %v1940
    %vm1947 = vmor %vm1945, %vm1946
    %v1948 = vsel %vm1947, %v1940, %v1944
    %v1949 = vand.u32 2147483647, %v1924
    %vm1950 = vcmp.eq.f32.partialorder %v1949, 8.507059e+37
    %v1951 = vand.u32 %v1924, 2147483648
    %v1952 = vor.u32 1.1754944e-38, %v1951
    %v1953 = vsel %vm1950, %v1952, %v1948
    %v1954 = vmul.f32 1.0, %v1953
    %v1955 = vsel %vm234, %v1939, 0.0
    %1956 = vadd.xlane.f32.xlu0 %v1955
    %v1957 = vpop.xlane.xlu0 %1956
    %v1958 = vsel %vm234, %v1954, 0.0
    %1959 = vadd.xlane.f32.xlu0 %v1958
    %v1960 = vpop.xlane.xlu0 %1959
    %v1961 = vadd.f32 %v1957, 0.0001
    %v1962 = vadd.f32 %v1960, 0.0001
    %v1963 = vrcp.pop %v1961
    %v1964 = vmul.f32 %v1961, %v1963
    %v1965 = vsub.f32 1.0, %v1964
    %v1966 = vmul.f32 %v1963, %v1965
    %v1967 = vadd.f32 %v1963, %v1966
    %vm1968 = vweird.f32 %v1961
    %vm1969 = vweird.f32 %v1963
    %vm1970 = vmor %vm1968, %vm1969
    %v1971 = vsel %vm1970, %v1963, %v1967
    %v1972 = vand.u32 2147483647, %v1961
    %vm1973 = vcmp.eq.f32.partialorder %v1972, 8.507059e+37
    %v1974 = vand.u32 %v1961, 2147483648
    %v1975 = vor.u32 1.1754944e-38, %v1974
    %v1976 = vsel %vm1973, %v1975, %v1971
    %v1977 = vmul.f32 %v1939, %v1976
    %v1978 = vrcp.pop %v1962
    %v1979 = vmul.f32 %v1962, %v1978
    %v1980 = vsub.f32 1.0, %v1979
    %v1981 = vmul.f32 %v1978, %v1980
    %v1982 = vadd.f32 %v1978, %v1981
    %vm1983 = vweird.f32 %v1962
    %vm1984 = vweird.f32 %v1978
    %vm1985 = vmor %vm1983, %vm1984
    %v1986 = vsel %vm1985, %v1978, %v1982
    %v1987 = vand.u32 2147483647, %v1962
    %vm1988 = vcmp.eq.f32.partialorder %v1987, 8.507059e+37
    %v1989 = vand.u32 %v1962, 2147483648
    %v1990 = vor.u32 1.1754944e-38, %v1989
    %v1991 = vsel %vm1988, %v1990, %v1986
    %v1992 = vmul.f32 %v1954, %v1991
    %v1994 = vsel %vm370, %v1880, 0
    %1996 = vmatpush.msra.mxu0 0.0
    %1997 = vmatpush.msra.mxu0 0.0
    %1998 = vmatpush.msra.mxu0 0.0
    %1999 = vmatpush.msra.mxu0 0.0
    %2000 = vmatpush.msra.mxu0 0.0
    %2001 = vmatpush.msra.mxu0 0.0
    %2002 = vmatpush.msra.mxu0 0.0
    %2003 = vmatpush.msra.mxu0 0.0
    %2004 = vmatpush.msra.mxu0 0.0
    %2005 = vmatpush.msra.mxu0 0.0
    %2006 = vmatpush.msra.mxu0 0.0
    %2007 = vmatpush.msra.mxu0 0.0
    %2008 = vmatpush.msra.mxu0 0.0
    %2009 = vmatpush.msra.mxu0 0.0
    %2010 = vmatpush.msra.mxu0 %v1698
    %2011 = vmatpush.msra.mxu0 %v1697
    %2012 = vmatmul.f32.gmra.mxu0 %v1994
    %v2013 = vpop.f32.mrf.mxu0
    %v2014 = vadd.f32 0.0, %v2013
    %2015 = vdwg.mxu0
    %v2017 = vsel %vm370, %v1895, 0
    %2019 = vmatpush.msra.mxu0 0.0
    %2020 = vmatpush.msra.mxu0 0.0
    %2021 = vmatpush.msra.mxu0 0.0
    %2022 = vmatpush.msra.mxu0 0.0
    %2023 = vmatpush.msra.mxu0 0.0
    %2024 = vmatpush.msra.mxu0 0.0
    %2025 = vmatpush.msra.mxu0 0.0
    %2026 = vmatpush.msra.mxu0 0.0
    %2027 = vmatpush.msra.mxu0 0.0
    %2028 = vmatpush.msra.mxu0 0.0
    %2029 = vmatpush.msra.mxu0 0.0
    %2030 = vmatpush.msra.mxu0 0.0
    %2031 = vmatpush.msra.mxu0 0.0
    %2032 = vmatpush.msra.mxu0 0.0
    %2033 = vmatpush.msra.mxu0 %v1700
    %2034 = vmatpush.msra.mxu0 %v1699
    %2035 = vmatmul.f32.gmra.mxu0 %v2017
    %v2036 = vpop.f32.mrf.mxu0
    %v2037 = vadd.f32 0.0, %v2036
    %2038 = vdwg.mxu0
    %v2040 = vsel %vm370, %v2014, 0
    %v2043 = vsel %vm370, %v1977, 0
    %2045 = vmatpush.xpose.msra.mxu0 0.0
    %2046 = vmatpush.xpose.msra.mxu0 0.0
    %2047 = vmatpush.xpose.msra.mxu0 0.0
    %2048 = vmatpush.xpose.msra.mxu0 0.0
    %2049 = vmatpush.xpose.msra.mxu0 0.0
    %2050 = vmatpush.xpose.msra.mxu0 0.0
    %2051 = vmatpush.xpose.msra.mxu0 0.0
    %2052 = vmatpush.xpose.msra.mxu0 0.0
    %2053 = vmatpush.xpose.msra.mxu0 0.0
    %2054 = vmatpush.xpose.msra.mxu0 0.0
    %2055 = vmatpush.xpose.msra.mxu0 0.0
    %2056 = vmatpush.xpose.msra.mxu0 0.0
    %2057 = vmatpush.xpose.msra.mxu0 0.0
    %2058 = vmatpush.xpose.msra.mxu0 0.0
    %2059 = vmatpush.xpose.msra.mxu0 0.0
    %2060 = vmatpush.xpose.msra.mxu0 %v2043
    %2061 = vmatmul.f32.gmra.mxu0 %v2040
    %v2062 = vpop.f32.mrf.mxu0
    %v2063 = vadd.f32 0.0, %v2062
    %2064 = vdwg.mxu0
    %v2066 = vsel %vm370, %v2037, 0
    %v2069 = vsel %vm370, %v1992, 0
    %2071 = vmatpush.xpose.msra.mxu0 0.0
    %2072 = vmatpush.xpose.msra.mxu0 0.0
    %2073 = vmatpush.xpose.msra.mxu0 0.0
    %2074 = vmatpush.xpose.msra.mxu0 0.0
    %2075 = vmatpush.xpose.msra.mxu0 0.0
    %2076 = vmatpush.xpose.msra.mxu0 0.0
    %2077 = vmatpush.xpose.msra.mxu0 0.0
    %2078 = vmatpush.xpose.msra.mxu0 0.0
    %2079 = vmatpush.xpose.msra.mxu0 0.0
    %2080 = vmatpush.xpose.msra.mxu0 0.0
    %2081 = vmatpush.xpose.msra.mxu0 0.0
    %2082 = vmatpush.xpose.msra.mxu0 0.0
    %2083 = vmatpush.xpose.msra.mxu0 0.0
    %2084 = vmatpush.xpose.msra.mxu0 0.0
    %2085 = vmatpush.xpose.msra.mxu0 0.0
    %2086 = vmatpush.xpose.msra.mxu0 %v2069
    %2087 = vmatmul.f32.gmra.mxu0 %v2066
    %v2088 = vpop.f32.mrf.mxu0
    %v2089 = vadd.f32 0.0, %v2088
    %2090 = vdwg.mxu0
    %v2092 = vunpack.c.l.s4 1983009808
    %v2093 = vunpack.c.0.s8 %v2092
    %v2094 = vperm.slane %v2063, %v2093
    %v2096 = vunpack.c.l.s4 1983009808
    %v2097 = vunpack.c.0.s8 %v2096
    %v2098 = vperm.slane %v2089, %v2097
    %v2099 = vrot.slane %v2098, 4
    %v2100 = vsel %vm478, %v2099, %v2094
    %v2101 = vrot.slane %v2094, 4
    %v2102 = vsel %vm478, %v2098, %v2101
    %v2104 = vunpack.c.l.s4 1934713408
    %v2105 = vunpack.c.0.s8 %v2104
    %v2106 = vperm.slane %v2100, %v2105
    %v2108 = vunpack.c.l.s4 1934713408
    %v2109 = vunpack.c.0.s8 %v2108
    %v2110 = vperm.slane %v2102, %v2109
    %v2111 = vrot.slane %v2106, 4
    %v2112 = vsel %vm478, 0.0, %v2111
    %v2113 = vrot.slane %v2110, 4
    %v2114 = vsel %vm478, 0.0, %v2113
    %2116 = vrot.lane.b32.xlu0 %v2112, 4
    %v2117 = vpop.permute.xlu0 %2116
    %2120 = vrot.lane.b32.xlu0 %v2110, 8
    %v2121 = vpop.permute.xlu0 %2120
    %2124 = vrot.lane.b32.xlu0 %v2114, 12
    %v2125 = vpop.permute.xlu0 %2124
    %v2127 = vsel %vm506, %v2106, %v2117
    %v2128 = vsel %vm508, %v2127, %v2121
    %v2129 = vsel %vm510, %v2128, %v2125
    %2130 = vrot.lane.b32.xlu0 %v2014, 112
    %v2131 = vpop.permute.xlu0 %2130
    %v2132 = vsel %vm370, %v2131, 0
    %2134 = vmatpush.xpose.msra.mxu0 0.0
    %2135 = vmatpush.xpose.msra.mxu0 0.0
    %2136 = vmatpush.xpose.msra.mxu0 0.0
    %2137 = vmatpush.xpose.msra.mxu0 0.0
    %2138 = vmatpush.xpose.msra.mxu0 0.0
    %2139 = vmatpush.xpose.msra.mxu0 0.0
    %2140 = vmatpush.xpose.msra.mxu0 0.0
    %2141 = vmatpush.xpose.msra.mxu0 0.0
    %2142 = vmatpush.xpose.msra.mxu0 0.0
    %2143 = vmatpush.xpose.msra.mxu0 0.0
    %2144 = vmatpush.xpose.msra.mxu0 0.0
    %2145 = vmatpush.xpose.msra.mxu0 0.0
    %2146 = vmatpush.xpose.msra.mxu0 0.0
    %2147 = vmatpush.xpose.msra.mxu0 0.0
    %2148 = vmatpush.xpose.msra.mxu0 0.0
    %2149 = vmatpush.xpose.msra.mxu0 %v2043
    %2150 = vmatmul.f32.gmra.mxu0 %v2132
    %v2151 = vpop.f32.mrf.mxu0
    %v2152 = vadd.f32 0.0, %v2151
    %2153 = vdwg.mxu0
    %2154 = vrot.lane.b32.xlu0 %v2037, 112
    %v2155 = vpop.permute.xlu0 %2154
    %v2156 = vsel %vm370, %v2155, 0
    %2158 = vmatpush.xpose.msra.mxu0 0.0
    %2159 = vmatpush.xpose.msra.mxu0 0.0
    %2160 = vmatpush.xpose.msra.mxu0 0.0
    %2161 = vmatpush.xpose.msra.mxu0 0.0
    %2162 = vmatpush.xpose.msra.mxu0 0.0
    %2163 = vmatpush.xpose.msra.mxu0 0.0
    %2164 = vmatpush.xpose.msra.mxu0 0.0
    %2165 = vmatpush.xpose.msra.mxu0 0.0
    %2166 = vmatpush.xpose.msra.mxu0 0.0
    %2167 = vmatpush.xpose.msra.mxu0 0.0
    %2168 = vmatpush.xpose.msra.mxu0 0.0
    %2169 = vmatpush.xpose.msra.mxu0 0.0
    %2170 = vmatpush.xpose.msra.mxu0 0.0
    %2171 = vmatpush.xpose.msra.mxu0 0.0
    %2172 = vmatpush.xpose.msra.mxu0 0.0
    %2173 = vmatpush.xpose.msra.mxu0 %v2069
    %2174 = vmatmul.f32.gmra.mxu0 %v2156
    %v2175 = vpop.f32.mrf.mxu0
    %v2176 = vadd.f32 0.0, %v2175
    %2177 = vdwg.mxu0
    %v2179 = vunpack.c.l.s4 1983009808
    %v2180 = vunpack.c.0.s8 %v2179
    %v2181 = vperm.slane %v2152, %v2180
    %v2183 = vunpack.c.l.s4 1983009808
    %v2184 = vunpack.c.0.s8 %v2183
    %v2185 = vperm.slane %v2176, %v2184
    %v2186 = vrot.slane %v2185, 4
    %v2187 = vsel %vm478, %v2186, %v2181
    %v2188 = vrot.slane %v2181, 4
    %v2189 = vsel %vm478, %v2185, %v2188
    %v2191 = vunpack.c.l.s4 1934713408
    %v2192 = vunpack.c.0.s8 %v2191
    %v2193 = vperm.slane %v2187, %v2192
    %v2195 = vunpack.c.l.s4 1934713408
    %v2196 = vunpack.c.0.s8 %v2195
    %v2197 = vperm.slane %v2189, %v2196
    %v2198 = vrot.slane %v2193, 4
    %v2199 = vsel %vm478, 0.0, %v2198
    %v2200 = vrot.slane %v2197, 4
    %v2201 = vsel %vm478, 0.0, %v2200
    %2203 = vrot.lane.b32.xlu0 %v2199, 4
    %v2204 = vpop.permute.xlu0 %2203
    %2207 = vrot.lane.b32.xlu0 %v2197, 8
    %v2208 = vpop.permute.xlu0 %2207
    %2211 = vrot.lane.b32.xlu0 %v2201, 12
    %v2212 = vpop.permute.xlu0 %2211
    %v2214 = vsel %vm506, %v2193, %v2204
    %v2215 = vsel %vm508, %v2214, %v2208
    %v2216 = vsel %vm510, %v2215, %v2212
    %2217 = vrot.lane.b32.xlu0 %v2014, 96
    %v2218 = vpop.permute.xlu0 %2217
    %v2219 = vsel %vm370, %v2218, 0
    %2221 = vmatpush.xpose.msra.mxu0 0.0
    %2222 = vmatpush.xpose.msra.mxu0 0.0
    %2223 = vmatpush.xpose.msra.mxu0 0.0
    %2224 = vmatpush.xpose.msra.mxu0 0.0
    %2225 = vmatpush.xpose.msra.mxu0 0.0
    %2226 = vmatpush.xpose.msra.mxu0 0.0
    %2227 = vmatpush.xpose.msra.mxu0 0.0
    %2228 = vmatpush.xpose.msra.mxu0 0.0
    %2229 = vmatpush.xpose.msra.mxu0 0.0
    %2230 = vmatpush.xpose.msra.mxu0 0.0
    %2231 = vmatpush.xpose.msra.mxu0 0.0
    %2232 = vmatpush.xpose.msra.mxu0 0.0
    %2233 = vmatpush.xpose.msra.mxu0 0.0
    %2234 = vmatpush.xpose.msra.mxu0 0.0
    %2235 = vmatpush.xpose.msra.mxu0 0.0
    %2236 = vmatpush.xpose.msra.mxu0 %v2043
    %2237 = vmatmul.f32.gmra.mxu0 %v2219
    %v2238 = vpop.f32.mrf.mxu0
    %v2239 = vadd.f32 0.0, %v2238
    %2240 = vdwg.mxu0
    %2241 = vrot.lane.b32.xlu0 %v2037, 96
    %v2242 = vpop.permute.xlu0 %2241
    %v2243 = vsel %vm370, %v2242, 0
    %2245 = vmatpush.xpose.msra.mxu0 0.0
    %2246 = vmatpush.xpose.msra.mxu0 0.0
    %2247 = vmatpush.xpose.msra.mxu0 0.0
    %2248 = vmatpush.xpose.msra.mxu0 0.0
    %2249 = vmatpush.xpose.msra.mxu0 0.0
    %2250 = vmatpush.xpose.msra.mxu0 0.0
    %2251 = vmatpush.xpose.msra.mxu0 0.0
    %2252 = vmatpush.xpose.msra.mxu0 0.0
    %2253 = vmatpush.xpose.msra.mxu0 0.0
    %2254 = vmatpush.xpose.msra.mxu0 0.0
    %2255 = vmatpush.xpose.msra.mxu0 0.0
    %2256 = vmatpush.xpose.msra.mxu0 0.0
    %2257 = vmatpush.xpose.msra.mxu0 0.0
    %2258 = vmatpush.xpose.msra.mxu0 0.0
    %2259 = vmatpush.xpose.msra.mxu0 0.0
    %2260 = vmatpush.xpose.msra.mxu0 %v2069
    %2261 = vmatmul.f32.gmra.mxu0 %v2243
    %v2262 = vpop.f32.mrf.mxu0
    %v2263 = vadd.f32 0.0, %v2262
    %2264 = vdwg.mxu0
    %v2266 = vunpack.c.l.s4 1983009808
    %v2267 = vunpack.c.0.s8 %v2266
    %v2268 = vperm.slane %v2239, %v2267
    %v2270 = vunpack.c.l.s4 1983009808
    %v2271 = vunpack.c.0.s8 %v2270
    %v2272 = vperm.slane %v2263, %v2271
    %v2273 = vrot.slane %v2272, 4
    %v2274 = vsel %vm478, %v2273, %v2268
    %v2275 = vrot.slane %v2268, 4
    %v2276 = vsel %vm478, %v2272, %v2275
    %v2278 = vunpack.c.l.s4 1934713408
    %v2279 = vunpack.c.0.s8 %v2278
    %v2280 = vperm.slane %v2274, %v2279
    %v2282 = vunpack.c.l.s4 1934713408
    %v2283 = vunpack.c.0.s8 %v2282
    %v2284 = vperm.slane %v2276, %v2283
    %v2285 = vrot.slane %v2280, 4
    %v2286 = vsel %vm478, 0.0, %v2285
    %v2287 = vrot.slane %v2284, 4
    %v2288 = vsel %vm478, 0.0, %v2287
    %2290 = vrot.lane.b32.xlu0 %v2286, 4
    %v2291 = vpop.permute.xlu0 %2290
    %2294 = vrot.lane.b32.xlu0 %v2284, 8
    %v2295 = vpop.permute.xlu0 %2294
    %2298 = vrot.lane.b32.xlu0 %v2288, 12
    %v2299 = vpop.permute.xlu0 %2298
    %v2301 = vsel %vm506, %v2280, %v2291
    %v2302 = vsel %vm508, %v2301, %v2295
    %v2303 = vsel %vm510, %v2302, %v2299
    %2305 = vrot.lane.b32.xlu0 %v2216, 16
    %v2306 = vpop.permute.xlu0 %2305
    %2309 = vrot.lane.b32.xlu0 %v2303, 32
    %v2310 = vpop.permute.xlu0 %2309
    %v2312 = vsel %vm370, %v2129, %v2306
    %v2313 = vsel %vm69, %v2312, %v2310
    %v2315 = vsel %vm699, %v2313, 0
    %2317 = vmatpush.msra.mxu0 0.0
    %2318 = vmatpush.msra.mxu0 0.0
    %2319 = vmatpush.msra.mxu0 0.0
    %2320 = vmatpush.msra.mxu0 0.0
    %2321 = vmatpush.msra.mxu0 0.0
    %2322 = vmatpush.msra.mxu0 0.0
    %2323 = vmatpush.msra.mxu0 0.0
    %2324 = vmatpush.msra.mxu0 0.0
    %2325 = vmatpush.msra.mxu0 0.0
    %2326 = vmatpush.msra.mxu0 0.0
    %2327 = vmatpush.msra.mxu0 %v48
    %2328 = vmatpush.msra.mxu0 %v47
    %2329 = vmatpush.msra.mxu0 %v46
    %2330 = vmatpush.msra.mxu0 %v45
    %2331 = vmatpush.msra.mxu0 %v44
    %2332 = vmatpush.msra.mxu0 %v43
    %2333 = vmatmul.f32.gmra.mxu0 %v2315
    %v2334 = vpop.f32.mrf.mxu0
    %v2335 = vadd.f32 %v697, %v2334
    %2336 = vdwg.mxu0
    %2337 = vmatpush.msra.mxu0 0.0
    %2338 = vmatpush.msra.mxu0 0.0
    %2339 = vmatpush.msra.mxu0 0.0
    %2340 = vmatpush.msra.mxu0 0.0
    %2341 = vmatpush.msra.mxu0 0.0
    %2342 = vmatpush.msra.mxu0 0.0
    %2343 = vmatpush.msra.mxu0 0.0
    %2344 = vmatpush.msra.mxu0 0.0
    %2345 = vmatpush.msra.mxu0 0.0
    %2346 = vmatpush.msra.mxu0 0.0
    %2347 = vmatpush.msra.mxu0 0.0
    %2348 = vmatpush.msra.mxu0 0.0
    %2349 = vmatpush.msra.mxu0 %v53
    %2350 = vmatpush.msra.mxu0 %v52
    %2351 = vmatpush.msra.mxu0 %v51
    %2352 = vmatpush.msra.mxu0 %v50
    %2353 = vmatmul.f32.gmra.mxu0 %v1704
    %v2354 = vpop.f32.mrf.mxu0
    %v2355 = vadd.f32 0.0, %v2354
    %2356 = vdwg.mxu0
    %v2357 = vadd.f32 %v721, %v2355
    %v2358 = vadd.f32 %v2357, %v745
    %v2359 = vtanh.pop %v2358
    %v2360 = vxor.u32 %v2358, 2147483648
    %v2361 = vmul.f32 %v2360, 1.442695
    %v2362 = vpow.pop %v2361
    %v2363 = vadd.f32 %v2362, 1.0
    %v2364 = vrcp.pop %v2363
    %v2365 = vmul.f32 %v2363, %v2364
    %v2366 = vsub.f32 1.0, %v2365
    %v2367 = vmul.f32 %v2364, %v2366
    %v2368 = vadd.f32 %v2364, %v2367
    %vm2369 = vweird.f32 %v2363
    %vm2370 = vweird.f32 %v2364
    %vm2371 = vmor %vm2369, %vm2370
    %v2372 = vsel %vm2371, %v2364, %v2368
    %v2373 = vand.u32 2147483647, %v2363
    %vm2374 = vcmp.eq.f32.partialorder %v2373, 8.507059e+37
    %v2375 = vand.u32 %v2363, 2147483648
    %v2376 = vor.u32 1.1754944e-38, %v2375
    %v2377 = vsel %vm2374, %v2376, %v2372
    %v2378 = vmul.f32 1.0, %v2377
    %v2379 = vsel %vm61, %v2359, %v2378
    %v2380 = vmul.f32 %v2379, %v1689
    %2382 = vrot.lane.b32.xlu0 %v2379, 64
    %v2383 = vpop.permute.xlu0 %2382
    %v2385 = vmul.f32 %v2379, %v2383
    %2387 = vrot.lane.b32.xlu0 %v2385, 32
    %v2388 = vpop.permute.xlu0 %2387
    %v2390 = vadd.f32 %v2380, %v2388
    %v2391 = vtanh.pop %v2390
    %2393 = vrot.lane.b32.xlu0 %v2391, 64
    %v2394 = vpop.permute.xlu0 %2393
    %v2396 = vmul.f32 %v2379, %v2394
    %v2397 = vmul.f32 %v2390, %v789
    %2399 = vrot.lane.b32.xlu0 %v2397, 96
    %v2400 = vpop.permute.xlu0 %2399
    %v2402 = vsel %vm796, %v2400, 0.0
    %2403 = vadd.xlane.f32.xlu0 %v2402
    %v2404 = vpop.xlane.xlu0 %2403
    %v2405 = vadd.f32 %v2404, %v801
    %v2406 = vxor.u32 %v2405, 2147483648
    %v2407 = vmul.f32 %v2406, 1.442695
    %v2408 = vpow.pop %v2407
    %v2409 = vadd.f32 %v2408, 1.0
    %v2410 = vrcp.pop %v2409
    %v2411 = vmul.f32 %v2409, %v2410
    %v2412 = vsub.f32 1.0, %v2411
    %v2413 = vmul.f32 %v2410, %v2412
    %v2414 = vadd.f32 %v2410, %v2413
    %vm2415 = vweird.f32 %v2409
    %vm2416 = vweird.f32 %v2410
    %vm2417 = vmor %vm2415, %vm2416
    %v2418 = vsel %vm2417, %v2410, %v2414
    %v2419 = vand.u32 2147483647, %v2409
    %vm2420 = vcmp.eq.f32.partialorder %v2419, 8.507059e+37
    %v2421 = vand.u32 %v2409, 2147483648
    %v2422 = vor.u32 1.1754944e-38, %v2421
    %v2423 = vsel %vm2420, %v2422, %v2418
    %v2424 = vmul.f32 1.0, %v2423
    %v2425 = vsub.f32 1.0, %v1696
    %v2426 = vmin.f32 %v1695, %v2425
    %v2427 = vadd.f32 %v1696, %v2426
    %v2428 = vround.ne.pseudo %v2427
    %2430 = vset.pattern.permute.xlu0 0
    %2431 = vperm.xlu0 %2430, %v2428
    %v2432 = vpop.permute.xlu0 %2431
    %v2434 = vmul.f32 %v2432, %v2390
    %v2435 = vsub.f32 1.0, %v2428
    %2437 = vset.pattern.permute.xlu0 0
    %2438 = vperm.xlu0 %2437, %v2435
    %v2439 = vpop.permute.xlu0 %2438
    %v2441 = vmul.f32 %v2439, %v1689
    %v2442 = vadd.f32 %v2434, %v2441
    %v2443 = vmul.f32 %v2432, %v2396
    %v2444 = vmul.f32 %v2439, %v1692
    %v2445 = vadd.f32 %v2443, %v2444
    %v2446 = vmul.f32 %v2428, %v2424
    %v2447 = vmul.f32 %v2435, %v1695
    %v2448 = vadd.f32 %v2446, %v2447
    %v2449 = vmul.f32 %v2435, %v2427
    %2451 = vrot.lane.b32.xlu0 %v2445, 32
    %v2452 = vpop.permute.xlu0 %2451
    %v2453 = vsel %vm69, %v2452, 0
    %2455 = vmatpush.msra.mxu0 0.0
    %2456 = vmatpush.msra.mxu0 0.0
    %2457 = vmatpush.msra.mxu0 0.0
    %2458 = vmatpush.msra.mxu0 0.0
    %2459 = vmatpush.msra.mxu0 0.0
    %2460 = vmatpush.msra.mxu0 0.0
    %2461 = vmatpush.msra.mxu0 0.0
    %2462 = vmatpush.msra.mxu0 0.0
    %2463 = vmatpush.msra.mxu0 0.0
    %2464 = vmatpush.msra.mxu0 0.0
    %2465 = vmatpush.msra.mxu0 0.0
    %2466 = vmatpush.msra.mxu0 0.0
    %2467 = vmatpush.msra.mxu0 %v53
    %2468 = vmatpush.msra.mxu0 %v52
    %2469 = vmatpush.msra.mxu0 %v51
    %2470 = vmatpush.msra.mxu0 %v50
    %2471 = vmatmul.f32.gmra.mxu0 %v2453
    %v2472 = vpop.f32.mrf.mxu0
    %v2473 = vadd.f32 0.0, %v2472
    %2474 = vdwg.mxu0
    %v2475 = vadd.f32 %v1465, %v2473
    %v2476 = vadd.f32 %v2475, %v745
    %v2477 = vtanh.pop %v2476
    %v2478 = vxor.u32 %v2476, 2147483648
    %v2479 = vmul.f32 %v2478, 1.442695
    %v2480 = vpow.pop %v2479
    %v2481 = vadd.f32 %v2480, 1.0
    %v2482 = vrcp.pop %v2481
    %v2483 = vmul.f32 %v2481, %v2482
    %v2484 = vsub.f32 1.0, %v2483
    %v2485 = vmul.f32 %v2482, %v2484
    %v2486 = vadd.f32 %v2482, %v2485
    %vm2487 = vweird.f32 %v2481
    %vm2488 = vweird.f32 %v2482
    %vm2489 = vmor %vm2487, %vm2488
    %v2490 = vsel %vm2489, %v2482, %v2486
    %v2491 = vand.u32 2147483647, %v2481
    %vm2492 = vcmp.eq.f32.partialorder %v2491, 8.507059e+37
    %v2493 = vand.u32 %v2481, 2147483648
    %v2494 = vor.u32 1.1754944e-38, %v2493
    %v2495 = vsel %vm2492, %v2494, %v2490
    %v2496 = vmul.f32 1.0, %v2495
    %v2497 = vsel %vm61, %v2477, %v2496
    %v2498 = vmul.f32 %v2497, %v2442
    %2500 = vrot.lane.b32.xlu0 %v2497, 64
    %v2501 = vpop.permute.xlu0 %2500
    %v2503 = vmul.f32 %v2497, %v2501
    %2505 = vrot.lane.b32.xlu0 %v2503, 32
    %v2506 = vpop.permute.xlu0 %2505
    %v2508 = vadd.f32 %v2498, %v2506
    %v2509 = vtanh.pop %v2508
    %2511 = vrot.lane.b32.xlu0 %v2509, 64
    %v2512 = vpop.permute.xlu0 %2511
    %v2514 = vmul.f32 %v2497, %v2512
    %v2515 = vmul.f32 %v2508, %v789
    %2517 = vrot.lane.b32.xlu0 %v2515, 96
    %v2518 = vpop.permute.xlu0 %2517
    %v2520 = vsel %vm796, %v2518, 0.0
    %2521 = vadd.xlane.f32.xlu0 %v2520
    %v2522 = vpop.xlane.xlu0 %2521
    %v2523 = vadd.f32 %v2522, %v801
    %v2524 = vxor.u32 %v2523, 2147483648
    %v2525 = vmul.f32 %v2524, 1.442695
    %v2526 = vpow.pop %v2525
    %v2527 = vadd.f32 %v2526, 1.0
    %v2528 = vrcp.pop %v2527
    %v2529 = vmul.f32 %v2527, %v2528
    %v2530 = vsub.f32 1.0, %v2529
    %v2531 = vmul.f32 %v2528, %v2530
    %v2532 = vadd.f32 %v2528, %v2531
    %vm2533 = vweird.f32 %v2527
    %vm2534 = vweird.f32 %v2528
    %vm2535 = vmor %vm2533, %vm2534
    %v2536 = vsel %vm2535, %v2528, %v2532
    %v2537 = vand.u32 2147483647, %v2527
    %vm2538 = vcmp.eq.f32.partialorder %v2537, 8.507059e+37
    %v2539 = vand.u32 %v2527, 2147483648
    %v2540 = vor.u32 1.1754944e-38, %v2539
    %v2541 = vsel %vm2538, %v2540, %v2536
    %v2542 = vmul.f32 1.0, %v2541
    %v2543 = vsub.f32 1.0, %v2449
    %v2544 = vmin.f32 %v2448, %v2543
    %v2545 = vadd.f32 %v2449, %v2544
    %v2546 = vround.ne.pseudo %v2545
    %2548 = vset.pattern.permute.xlu0 0
    %2549 = vperm.xlu0 %2548, %v2546
    %v2550 = vpop.permute.xlu0 %2549
    %v2552 = vmul.f32 %v2550, %v2508
    %v2553 = vsub.f32 1.0, %v2546
    %2555 = vset.pattern.permute.xlu0 0
    %2556 = vperm.xlu0 %2555, %v2553
    %v2557 = vpop.permute.xlu0 %2556
    %v2559 = vmul.f32 %v2557, %v2442
    %v2560 = vadd.f32 %v2552, %v2559
    %v2561 = vmul.f32 %v2550, %v2514
    %v2562 = vmul.f32 %v2557, %v2445
    %v2563 = vadd.f32 %v2561, %v2562
    %v2564 = vmul.f32 %v2546, %v2542
    %v2565 = vmul.f32 %v2553, %v2448
    %v2566 = vadd.f32 %v2564, %v2565
    %v2567 = vmul.f32 %v2553, %v2545
    %2569 = vrot.lane.b32.xlu0 %v2563, 32
    %v2570 = vpop.permute.xlu0 %2569
    %v2571 = vsel %vm69, %v2570, 0
    %2573 = vmatpush.msra.mxu0 0.0
    %2574 = vmatpush.msra.mxu0 0.0
    %2575 = vmatpush.msra.mxu0 0.0
    %2576 = vmatpush.msra.mxu0 0.0
    %2577 = vmatpush.msra.mxu0 0.0
    %2578 = vmatpush.msra.mxu0 0.0
    %2579 = vmatpush.msra.mxu0 0.0
    %2580 = vmatpush.msra.mxu0 0.0
    %2581 = vmatpush.msra.mxu0 0.0
    %2582 = vmatpush.msra.mxu0 0.0
    %2583 = vmatpush.msra.mxu0 0.0
    %2584 = vmatpush.msra.mxu0 0.0
    %2585 = vmatpush.msra.mxu0 %v53
    %2586 = vmatpush.msra.mxu0 %v52
    %2587 = vmatpush.msra.mxu0 %v51
    %2588 = vmatpush.msra.mxu0 %v50
    %2589 = vmatmul.f32.gmra.mxu0 %v2571
    %v2590 = vpop.f32.mrf.mxu0
    %v2591 = vadd.f32 0.0, %v2590
    %2592 = vdwg.mxu0
    %v2593 = vadd.f32 %v2335, %v2591
    %v2594 = vadd.f32 %v2593, %v745
    %v2595 = vtanh.pop %v2594
    %v2596 = vxor.u32 %v2594, 2147483648
    %v2597 = vmul.f32 %v2596, 1.442695
    %v2598 = vpow.pop %v2597
    %v2599 = vadd.f32 %v2598, 1.0
    %v2600 = vrcp.pop %v2599
    %v2601 = vmul.f32 %v2599, %v2600
    %v2602 = vsub.f32 1.0, %v2601
    %v2603 = vmul.f32 %v2600, %v2602
    %v2604 = vadd.f32 %v2600, %v2603
    %vm2605 = vweird.f32 %v2599
    %vm2606 = vweird.f32 %v2600
    %vm2607 = vmor %vm2605, %vm2606
    %v2608 = vsel %vm2607, %v2600, %v2604
    %v2609 = vand.u32 2147483647, %v2599
    %vm2610 = vcmp.eq.f32.partialorder %v2609, 8.507059e+37
    %v2611 = vand.u32 %v2599, 2147483648
    %v2612 = vor.u32 1.1754944e-38, %v2611
    %v2613 = vsel %vm2610, %v2612, %v2608
    %v2614 = vmul.f32 1.0, %v2613
    %v2615 = vsel %vm61, %v2595, %v2614
    %v2616 = vmul.f32 %v2615, %v2560
    %2618 = vrot.lane.b32.xlu0 %v2615, 64
    %v2619 = vpop.permute.xlu0 %2618
    %v2621 = vmul.f32 %v2615, %v2619
    %2623 = vrot.lane.b32.xlu0 %v2621, 32
    %v2624 = vpop.permute.xlu0 %2623
    %v2626 = vadd.f32 %v2616, %v2624
    %v2627 = vtanh.pop %v2626
    %2629 = vrot.lane.b32.xlu0 %v2627, 64
    %v2630 = vpop.permute.xlu0 %2629
    %v2632 = vmul.f32 %v2615, %v2630
    %v2633 = vmul.f32 %v2626, %v789
    %2635 = vrot.lane.b32.xlu0 %v2633, 96
    %v2636 = vpop.permute.xlu0 %2635
    %v2638 = vsel %vm796, %v2636, 0.0
    %2639 = vadd.xlane.f32.xlu0 %v2638
    %v2640 = vpop.xlane.xlu0 %2639
    %v2641 = vadd.f32 %v2640, %v801
    %v2642 = vxor.u32 %v2641, 2147483648
    %v2643 = vmul.f32 %v2642, 1.442695
    %v2644 = vpow.pop %v2643
    %v2645 = vadd.f32 %v2644, 1.0
    %v2646 = vrcp.pop %v2645
    %v2647 = vmul.f32 %v2645, %v2646
    %v2648 = vsub.f32 1.0, %v2647
    %v2649 = vmul.f32 %v2646, %v2648
    %v2650 = vadd.f32 %v2646, %v2649
    %vm2651 = vweird.f32 %v2645
    %vm2652 = vweird.f32 %v2646
    %vm2653 = vmor %vm2651, %vm2652
    %v2654 = vsel %vm2653, %v2646, %v2650
    %v2655 = vand.u32 2147483647, %v2645
    %vm2656 = vcmp.eq.f32.partialorder %v2655, 8.507059e+37
    %v2657 = vand.u32 %v2645, 2147483648
    %v2658 = vor.u32 1.1754944e-38, %v2657
    %v2659 = vsel %vm2656, %v2658, %v2654
    %v2660 = vmul.f32 1.0, %v2659
    %v2661 = vsub.f32 1.0, %v2567
    %v2662 = vmin.f32 %v2566, %v2661
    %v2663 = vadd.f32 %v2567, %v2662
    %v2664 = vround.ne.pseudo %v2663
    %2666 = vset.pattern.permute.xlu0 0
    %2667 = vperm.xlu0 %2666, %v2664
    %v2668 = vpop.permute.xlu0 %2667
    %v2670 = vmul.f32 %v2668, %v2626
    %v2671 = vsub.f32 1.0, %v2664
    %2673 = vset.pattern.permute.xlu0 0
    %2674 = vperm.xlu0 %2673, %v2671
    %v2675 = vpop.permute.xlu0 %2674
    %v2677 = vmul.f32 %v2675, %v2560
    %v2678 = vadd.f32 %v2670, %v2677
    %v2679 = vmul.f32 %v2668, %v2632
    %v2680 = vmul.f32 %v2675, %v2563
    %v2681 = vadd.f32 %v2679, %v2680
    %v2682 = vmul.f32 %v2664, %v2660
    %v2683 = vmul.f32 %v2671, %v2566
    %v2684 = vadd.f32 %v2682, %v2683
    %v2685 = vmul.f32 %v2671, %v2663
    %v2686 = vld [vmem:[%s826] sm:$0xff]
    %v2687 = vld [vmem:[%s826 + $0x8] sm:$0xff]
    %v2688 = vld [vmem:[%s826 + $0x10] sm:$0xff]
    %v2689 = vld [vmem:[%s826 + $0x18] sm:$0xff]
    %2691 = vrot.lane.b32.xlu0 %v2681, 32
    %v2692 = vpop.permute.xlu0 %2691
    %v2693 = vsel %vm69, %v2692, 0
    %2695 = vmatpush.msra.mxu0 0.0
    %2696 = vmatpush.msra.mxu0 0.0
    %2697 = vmatpush.msra.mxu0 0.0
    %2698 = vmatpush.msra.mxu0 0.0
    %2699 = vmatpush.msra.mxu0 0.0
    %2700 = vmatpush.msra.mxu0 0.0
    %2701 = vmatpush.msra.mxu0 0.0
    %2702 = vmatpush.msra.mxu0 0.0
    %2703 = vmatpush.msra.mxu0 0.0
    %2704 = vmatpush.msra.mxu0 0.0
    %2705 = vmatpush.msra.mxu0 0.0
    %2706 = vmatpush.msra.mxu0 0.0
    %2707 = vmatpush.msra.mxu0 %v41
    %2708 = vmatpush.msra.mxu0 %v40
    %2709 = vmatpush.msra.mxu0 %v39
    %2710 = vmatpush.msra.mxu0 %v38
    %2711 = vmatmul.f32.gmra.mxu0 %v2693
    %v2712 = vpop.f32.mrf.mxu0
    %v2713 = vadd.f32 %v67, %v2712
    %2714 = vdwg.mxu0
    %v2715 = vtanh.pop %v2713
    %v2716 = vadd.f32 %v2715, 1.0
    %v2717 = vmul.f32 %v2716, 15.0
    %v2718 = vmul.f32 %v2717, %v102
    %v2719 = vand.u32 2147483647, %v2715
    %v2720 = vsub.f32 1.0, %v2719
    %v2721 = vmul.f32 %v2720, 4.0
    %v2722 = vmul.f32 %v2719, 2.0
    %v2723 = vsub.f32 1.0, %v2722
    %v2724 = vmul.f32 %v2723, 1.442695
    %v2725 = vpow.pop %v2724
    %2727 = vset.pattern.permute.xlu0 2
    %2728 = vperm.xlu0 %2727, %v2721
    %v2729 = vpop.permute.xlu0 %2728
    %v2731 = vmul.f32 %v2729, %v112
    %2733 = vset.pattern.permute.xlu0 0
    %2734 = vperm.xlu0 %2733, %v2718
    %v2735 = vpop.permute.xlu0 %2734
    %v2737 = vadd.f32 %v2731, %v2735
    %v2738 = vperm.slane %v2737, 0
    %v2739 = vlaneseq
    %v2740 = vshrl.u32 %v2739, 7
    %2742 = vset.pattern.permute.xlu0 %v2740
    %2743 = vperm.xlu0 %2742, %v2738
    %v2744 = vpop.permute.xlu0 %2743
    %v2745 = vperm.slane %v2737, 1
    %v2746 = vlaneseq
    %v2747 = vshrl.u32 %v2746, 7
    %2749 = vset.pattern.permute.xlu0 %v2747
    %2750 = vperm.xlu0 %2749, %v2745
    %v2751 = vpop.permute.xlu0 %2750
    %v2752 = vsub.f32 %v111, %v2744
    %v2753 = vsub.f32 %v111, %v2751
    %v2755 = vrot.slane %v2725, 1
    %v2757 = vperm.slane %v2725, 0
    %v2758 = vperm.slane %v2755, 0
    %2759 = vset.pattern.permute.xlu0 2
    %2760 = vperm.xlu0 %2759, %v2757
    %v2761 = vpop.permute.xlu0 %2760
    %2763 = vset.pattern.permute.xlu0 2
    %2764 = vperm.xlu0 %2763, %v2758
    %v2765 = vpop.permute.xlu0 %2764
    %v2767 = vrcp.pop %v2761
    %v2768 = vmul.f32 %v2761, %v2767
    %v2769 = vsub.f32 1.0, %v2768
    %v2770 = vmul.f32 %v2767, %v2769
    %v2771 = vadd.f32 %v2767, %v2770
    %vm2772 = vweird.f32 %v2761
    %vm2773 = vweird.f32 %v2767
    %vm2774 = vmor %vm2772, %vm2773
    %v2775 = vsel %vm2774, %v2767, %v2771
    %v2776 = vand.u32 2147483647, %v2761
    %vm2777 = vcmp.eq.f32.partialorder %v2776, 8.507059e+37
    %v2778 = vand.u32 %v2761, 2147483648
    %v2779 = vor.u32 1.1754944e-38, %v2778
    %v2780 = vsel %vm2777, %v2779, %v2775
    %v2781 = vmul.f32 %v2752, %v2780
    %v2782 = vrcp.pop %v2765
    %v2783 = vmul.f32 %v2765, %v2782
    %v2784 = vsub.f32 1.0, %v2783
    %v2785 = vmul.f32 %v2782, %v2784
    %v2786 = vadd.f32 %v2782, %v2785
    %vm2787 = vweird.f32 %v2765
    %vm2788 = vweird.f32 %v2782
    %vm2789 = vmor %vm2787, %vm2788
    %v2790 = vsel %vm2789, %v2782, %v2786
    %v2791 = vand.u32 2147483647, %v2765
    %vm2792 = vcmp.eq.f32.partialorder %v2791, 8.507059e+37
    %v2793 = vand.u32 %v2765, 2147483648
    %v2794 = vor.u32 1.1754944e-38, %v2793
    %v2795 = vsel %vm2792, %v2794, %v2790
    %v2796 = vmul.f32 %v2753, %v2795
    %v2797 = vmul.f32 %v2781, %v2781
    %v2798 = vmul.f32 %v2796, %v2796
    %v2799 = vadd.f32 %v2797, 1.0
    %v2800 = vadd.f32 %v2798, 1.0
    %v2801 = vmul.f32 %v2725, 3.1415927
    %v2802 = vmul.f32 %v2755, 3.1415927
    %v2805 = vperm.slane %v2801, 0
    %v2806 = vperm.slane %v2802, 0
    %2807 = vset.pattern.permute.xlu0 2
    %2808 = vperm.xlu0 %2807, %v2805
    %v2809 = vpop.permute.xlu0 %2808
    %2811 = vset.pattern.permute.xlu0 2
    %2812 = vperm.xlu0 %2811, %v2806
    %v2813 = vpop.permute.xlu0 %2812
    %v2815 = vmul.f32 %v2809, %v2799
    %v2816 = vmul.f32 %v2813, %v2800
    %v2817 = vrcp.pop %v2815
    %v2818 = vmul.f32 %v2815, %v2817
    %v2819 = vsub.f32 1.0, %v2818
    %v2820 = vmul.f32 %v2817, %v2819
    %v2821 = vadd.f32 %v2817, %v2820
    %vm2822 = vweird.f32 %v2815
    %vm2823 = vweird.f32 %v2817
    %vm2824 = vmor %vm2822, %vm2823
    %v2825 = vsel %vm2824, %v2817, %v2821
    %v2826 = vand.u32 2147483647, %v2815
    %vm2827 = vcmp.eq.f32.partialorder %v2826, 8.507059e+37
    %v2828 = vand.u32 %v2815, 2147483648
    %v2829 = vor.u32 1.1754944e-38, %v2828
    %v2830 = vsel %vm2827, %v2829, %v2825
    %v2831 = vmul.f32 1.0, %v2830
    %v2832 = vrcp.pop %v2816
    %v2833 = vmul.f32 %v2816, %v2832
    %v2834 = vsub.f32 1.0, %v2833
    %v2835 = vmul.f32 %v2832, %v2834
    %v2836 = vadd.f32 %v2832, %v2835
    %vm2837 = vweird.f32 %v2816
    %vm2838 = vweird.f32 %v2832
    %vm2839 = vmor %vm2837, %vm2838
    %v2840 = vsel %vm2839, %v2832, %v2836
    %v2841 = vand.u32 2147483647, %v2816
    %vm2842 = vcmp.eq.f32.partialorder %v2841, 8.507059e+37
    %v2843 = vand.u32 %v2816, 2147483648
    %v2844 = vor.u32 1.1754944e-38, %v2843
    %v2845 = vsel %vm2842, %v2844, %v2840
    %v2846 = vmul.f32 1.0, %v2845
    %v2847 = vsel %vm234, %v2831, 0.0
    %2848 = vadd.xlane.f32.xlu0 %v2847
    %v2849 = vpop.xlane.xlu0 %2848
    %v2850 = vsel %vm234, %v2846, 0.0
    %2851 = vadd.xlane.f32.xlu0 %v2850
    %v2852 = vpop.xlane.xlu0 %2851
    %v2853 = vadd.f32 %v2849, 0.0001
    %v2854 = vadd.f32 %v2852, 0.0001
    %v2855 = vrcp.pop %v2853
    %v2856 = vmul.f32 %v2853, %v2855
    %v2857 = vsub.f32 1.0, %v2856
    %v2858 = vmul.f32 %v2855, %v2857
    %v2859 = vadd.f32 %v2855, %v2858
    %vm2860 = vweird.f32 %v2853
    %vm2861 = vweird.f32 %v2855
    %vm2862 = vmor %vm2860, %vm2861
    %v2863 = vsel %vm2862, %v2855, %v2859
    %v2864 = vand.u32 2147483647, %v2853
    %vm2865 = vcmp.eq.f32.partialorder %v2864, 8.507059e+37
    %v2866 = vand.u32 %v2853, 2147483648
    %v2867 = vor.u32 1.1754944e-38, %v2866
    %v2868 = vsel %vm2865, %v2867, %v2863
    %v2869 = vmul.f32 %v2831, %v2868
    %v2870 = vrcp.pop %v2854
    %v2871 = vmul.f32 %v2854, %v2870
    %v2872 = vsub.f32 1.0, %v2871
    %v2873 = vmul.f32 %v2870, %v2872
    %v2874 = vadd.f32 %v2870, %v2873
    %vm2875 = vweird.f32 %v2854
    %vm2876 = vweird.f32 %v2870
    %vm2877 = vmor %vm2875, %vm2876
    %v2878 = vsel %vm2877, %v2870, %v2874
    %v2879 = vand.u32 2147483647, %v2854
    %vm2880 = vcmp.eq.f32.partialorder %v2879, 8.507059e+37
    %v2881 = vand.u32 %v2854, 2147483648
    %v2882 = vor.u32 1.1754944e-38, %v2881
    %v2883 = vsel %vm2880, %v2882, %v2878
    %v2884 = vmul.f32 %v2846, %v2883
    %2885 = vset.pattern.permute.xlu0 1
    %2886 = vperm.xlu0 %2885, %v2718
    %v2887 = vpop.permute.xlu0 %2886
    %v2889 = vadd.f32 %v2731, %v2887
    %v2890 = vperm.slane %v2889, 0
    %v2891 = vlaneseq
    %v2892 = vshrl.u32 %v2891, 7
    %2894 = vset.pattern.permute.xlu0 %v2892
    %2895 = vperm.xlu0 %2894, %v2890
    %v2896 = vpop.permute.xlu0 %2895
    %v2897 = vperm.slane %v2889, 1
    %v2898 = vlaneseq
    %v2899 = vshrl.u32 %v2898, 7
    %2901 = vset.pattern.permute.xlu0 %v2899
    %2902 = vperm.xlu0 %2901, %v2897
    %v2903 = vpop.permute.xlu0 %2902
    %v2904 = vsub.f32 %v111, %v2896
    %v2905 = vsub.f32 %v111, %v2903
    %v2906 = vmul.f32 %v2904, %v2780
    %v2907 = vmul.f32 %v2905, %v2795
    %v2908 = vmul.f32 %v2906, %v2906
    %v2909 = vmul.f32 %v2907, %v2907
    %v2910 = vadd.f32 %v2908, 1.0
    %v2911 = vadd.f32 %v2909, 1.0
    %v2912 = vmul.f32 %v2809, %v2910
    %v2913 = vmul.f32 %v2813, %v2911
    %v2914 = vrcp.pop %v2912
    %v2915 = vmul.f32 %v2912, %v2914
    %v2916 = vsub.f32 1.0, %v2915
    %v2917 = vmul.f32 %v2914, %v2916
    %v2918 = vadd.f32 %v2914, %v2917
    %vm2919 = vweird.f32 %v2912
    %vm2920 = vweird.f32 %v2914
    %vm2921 = vmor %vm2919, %vm2920
    %v2922 = vsel %vm2921, %v2914, %v2918
    %v2923 = vand.u32 2147483647, %v2912
    %vm2924 = vcmp.eq.f32.partialorder %v2923, 8.507059e+37
    %v2925 = vand.u32 %v2912, 2147483648
    %v2926 = vor.u32 1.1754944e-38, %v2925
    %v2927 = vsel %vm2924, %v2926, %v2922
    %v2928 = vmul.f32 1.0, %v2927
    %v2929 = vrcp.pop %v2913
    %v2930 = vmul.f32 %v2913, %v2929
    %v2931 = vsub.f32 1.0, %v2930
    %v2932 = vmul.f32 %v2929, %v2931
    %v2933 = vadd.f32 %v2929, %v2932
    %vm2934 = vweird.f32 %v2913
    %vm2935 = vweird.f32 %v2929
    %vm2936 = vmor %vm2934, %vm2935
    %v2937 = vsel %vm2936, %v2929, %v2933
    %v2938 = vand.u32 2147483647, %v2913
    %vm2939 = vcmp.eq.f32.partialorder %v2938, 8.507059e+37
    %v2940 = vand.u32 %v2913, 2147483648
    %v2941 = vor.u32 1.1754944e-38, %v2940
    %v2942 = vsel %vm2939, %v2941, %v2937
    %v2943 = vmul.f32 1.0, %v2942
    %v2944 = vsel %vm234, %v2928, 0.0
    %2945 = vadd.xlane.f32.xlu0 %v2944
    %v2946 = vpop.xlane.xlu0 %2945
    %v2947 = vsel %vm234, %v2943, 0.0
    %2948 = vadd.xlane.f32.xlu0 %v2947
    %v2949 = vpop.xlane.xlu0 %2948
    %v2950 = vadd.f32 %v2946, 0.0001
    %v2951 = vadd.f32 %v2949, 0.0001
    %v2952 = vrcp.pop %v2950
    %v2953 = vmul.f32 %v2950, %v2952
    %v2954 = vsub.f32 1.0, %v2953
    %v2955 = vmul.f32 %v2952, %v2954
    %v2956 = vadd.f32 %v2952, %v2955
    %vm2957 = vweird.f32 %v2950
    %vm2958 = vweird.f32 %v2952
    %vm2959 = vmor %vm2957, %vm2958
    %v2960 = vsel %vm2959, %v2952, %v2956
    %v2961 = vand.u32 2147483647, %v2950
    %vm2962 = vcmp.eq.f32.partialorder %v2961, 8.507059e+37
    %v2963 = vand.u32 %v2950, 2147483648
    %v2964 = vor.u32 1.1754944e-38, %v2963
    %v2965 = vsel %vm2962, %v2964, %v2960
    %v2966 = vmul.f32 %v2928, %v2965
    %v2967 = vrcp.pop %v2951
    %v2968 = vmul.f32 %v2951, %v2967
    %v2969 = vsub.f32 1.0, %v2968
    %v2970 = vmul.f32 %v2967, %v2969
    %v2971 = vadd.f32 %v2967, %v2970
    %vm2972 = vweird.f32 %v2951
    %vm2973 = vweird.f32 %v2967
    %vm2974 = vmor %vm2972, %vm2973
    %v2975 = vsel %vm2974, %v2967, %v2971
    %v2976 = vand.u32 2147483647, %v2951
    %vm2977 = vcmp.eq.f32.partialorder %v2976, 8.507059e+37
    %v2978 = vand.u32 %v2951, 2147483648
    %v2979 = vor.u32 1.1754944e-38, %v2978
    %v2980 = vsel %vm2977, %v2979, %v2975
    %v2981 = vmul.f32 %v2943, %v2980
    %v2983 = vsel %vm370, %v2869, 0
    %2985 = vmatpush.msra.mxu0 0.0
    %2986 = vmatpush.msra.mxu0 0.0
    %2987 = vmatpush.msra.mxu0 0.0
    %2988 = vmatpush.msra.mxu0 0.0
    %2989 = vmatpush.msra.mxu0 0.0
    %2990 = vmatpush.msra.mxu0 0.0
    %2991 = vmatpush.msra.mxu0 0.0
    %2992 = vmatpush.msra.mxu0 0.0
    %2993 = vmatpush.msra.mxu0 0.0
    %2994 = vmatpush.msra.mxu0 0.0
    %2995 = vmatpush.msra.mxu0 0.0
    %2996 = vmatpush.msra.mxu0 0.0
    %2997 = vmatpush.msra.mxu0 0.0
    %2998 = vmatpush.msra.mxu0 0.0
    %2999 = vmatpush.msra.mxu0 %v2687
    %3000 = vmatpush.msra.mxu0 %v2686
    %3001 = vmatmul.f32.gmra.mxu0 %v2983
    %v3002 = vpop.f32.mrf.mxu0
    %v3003 = vadd.f32 0.0, %v3002
    %3004 = vdwg.mxu0
    %v3006 = vsel %vm370, %v2884, 0
    %3008 = vmatpush.msra.mxu0 0.0
    %3009 = vmatpush.msra.mxu0 0.0
    %3010 = vmatpush.msra.mxu0 0.0
    %3011 = vmatpush.msra.mxu0 0.0
    %3012 = vmatpush.msra.mxu0 0.0
    %3013 = vmatpush.msra.mxu0 0.0
    %3014 = vmatpush.msra.mxu0 0.0
    %3015 = vmatpush.msra.mxu0 0.0
    %3016 = vmatpush.msra.mxu0 0.0
    %3017 = vmatpush.msra.mxu0 0.0
    %3018 = vmatpush.msra.mxu0 0.0
    %3019 = vmatpush.msra.mxu0 0.0
    %3020 = vmatpush.msra.mxu0 0.0
    %3021 = vmatpush.msra.mxu0 0.0
    %3022 = vmatpush.msra.mxu0 %v2689
    %3023 = vmatpush.msra.mxu0 %v2688
    %3024 = vmatmul.f32.gmra.mxu0 %v3006
    %v3025 = vpop.f32.mrf.mxu0
    %v3026 = vadd.f32 0.0, %v3025
    %3027 = vdwg.mxu0
    %v3029 = vsel %vm370, %v3003, 0
    %v3032 = vsel %vm370, %v2966, 0
    %3034 = vmatpush.xpose.msra.mxu0 0.0
    %3035 = vmatpush.xpose.msra.mxu0 0.0
    %3036 = vmatpush.xpose.msra.mxu0 0.0
    %3037 = vmatpush.xpose.msra.mxu0 0.0
    %3038 = vmatpush.xpose.msra.mxu0 0.0
    %3039 = vmatpush.xpose.msra.mxu0 0.0
    %3040 = vmatpush.xpose.msra.mxu0 0.0
    %3041 = vmatpush.xpose.msra.mxu0 0.0
    %3042 = vmatpush.xpose.msra.mxu0 0.0
    %3043 = vmatpush.xpose.msra.mxu0 0.0
    %3044 = vmatpush.xpose.msra.mxu0 0.0
    %3045 = vmatpush.xpose.msra.mxu0 0.0
    %3046 = vmatpush.xpose.msra.mxu0 0.0
    %3047 = vmatpush.xpose.msra.mxu0 0.0
    %3048 = vmatpush.xpose.msra.mxu0 0.0
    %3049 = vmatpush.xpose.msra.mxu0 %v3032
    %3050 = vmatmul.f32.gmra.mxu0 %v3029
    %v3051 = vpop.f32.mrf.mxu0
    %v3052 = vadd.f32 0.0, %v3051
    %3053 = vdwg.mxu0
    %v3055 = vsel %vm370, %v3026, 0
    %v3058 = vsel %vm370, %v2981, 0
    %3060 = vmatpush.xpose.msra.mxu0 0.0
    %3061 = vmatpush.xpose.msra.mxu0 0.0
    %3062 = vmatpush.xpose.msra.mxu0 0.0
    %3063 = vmatpush.xpose.msra.mxu0 0.0
    %3064 = vmatpush.xpose.msra.mxu0 0.0
    %3065 = vmatpush.xpose.msra.mxu0 0.0
    %3066 = vmatpush.xpose.msra.mxu0 0.0
    %3067 = vmatpush.xpose.msra.mxu0 0.0
    %3068 = vmatpush.xpose.msra.mxu0 0.0
    %3069 = vmatpush.xpose.msra.mxu0 0.0
    %3070 = vmatpush.xpose.msra.mxu0 0.0
    %3071 = vmatpush.xpose.msra.mxu0 0.0
    %3072 = vmatpush.xpose.msra.mxu0 0.0
    %3073 = vmatpush.xpose.msra.mxu0 0.0
    %3074 = vmatpush.xpose.msra.mxu0 0.0
    %3075 = vmatpush.xpose.msra.mxu0 %v3058
    %3076 = vmatmul.f32.gmra.mxu0 %v3055
    %v3077 = vpop.f32.mrf.mxu0
    %v3078 = vadd.f32 0.0, %v3077
    %3079 = vdwg.mxu0
    %v3081 = vunpack.c.l.s4 1983009808
    %v3082 = vunpack.c.0.s8 %v3081
    %v3083 = vperm.slane %v3052, %v3082
    %v3085 = vunpack.c.l.s4 1983009808
    %v3086 = vunpack.c.0.s8 %v3085
    %v3087 = vperm.slane %v3078, %v3086
    %v3088 = vrot.slane %v3087, 4
    %v3089 = vsel %vm478, %v3088, %v3083
    %v3090 = vrot.slane %v3083, 4
    %v3091 = vsel %vm478, %v3087, %v3090
    %v3093 = vunpack.c.l.s4 1934713408
    %v3094 = vunpack.c.0.s8 %v3093
    %v3095 = vperm.slane %v3089, %v3094
    %v3097 = vunpack.c.l.s4 1934713408
    %v3098 = vunpack.c.0.s8 %v3097
    %v3099 = vperm.slane %v3091, %v3098
    %v3100 = vrot.slane %v3095, 4
    %v3101 = vsel %vm478, 0.0, %v3100
    %v3102 = vrot.slane %v3099, 4
    %v3103 = vsel %vm478, 0.0, %v3102
    %3105 = vrot.lane.b32.xlu0 %v3101, 4
    %v3106 = vpop.permute.xlu0 %3105
    %3109 = vrot.lane.b32.xlu0 %v3099, 8
    %v3110 = vpop.permute.xlu0 %3109
    %3113 = vrot.lane.b32.xlu0 %v3103, 12
    %v3114 = vpop.permute.xlu0 %3113
    %v3116 = vsel %vm506, %v3095, %v3106
    %v3117 = vsel %vm508, %v3116, %v3110
    %v3118 = vsel %vm510, %v3117, %v3114
    %3119 = vrot.lane.b32.xlu0 %v3003, 112
    %v3120 = vpop.permute.xlu0 %3119
    %v3121 = vsel %vm370, %v3120, 0
    %3123 = vmatpush.xpose.msra.mxu0 0.0
    %3124 = vmatpush.xpose.msra.mxu0 0.0
    %3125 = vmatpush.xpose.msra.mxu0 0.0
    %3126 = vmatpush.xpose.msra.mxu0 0.0
    %3127 = vmatpush.xpose.msra.mxu0 0.0
    %3128 = vmatpush.xpose.msra.mxu0 0.0
    %3129 = vmatpush.xpose.msra.mxu0 0.0
    %3130 = vmatpush.xpose.msra.mxu0 0.0
    %3131 = vmatpush.xpose.msra.mxu0 0.0
    %3132 = vmatpush.xpose.msra.mxu0 0.0
    %3133 = vmatpush.xpose.msra.mxu0 0.0
    %3134 = vmatpush.xpose.msra.mxu0 0.0
    %3135 = vmatpush.xpose.msra.mxu0 0.0
    %3136 = vmatpush.xpose.msra.mxu0 0.0
    %3137 = vmatpush.xpose.msra.mxu0 0.0
    %3138 = vmatpush.xpose.msra.mxu0 %v3032
    %3139 = vmatmul.f32.gmra.mxu0 %v3121
    %v3140 = vpop.f32.mrf.mxu0
    %v3141 = vadd.f32 0.0, %v3140
    %3142 = vdwg.mxu0
    %3143 = vrot.lane.b32.xlu0 %v3026, 112
    %v3144 = vpop.permute.xlu0 %3143
    %v3145 = vsel %vm370, %v3144, 0
    %3147 = vmatpush.xpose.msra.mxu0 0.0
    %3148 = vmatpush.xpose.msra.mxu0 0.0
    %3149 = vmatpush.xpose.msra.mxu0 0.0
    %3150 = vmatpush.xpose.msra.mxu0 0.0
    %3151 = vmatpush.xpose.msra.mxu0 0.0
    %3152 = vmatpush.xpose.msra.mxu0 0.0
    %3153 = vmatpush.xpose.msra.mxu0 0.0
    %3154 = vmatpush.xpose.msra.mxu0 0.0
    %3155 = vmatpush.xpose.msra.mxu0 0.0
    %3156 = vmatpush.xpose.msra.mxu0 0.0
    %3157 = vmatpush.xpose.msra.mxu0 0.0
    %3158 = vmatpush.xpose.msra.mxu0 0.0
    %3159 = vmatpush.xpose.msra.mxu0 0.0
    %3160 = vmatpush.xpose.msra.mxu0 0.0
    %3161 = vmatpush.xpose.msra.mxu0 0.0
    %3162 = vmatpush.xpose.msra.mxu0 %v3058
    %3163 = vmatmul.f32.gmra.mxu0 %v3145
    %v3164 = vpop.f32.mrf.mxu0
    %v3165 = vadd.f32 0.0, %v3164
    %3166 = vdwg.mxu0
    %v3168 = vunpack.c.l.s4 1983009808
    %v3169 = vunpack.c.0.s8 %v3168
    %v3170 = vperm.slane %v3141, %v3169
    %v3172 = vunpack.c.l.s4 1983009808
    %v3173 = vunpack.c.0.s8 %v3172
    %v3174 = vperm.slane %v3165, %v3173
    %v3175 = vrot.slane %v3174, 4
    %v3176 = vsel %vm478, %v3175, %v3170
    %v3177 = vrot.slane %v3170, 4
    %v3178 = vsel %vm478, %v3174, %v3177
    %v3180 = vunpack.c.l.s4 1934713408
    %v3181 = vunpack.c.0.s8 %v3180
    %v3182 = vperm.slane %v3176, %v3181
    %v3184 = vunpack.c.l.s4 1934713408
    %v3185 = vunpack.c.0.s8 %v3184
    %v3186 = vperm.slane %v3178, %v3185
    %v3187 = vrot.slane %v3182, 4
    %v3188 = vsel %vm478, 0.0, %v3187
    %v3189 = vrot.slane %v3186, 4
    %v3190 = vsel %vm478, 0.0, %v3189
    %3192 = vrot.lane.b32.xlu0 %v3188, 4
    %v3193 = vpop.permute.xlu0 %3192
    %3196 = vrot.lane.b32.xlu0 %v3186, 8
    %v3197 = vpop.permute.xlu0 %3196
    %3200 = vrot.lane.b32.xlu0 %v3190, 12
    %v3201 = vpop.permute.xlu0 %3200
    %v3203 = vsel %vm506, %v3182, %v3193
    %v3204 = vsel %vm508, %v3203, %v3197
    %v3205 = vsel %vm510, %v3204, %v3201
    %3206 = vrot.lane.b32.xlu0 %v3003, 96
    %v3207 = vpop.permute.xlu0 %3206
    %v3208 = vsel %vm370, %v3207, 0
    %3210 = vmatpush.xpose.msra.mxu0 0.0
    %3211 = vmatpush.xpose.msra.mxu0 0.0
    %3212 = vmatpush.xpose.msra.mxu0 0.0
    %3213 = vmatpush.xpose.msra.mxu0 0.0
    %3214 = vmatpush.xpose.msra.mxu0 0.0
    %3215 = vmatpush.xpose.msra.mxu0 0.0
    %3216 = vmatpush.xpose.msra.mxu0 0.0
    %3217 = vmatpush.xpose.msra.mxu0 0.0
    %3218 = vmatpush.xpose.msra.mxu0 0.0
    %3219 = vmatpush.xpose.msra.mxu0 0.0
    %3220 = vmatpush.xpose.msra.mxu0 0.0
    %3221 = vmatpush.xpose.msra.mxu0 0.0
    %3222 = vmatpush.xpose.msra.mxu0 0.0
    %3223 = vmatpush.xpose.msra.mxu0 0.0
    %3224 = vmatpush.xpose.msra.mxu0 0.0
    %3225 = vmatpush.xpose.msra.mxu0 %v3032
    %3226 = vmatmul.f32.gmra.mxu0 %v3208
    %v3227 = vpop.f32.mrf.mxu0
    %v3228 = vadd.f32 0.0, %v3227
    %3229 = vdwg.mxu0
    %3230 = vrot.lane.b32.xlu0 %v3026, 96
    %v3231 = vpop.permute.xlu0 %3230
    %v3232 = vsel %vm370, %v3231, 0
    %3234 = vmatpush.xpose.msra.mxu0 0.0
    %3235 = vmatpush.xpose.msra.mxu0 0.0
    %3236 = vmatpush.xpose.msra.mxu0 0.0
    %3237 = vmatpush.xpose.msra.mxu0 0.0
    %3238 = vmatpush.xpose.msra.mxu0 0.0
    %3239 = vmatpush.xpose.msra.mxu0 0.0
    %3240 = vmatpush.xpose.msra.mxu0 0.0
    %3241 = vmatpush.xpose.msra.mxu0 0.0
    %3242 = vmatpush.xpose.msra.mxu0 0.0
    %3243 = vmatpush.xpose.msra.mxu0 0.0
    %3244 = vmatpush.xpose.msra.mxu0 0.0
    %3245 = vmatpush.xpose.msra.mxu0 0.0
    %3246 = vmatpush.xpose.msra.mxu0 0.0
    %3247 = vmatpush.xpose.msra.mxu0 0.0
    %3248 = vmatpush.xpose.msra.mxu0 0.0
    %3249 = vmatpush.xpose.msra.mxu0 %v3058
    %3250 = vmatmul.f32.gmra.mxu0 %v3232
    %v3251 = vpop.f32.mrf.mxu0
    %v3252 = vadd.f32 0.0, %v3251
    %3253 = vdwg.mxu0
    %v3255 = vunpack.c.l.s4 1983009808
    %v3256 = vunpack.c.0.s8 %v3255
    %v3257 = vperm.slane %v3228, %v3256
    %v3259 = vunpack.c.l.s4 1983009808
    %v3260 = vunpack.c.0.s8 %v3259
    %v3261 = vperm.slane %v3252, %v3260
    %v3262 = vrot.slane %v3261, 4
    %v3263 = vsel %vm478, %v3262, %v3257
    %v3264 = vrot.slane %v3257, 4
    %v3265 = vsel %vm478, %v3261, %v3264
    %v3267 = vunpack.c.l.s4 1934713408
    %v3268 = vunpack.c.0.s8 %v3267
    %v3269 = vperm.slane %v3263, %v3268
    %v3271 = vunpack.c.l.s4 1934713408
    %v3272 = vunpack.c.0.s8 %v3271
    %v3273 = vperm.slane %v3265, %v3272
    %v3274 = vrot.slane %v3269, 4
    %v3275 = vsel %vm478, 0.0, %v3274
    %v3276 = vrot.slane %v3273, 4
    %v3277 = vsel %vm478, 0.0, %v3276
    %3279 = vrot.lane.b32.xlu0 %v3275, 4
    %v3280 = vpop.permute.xlu0 %3279
    %3283 = vrot.lane.b32.xlu0 %v3273, 8
    %v3284 = vpop.permute.xlu0 %3283
    %3287 = vrot.lane.b32.xlu0 %v3277, 12
    %v3288 = vpop.permute.xlu0 %3287
    %v3290 = vsel %vm506, %v3269, %v3280
    %v3291 = vsel %vm508, %v3290, %v3284
    %v3292 = vsel %vm510, %v3291, %v3288
    %3294 = vrot.lane.b32.xlu0 %v3205, 16
    %v3295 = vpop.permute.xlu0 %3294
    %3298 = vrot.lane.b32.xlu0 %v3292, 32
    %v3299 = vpop.permute.xlu0 %3298
    %v3301 = vsel %vm370, %v3118, %v3295
    %v3302 = vsel %vm69, %v3301, %v3299
    %v3304 = vsel %vm699, %v3302, 0
    %3306 = vmatpush.msra.mxu0 0.0
    %3307 = vmatpush.msra.mxu0 0.0
    %3308 = vmatpush.msra.mxu0 0.0
    %3309 = vmatpush.msra.mxu0 0.0
    %3310 = vmatpush.msra.mxu0 0.0
    %3311 = vmatpush.msra.mxu0 0.0
    %3312 = vmatpush.msra.mxu0 0.0
    %3313 = vmatpush.msra.mxu0 0.0
    %3314 = vmatpush.msra.mxu0 0.0
    %3315 = vmatpush.msra.mxu0 0.0
    %3316 = vmatpush.msra.mxu0 %v48
    %3317 = vmatpush.msra.mxu0 %v47
    %3318 = vmatpush.msra.mxu0 %v46
    %3319 = vmatpush.msra.mxu0 %v45
    %3320 = vmatpush.msra.mxu0 %v44
    %3321 = vmatpush.msra.mxu0 %v43
    %3322 = vmatmul.f32.gmra.mxu0 %v3304
    %v3323 = vpop.f32.mrf.mxu0
    %v3324 = vadd.f32 %v697, %v3323
    %3325 = vdwg.mxu0
    %3326 = vmatpush.msra.mxu0 0.0
    %3327 = vmatpush.msra.mxu0 0.0
    %3328 = vmatpush.msra.mxu0 0.0
    %3329 = vmatpush.msra.mxu0 0.0
    %3330 = vmatpush.msra.mxu0 0.0
    %3331 = vmatpush.msra.mxu0 0.0
    %3332 = vmatpush.msra.mxu0 0.0
    %3333 = vmatpush.msra.mxu0 0.0
    %3334 = vmatpush.msra.mxu0 0.0
    %3335 = vmatpush.msra.mxu0 0.0
    %3336 = vmatpush.msra.mxu0 0.0
    %3337 = vmatpush.msra.mxu0 0.0
    %3338 = vmatpush.msra.mxu0 %v53
    %3339 = vmatpush.msra.mxu0 %v52
    %3340 = vmatpush.msra.mxu0 %v51
    %3341 = vmatpush.msra.mxu0 %v50
    %3342 = vmatmul.f32.gmra.mxu0 %v2693
    %v3343 = vpop.f32.mrf.mxu0
    %v3344 = vadd.f32 0.0, %v3343
    %3345 = vdwg.mxu0
    %v3346 = vadd.f32 %v721, %v3344
    %v3347 = vadd.f32 %v3346, %v745
    %v3348 = vtanh.pop %v3347
    %v3349 = vxor.u32 %v3347, 2147483648
    %v3350 = vmul.f32 %v3349, 1.442695
    %v3351 = vpow.pop %v3350
    %v3352 = vadd.f32 %v3351, 1.0
    %v3353 = vrcp.pop %v3352
    %v3354 = vmul.f32 %v3352, %v3353
    %v3355 = vsub.f32 1.0, %v3354
    %v3356 = vmul.f32 %v3353, %v3355
    %v3357 = vadd.f32 %v3353, %v3356
    %vm3358 = vweird.f32 %v3352
    %vm3359 = vweird.f32 %v3353
    %vm3360 = vmor %vm3358, %vm3359
    %v3361 = vsel %vm3360, %v3353, %v3357
    %v3362 = vand.u32 2147483647, %v3352
    %vm3363 = vcmp.eq.f32.partialorder %v3362, 8.507059e+37
    %v3364 = vand.u32 %v3352, 2147483648
    %v3365 = vor.u32 1.1754944e-38, %v3364
    %v3366 = vsel %vm3363, %v3365, %v3361
    %v3367 = vmul.f32 1.0, %v3366
    %v3368 = vsel %vm61, %v3348, %v3367
    %v3369 = vmul.f32 %v3368, %v2678
    %3371 = vrot.lane.b32.xlu0 %v3368, 64
    %v3372 = vpop.permute.xlu0 %3371
    %v3374 = vmul.f32 %v3368, %v3372
    %3376 = vrot.lane.b32.xlu0 %v3374, 32
    %v3377 = vpop.permute.xlu0 %3376
    %v3379 = vadd.f32 %v3369, %v3377
    %v3380 = vtanh.pop %v3379
    %3382 = vrot.lane.b32.xlu0 %v3380, 64
    %v3383 = vpop.permute.xlu0 %3382
    %v3385 = vmul.f32 %v3368, %v3383
    %v3386 = vmul.f32 %v3379, %v789
    %3388 = vrot.lane.b32.xlu0 %v3386, 96
    %v3389 = vpop.permute.xlu0 %3388
    %v3391 = vsel %vm796, %v3389, 0.0
    %3392 = vadd.xlane.f32.xlu0 %v3391
    %v3393 = vpop.xlane.xlu0 %3392
    %v3394 = vadd.f32 %v3393, %v801
    %v3395 = vxor.u32 %v3394, 2147483648
    %v3396 = vmul.f32 %v3395, 1.442695
    %v3397 = vpow.pop %v3396
    %v3398 = vadd.f32 %v3397, 1.0
    %v3399 = vrcp.pop %v3398
    %v3400 = vmul.f32 %v3398, %v3399
    %v3401 = vsub.f32 1.0, %v3400
    %v3402 = vmul.f32 %v3399, %v3401
    %v3403 = vadd.f32 %v3399, %v3402
    %vm3404 = vweird.f32 %v3398
    %vm3405 = vweird.f32 %v3399
    %vm3406 = vmor %vm3404, %vm3405
    %v3407 = vsel %vm3406, %v3399, %v3403
    %v3408 = vand.u32 2147483647, %v3398
    %vm3409 = vcmp.eq.f32.partialorder %v3408, 8.507059e+37
    %v3410 = vand.u32 %v3398, 2147483648
    %v3411 = vor.u32 1.1754944e-38, %v3410
    %v3412 = vsel %vm3409, %v3411, %v3407
    %v3413 = vmul.f32 1.0, %v3412
    %v3414 = vsub.f32 1.0, %v2685
    %v3415 = vmin.f32 %v2684, %v3414
    %v3416 = vadd.f32 %v2685, %v3415
    %v3417 = vround.ne.pseudo %v3416
    %3419 = vset.pattern.permute.xlu0 0
    %3420 = vperm.xlu0 %3419, %v3417
    %v3421 = vpop.permute.xlu0 %3420
    %v3423 = vmul.f32 %v3421, %v3379
    %v3424 = vsub.f32 1.0, %v3417
    %3426 = vset.pattern.permute.xlu0 0
    %3427 = vperm.xlu0 %3426, %v3424
    %v3428 = vpop.permute.xlu0 %3427
    %v3430 = vmul.f32 %v3428, %v2678
    %v3431 = vadd.f32 %v3423, %v3430
    %v3432 = vmul.f32 %v3421, %v3385
    %v3433 = vmul.f32 %v3428, %v2681
    %v3434 = vadd.f32 %v3432, %v3433
    %v3435 = vmul.f32 %v3417, %v3413
    %v3436 = vmul.f32 %v3424, %v2684
    %v3437 = vadd.f32 %v3435, %v3436
    %v3438 = vmul.f32 %v3424, %v3416
    %3440 = vrot.lane.b32.xlu0 %v3434, 32
    %v3441 = vpop.permute.xlu0 %3440
    %v3442 = vsel %vm69, %v3441, 0
    %3444 = vmatpush.msra.mxu0 0.0
    %3445 = vmatpush.msra.mxu0 0.0
    %3446 = vmatpush.msra.mxu0 0.0
    %3447 = vmatpush.msra.mxu0 0.0
    %3448 = vmatpush.msra.mxu0 0.0
    %3449 = vmatpush.msra.mxu0 0.0
    %3450 = vmatpush.msra.mxu0 0.0
    %3451 = vmatpush.msra.mxu0 0.0
    %3452 = vmatpush.msra.mxu0 0.0
    %3453 = vmatpush.msra.mxu0 0.0
    %3454 = vmatpush.msra.mxu0 0.0
    %3455 = vmatpush.msra.mxu0 0.0
    %3456 = vmatpush.msra.mxu0 %v53
    %3457 = vmatpush.msra.mxu0 %v52
    %3458 = vmatpush.msra.mxu0 %v51
    %3459 = vmatpush.msra.mxu0 %v50
    %3460 = vmatmul.f32.gmra.mxu0 %v3442
    %v3461 = vpop.f32.mrf.mxu0
    %v3462 = vadd.f32 0.0, %v3461
    %3463 = vdwg.mxu0
    %v3464 = vadd.f32 %v1465, %v3462
    %v3465 = vadd.f32 %v3464, %v745
    %v3466 = vtanh.pop %v3465
    %v3467 = vxor.u32 %v3465, 2147483648
    %v3468 = vmul.f32 %v3467, 1.442695
    %v3469 = vpow.pop %v3468
    %v3470 = vadd.f32 %v3469, 1.0
    %v3471 = vrcp.pop %v3470
    %v3472 = vmul.f32 %v3470, %v3471
    %v3473 = vsub.f32 1.0, %v3472
    %v3474 = vmul.f32 %v3471, %v3473
    %v3475 = vadd.f32 %v3471, %v3474
    %vm3476 = vweird.f32 %v3470
    %vm3477 = vweird.f32 %v3471
    %vm3478 = vmor %vm3476, %vm3477
    %v3479 = vsel %vm3478, %v3471, %v3475
    %v3480 = vand.u32 2147483647, %v3470
    %vm3481 = vcmp.eq.f32.partialorder %v3480, 8.507059e+37
    %v3482 = vand.u32 %v3470, 2147483648
    %v3483 = vor.u32 1.1754944e-38, %v3482
    %v3484 = vsel %vm3481, %v3483, %v3479
    %v3485 = vmul.f32 1.0, %v3484
    %v3486 = vsel %vm61, %v3466, %v3485
    %v3487 = vmul.f32 %v3486, %v3431
    %3489 = vrot.lane.b32.xlu0 %v3486, 64
    %v3490 = vpop.permute.xlu0 %3489
    %v3492 = vmul.f32 %v3486, %v3490
    %3494 = vrot.lane.b32.xlu0 %v3492, 32
    %v3495 = vpop.permute.xlu0 %3494
    %v3497 = vadd.f32 %v3487, %v3495
    %v3498 = vtanh.pop %v3497
    %3500 = vrot.lane.b32.xlu0 %v3498, 64
    %v3501 = vpop.permute.xlu0 %3500
    %v3503 = vmul.f32 %v3486, %v3501
    %v3504 = vmul.f32 %v3497, %v789
    %3506 = vrot.lane.b32.xlu0 %v3504, 96
    %v3507 = vpop.permute.xlu0 %3506
    %v3509 = vsel %vm796, %v3507, 0.0
    %3510 = vadd.xlane.f32.xlu0 %v3509
    %v3511 = vpop.xlane.xlu0 %3510
    %v3512 = vadd.f32 %v3511, %v801
    %v3513 = vxor.u32 %v3512, 2147483648
    %v3514 = vmul.f32 %v3513, 1.442695
    %v3515 = vpow.pop %v3514
    %v3516 = vadd.f32 %v3515, 1.0
    %v3517 = vrcp.pop %v3516
    %v3518 = vmul.f32 %v3516, %v3517
    %v3519 = vsub.f32 1.0, %v3518
    %v3520 = vmul.f32 %v3517, %v3519
    %v3521 = vadd.f32 %v3517, %v3520
    %vm3522 = vweird.f32 %v3516
    %vm3523 = vweird.f32 %v3517
    %vm3524 = vmor %vm3522, %vm3523
    %v3525 = vsel %vm3524, %v3517, %v3521
    %v3526 = vand.u32 2147483647, %v3516
    %vm3527 = vcmp.eq.f32.partialorder %v3526, 8.507059e+37
    %v3528 = vand.u32 %v3516, 2147483648
    %v3529 = vor.u32 1.1754944e-38, %v3528
    %v3530 = vsel %vm3527, %v3529, %v3525
    %v3531 = vmul.f32 1.0, %v3530
    %v3532 = vsub.f32 1.0, %v3438
    %v3533 = vmin.f32 %v3437, %v3532
    %v3534 = vadd.f32 %v3438, %v3533
    %v3535 = vround.ne.pseudo %v3534
    %3537 = vset.pattern.permute.xlu0 0
    %3538 = vperm.xlu0 %3537, %v3535
    %v3539 = vpop.permute.xlu0 %3538
    %v3541 = vmul.f32 %v3539, %v3497
    %v3542 = vsub.f32 1.0, %v3535
    %3544 = vset.pattern.permute.xlu0 0
    %3545 = vperm.xlu0 %3544, %v3542
    %v3546 = vpop.permute.xlu0 %3545
    %v3548 = vmul.f32 %v3546, %v3431
    %v3549 = vadd.f32 %v3541, %v3548
    %v3550 = vmul.f32 %v3539, %v3503
    %v3551 = vmul.f32 %v3546, %v3434
    %v3552 = vadd.f32 %v3550, %v3551
    %v3553 = vmul.f32 %v3535, %v3531
    %v3554 = vmul.f32 %v3542, %v3437
    %v3555 = vadd.f32 %v3553, %v3554
    %v3556 = vmul.f32 %v3542, %v3534
    %3558 = vrot.lane.b32.xlu0 %v3552, 32
    %v3559 = vpop.permute.xlu0 %3558
    %v3560 = vsel %vm69, %v3559, 0
    %3562 = vmatpush.msra.mxu0 0.0
    %3563 = vmatpush.msra.mxu0 0.0
    %3564 = vmatpush.msra.mxu0 0.0
    %3565 = vmatpush.msra.mxu0 0.0
    %3566 = vmatpush.msra.mxu0 0.0
    %3567 = vmatpush.msra.mxu0 0.0
    %3568 = vmatpush.msra.mxu0 0.0
    %3569 = vmatpush.msra.mxu0 0.0
    %3570 = vmatpush.msra.mxu0 0.0
    %3571 = vmatpush.msra.mxu0 0.0
    %3572 = vmatpush.msra.mxu0 0.0
    %3573 = vmatpush.msra.mxu0 0.0
    %3574 = vmatpush.msra.mxu0 %v53
    %3575 = vmatpush.msra.mxu0 %v52
    %3576 = vmatpush.msra.mxu0 %v51
    %3577 = vmatpush.msra.mxu0 %v50
    %3578 = vmatmul.f32.gmra.mxu0 %v3560
    %v3579 = vpop.f32.mrf.mxu0
    %v3580 = vadd.f32 0.0, %v3579
    %3581 = vdwg.mxu0
    %v3582 = vadd.f32 %v2335, %v3580
    %v3583 = vadd.f32 %v3582, %v745
    %v3584 = vtanh.pop %v3583
    %v3585 = vxor.u32 %v3583, 2147483648
    %v3586 = vmul.f32 %v3585, 1.442695
    %v3587 = vpow.pop %v3586
    %v3588 = vadd.f32 %v3587, 1.0
    %v3589 = vrcp.pop %v3588
    %v3590 = vmul.f32 %v3588, %v3589
    %v3591 = vsub.f32 1.0, %v3590
    %v3592 = vmul.f32 %v3589, %v3591
    %v3593 = vadd.f32 %v3589, %v3592
    %vm3594 = vweird.f32 %v3588
    %vm3595 = vweird.f32 %v3589
    %vm3596 = vmor %vm3594, %vm3595
    %v3597 = vsel %vm3596, %v3589, %v3593
    %v3598 = vand.u32 2147483647, %v3588
    %vm3599 = vcmp.eq.f32.partialorder %v3598, 8.507059e+37
    %v3600 = vand.u32 %v3588, 2147483648
    %v3601 = vor.u32 1.1754944e-38, %v3600
    %v3602 = vsel %vm3599, %v3601, %v3597
    %v3603 = vmul.f32 1.0, %v3602
    %v3604 = vsel %vm61, %v3584, %v3603
    %v3605 = vmul.f32 %v3604, %v3549
    %3607 = vrot.lane.b32.xlu0 %v3604, 64
    %v3608 = vpop.permute.xlu0 %3607
    %v3610 = vmul.f32 %v3604, %v3608
    %3612 = vrot.lane.b32.xlu0 %v3610, 32
    %v3613 = vpop.permute.xlu0 %3612
    %v3615 = vadd.f32 %v3605, %v3613
    %v3616 = vtanh.pop %v3615
    %3618 = vrot.lane.b32.xlu0 %v3616, 64
    %v3619 = vpop.permute.xlu0 %3618
    %v3621 = vmul.f32 %v3604, %v3619
    %v3622 = vmul.f32 %v3615, %v789
    %3624 = vrot.lane.b32.xlu0 %v3622, 96
    %v3625 = vpop.permute.xlu0 %3624
    %v3627 = vsel %vm796, %v3625, 0.0
    %3628 = vadd.xlane.f32.xlu0 %v3627
    %v3629 = vpop.xlane.xlu0 %3628
    %v3630 = vadd.f32 %v3629, %v801
    %v3631 = vxor.u32 %v3630, 2147483648
    %v3632 = vmul.f32 %v3631, 1.442695
    %v3633 = vpow.pop %v3632
    %v3634 = vadd.f32 %v3633, 1.0
    %v3635 = vrcp.pop %v3634
    %v3636 = vmul.f32 %v3634, %v3635
    %v3637 = vsub.f32 1.0, %v3636
    %v3638 = vmul.f32 %v3635, %v3637
    %v3639 = vadd.f32 %v3635, %v3638
    %vm3640 = vweird.f32 %v3634
    %vm3641 = vweird.f32 %v3635
    %vm3642 = vmor %vm3640, %vm3641
    %v3643 = vsel %vm3642, %v3635, %v3639
    %v3644 = vand.u32 2147483647, %v3634
    %vm3645 = vcmp.eq.f32.partialorder %v3644, 8.507059e+37
    %v3646 = vand.u32 %v3634, 2147483648
    %v3647 = vor.u32 1.1754944e-38, %v3646
    %v3648 = vsel %vm3645, %v3647, %v3643
    %v3649 = vmul.f32 1.0, %v3648
    %v3650 = vsub.f32 1.0, %v3556
    %v3651 = vmin.f32 %v3555, %v3650
    %v3652 = vadd.f32 %v3556, %v3651
    %v3653 = vround.ne.pseudo %v3652
    %3655 = vset.pattern.permute.xlu0 0
    %3656 = vperm.xlu0 %3655, %v3653
    %v3657 = vpop.permute.xlu0 %3656
    %v3659 = vmul.f32 %v3657, %v3615
    %v3660 = vsub.f32 1.0, %v3653
    %3662 = vset.pattern.permute.xlu0 0
    %3663 = vperm.xlu0 %3662, %v3660
    %v3664 = vpop.permute.xlu0 %3663
    %v3666 = vmul.f32 %v3664, %v3549
    %v3667 = vadd.f32 %v3659, %v3666
    %v3668 = vmul.f32 %v3657, %v3621
    %v3669 = vmul.f32 %v3664, %v3552
    %v3670 = vadd.f32 %v3668, %v3669
    %v3671 = vmul.f32 %v3653, %v3649
    %v3672 = vmul.f32 %v3660, %v3555
    %v3673 = vadd.f32 %v3671, %v3672
    %v3674 = vmul.f32 %v3660, %v3652
    %3676 = vrot.lane.b32.xlu0 %v3670, 32
    %v3677 = vpop.permute.xlu0 %3676
    %v3678 = vsel %vm69, %v3677, 0
    %3680 = vmatpush.msra.mxu0 0.0
    %3681 = vmatpush.msra.mxu0 0.0
    %3682 = vmatpush.msra.mxu0 0.0
    %3683 = vmatpush.msra.mxu0 0.0
    %3684 = vmatpush.msra.mxu0 0.0
    %3685 = vmatpush.msra.mxu0 0.0
    %3686 = vmatpush.msra.mxu0 0.0
    %3687 = vmatpush.msra.mxu0 0.0
    %3688 = vmatpush.msra.mxu0 0.0
    %3689 = vmatpush.msra.mxu0 0.0
    %3690 = vmatpush.msra.mxu0 0.0
    %3691 = vmatpush.msra.mxu0 0.0
    %3692 = vmatpush.msra.mxu0 %v53
    %3693 = vmatpush.msra.mxu0 %v52
    %3694 = vmatpush.msra.mxu0 %v51
    %3695 = vmatpush.msra.mxu0 %v50
    %3696 = vmatmul.f32.gmra.mxu0 %v3678
    %v3697 = vpop.f32.mrf.mxu0
    %v3698 = vadd.f32 0.0, %v3697
    %3699 = vdwg.mxu0
    %v3700 = vadd.f32 %v3324, %v3698
    %v3701 = vadd.f32 %v3700, %v745
    %v3702 = vtanh.pop %v3701
    %v3703 = vxor.u32 %v3701, 2147483648
    %v3704 = vmul.f32 %v3703, 1.442695
    %v3705 = vpow.pop %v3704
    %v3706 = vadd.f32 %v3705, 1.0
    %v3707 = vrcp.pop %v3706
    %v3708 = vmul.f32 %v3706, %v3707
    %v3709 = vsub.f32 1.0, %v3708
    %v3710 = vmul.f32 %v3707, %v3709
    %v3711 = vadd.f32 %v3707, %v3710
    %vm3712 = vweird.f32 %v3706
    %vm3713 = vweird.f32 %v3707
    %vm3714 = vmor %vm3712, %vm3713
    %v3715 = vsel %vm3714, %v3707, %v3711
    %v3716 = vand.u32 2147483647, %v3706
    %vm3717 = vcmp.eq.f32.partialorder %v3716, 8.507059e+37
    %v3718 = vand.u32 %v3706, 2147483648
    %v3719 = vor.u32 1.1754944e-38, %v3718
    %v3720 = vsel %vm3717, %v3719, %v3715
    %v3721 = vmul.f32 1.0, %v3720
    %v3722 = vsel %vm61, %v3702, %v3721
    %v3723 = vmul.f32 %v3722, %v3667
    %3725 = vrot.lane.b32.xlu0 %v3722, 64
    %v3726 = vpop.permute.xlu0 %3725
    %v3728 = vmul.f32 %v3722, %v3726
    %3730 = vrot.lane.b32.xlu0 %v3728, 32
    %v3731 = vpop.permute.xlu0 %3730
    %v3733 = vadd.f32 %v3723, %v3731
    %v3734 = vtanh.pop %v3733
    %3736 = vrot.lane.b32.xlu0 %v3734, 64
    %v3737 = vpop.permute.xlu0 %3736
    %v3739 = vmul.f32 %v3722, %v3737
    %v3740 = vsub.f32 1.0, %v3674
    %v3741 = vmin.f32 %v3673, %v3740
    %v3742 = vadd.f32 %v3674, %v3741
    %v3743 = vround.ne.pseudo %v3742
    %3745 = vset.pattern.permute.xlu0 0
    %3746 = vperm.xlu0 %3745, %v3743
    %v3747 = vpop.permute.xlu0 %3746
    %v3749 = vmul.f32 %v3747, %v3739
    %v3750 = vsub.f32 1.0, %v3743
    %3752 = vset.pattern.permute.xlu0 0
    %3753 = vperm.xlu0 %3752, %v3750
    %v3754 = vpop.permute.xlu0 %3753
    %v3756 = vmul.f32 %v3754, %v3670
    %v3757 = vadd.f32 %v3749, %v3756
    %3759 = vrot.lane.b32.xlu0 %v3757, 32
    %v3760 = vpop.permute.xlu0 %3759
    %3762 = vst.msk [vmem:[#allocation3] sm:$0x3] %vm796, %v3760
    %3763 = vrot.lane.b32.xlu0 %v1675, 1
    %v3764 = vpop.permute.xlu0 %3763
    %3766 = vrot.lane.b32.xlu0 %v2664, 2
    %v3767 = vpop.permute.xlu0 %3766
    %3769 = vrot.lane.b32.xlu0 %v3743, 3
    %v3770 = vpop.permute.xlu0 %3769
    %vm3772 = vcmask 7168
    %v3773 = vsel %vm3772, 1.0, %v3764
    %vm3774 = vcmask 15360
    %v3775 = vsel %vm3774, %v3773, %v3767
    %vm3776 = vcmask 23552
    %v3777 = vsel %vm3776, %v3775, %v3770
    %vm3778 = vcmask 25600
    %3779 = vst.msk [vmem:[#allocation5] sm:$0x3] %vm3778, %v3777
    // Predicated region
    $region38: #{skip_arc_forward.1} parent=1 // pred_check
      _
    $region39: #{skip_arc_forward.1} parent=1 // pred_check_branch
      %3781 = sbr.rel (0) target = $region41
    $region40: #{skip_arc_forward.1} parent=1 // pred_region
      %3783 = vsyncadd [#allocation4], 0
      %s3785 = sshll.u32 [#allocation3], 4
      %s3786 = int_to_ptr.vmem [resolvable:$true] %s3785
      %s3787 = sshll.u32 %s9, 4
      %s3788 = int_to_ptr.hbm [resolvable:$true] %s3787
      %3790 = dma.vmem_to_hbm [thread:$0]  %s3786, 32, %s3788, [#allocation4]
    $region41: #{skip_arc_forward.1} parent=1 // pred_fallthru
      _
    // Predicated region
    $region42: #{skip_arc_forward.1} parent=1 // pred_check
      _
    $region43: #{skip_arc_forward.1} parent=1 // pred_check_branch
      %3792 = sbr.rel (0) target = $region45
    $region44: #{skip_arc_forward.1} parent=1 // pred_region
      %3794 = vsyncadd [#allocation6], 0
      %s3796 = sshll.u32 [#allocation5], 4
      %s3797 = int_to_ptr.vmem [resolvable:$true] %s3796
      %s3798 = sshll.u32 %s10, 4
      %s3799 = int_to_ptr.hbm [resolvable:$true] %s3798
      %3801 = dma.vmem_to_hbm [thread:$0]  %s3797, 32, %s3799, [#allocation6]
    $region45: #{skip_arc_forward.1} parent=1 // pred_fallthru
      _
    // Predicated region
    $region46: #{skip_arc_forward.1} parent=1 // pred_check
      _
    $region47: #{skip_arc_forward.1} parent=1 // pred_check_branch
      %3803 = sbr.rel (0) target = $region49
    $region48: #{skip_arc_forward.1} parent=1 // pred_region
      %3805 = dma.done [#allocation4], 32
    $region49: #{skip_arc_forward.1} parent=1 // pred_fallthru
      _
    // Predicated region
    $region50: #{skip_arc_forward.1} parent=1 // pred_check
      _
    $region51: #{skip_arc_forward.1} parent=1 // pred_check_branch
      %3807 = sbr.rel (0) target = $region53
    $region52: #{skip_arc_forward.1} parent=1 // pred_region
      %3809 = dma.done [#allocation6], 32
    $region53: #{skip_arc_forward.1} parent=1 // pred_fallthru
      _
    %3810 = vsyncpa [#allocation4], 1
    %3811 = vsyncpa [#allocation6], 1

</llo_original>
